<compile_context>
chip_gen: v7x
topology: tpu7x:2x2x1
jax: 0.10.0
libtpu: 0.0.40
codegen_flags: <defaults>
</compile_context>

<pallas_src>
import numpy as np
import jax
import jax.numpy as jnp
from jax.experimental import pallas as pl
from jax.experimental.pallas import tpu as pltpu

# ---- module hyper-parameters (small, TPU-friendly) -------------------------
RECURRENT_SIZE = 32          # recurrent_size
OBS_SIZE = 32                # obs_size
MODEL_DIM = 64               # model_dim
LATENT_SIZE = 8              # latent_size
LATENT_CATEGORIES = 128      # latent_categories_size (lane-aligned)

BATCH = 8                    # env batch per timestep
TIME_STEPS = 32              # timesteps handled by one pallas_call
TIME_BLOCK = 16              # timesteps per grid step -> matmul M = 128 rows, grid = 2

IN_DIM = RECURRENT_SIZE + OBS_SIZE            # 64
LC = LATENT_SIZE * LATENT_CATEGORIES          # 1024


def encoder_kernel(hx_ref, gum_ref, w1_ref, b1_ref, w2_ref, b2_ref,
                   sample_ref, probs_ref):
    TB, B, K = hx_ref.shape
    L = probs_ref.shape[2]
    C = probs_ref.shape[3]
    M = TB * B

    # Stack timesteps into the matmul M dimension (merging leading dims is
    # layout-preserving: trailing (sublane, lane) tile untouched).
    hx = hx_ref[...].reshape(M, K).astype(jnp.bfloat16)

    # Linear(cat(h, x)) -> ReLU -> Linear.  bf16 MXU inputs, f32 accumulation.
    hidden = (jnp.dot(hx, w1_ref[...], preferred_element_type=jnp.float32)
              + b1_ref[...])
    hidden = jnp.maximum(hidden, 0.0)

    logits_flat = (jnp.dot(hidden.astype(jnp.bfloat16), w2_ref[...],
                           preferred_element_type=jnp.float32)
                   + b2_ref[...])
    # view(-1, latent_size, latent_categories): single lane-axis split relayout.
    logits = logits_flat.reshape(M, L, C)

    # softmax over categories (f32).
    mx = jnp.max(logits, axis=-1, keepdims=True)
    e = jnp.exp(logits - mx)
    denom = jnp.sum(e, axis=-1, keepdims=True)
    probs = e / denom

    # Categorical sample via Gumbel-max; noise pre-generated in the wrapper.
    gum = gum_ref[...].reshape(M, L, C).astype(jnp.float32)
    perturbed = logits + gum
    pmax = jnp.max(perturbed, axis=-1, keepdims=True)
    # Tie-break-free one-hot (exact f32 ties are measure-zero).
    hard = jnp.where(perturbed >= pmax, jnp.float32(1.0), jnp.float32(0.0))

    probs_ref[...] = probs.astype(probs_ref.dtype).reshape(TB, B, L, C)
    sample_ref[...] = hard.astype(sample_ref.dtype).reshape(TB, B, L, C)


def encoder_forward(h_seq, x_seq, params, key):
    """h_seq: (T, B, recurrent_size), x_seq: (T, B, obs_size)."""
    T, B, _ = h_seq.shape
    assert T % TIME_BLOCK == 0

    # Concat once in XLA (tiny) so the kernel does a single K=64 matmul.
    hx = jnp.concatenate([h_seq, x_seq], axis=-1)                      # (T, B, 64)
    # Gumbel noise for the categorical sample; bf16 halves the HBM read and the
    # noise only perturbs an argmax, so precision is statistically irrelevant.
    gumbel = jax.random.gumbel(
        key, (T, B, LATENT_SIZE, LATENT_CATEGORIES), jnp.float32
    ).astype(jnp.bfloat16)

    cost = pl.CostEstimate(
        flops=2 * T * B * (IN_DIM * MODEL_DIM + MODEL_DIM * LC),
        transcendentals=T * B * LC,                                    # exp
        bytes_accessed=(hx.size * 4 + gumbel.size * 2
                        + (IN_DIM * MODEL_DIM + MODEL_DIM * LC) * 2
                        + (MODEL_DIM + LC) * 4
                        + 2 * T * B * LC * 2),
    )

    grid_spec = pltpu.PrefetchScalarGridSpec(
        num_scalar_prefetch=0,
        grid=(T // TIME_BLOCK,),
        in_specs=[
            pl.BlockSpec((TIME_BLOCK, B, IN_DIM), lambda t: (t, 0, 0)),
            pl.BlockSpec((TIME_BLOCK, B, LATENT_SIZE, LATENT_CATEGORIES),
                         lambda t: (t, 0, 0, 0)),
            # weights/biases: constant block index -> DMA'd once, VMEM-resident
            pl.BlockSpec((IN_DIM, MODEL_DIM), lambda t: (0, 0)),
            pl.BlockSpec((1, MODEL_DIM), lambda t: (0, 0)),
            pl.BlockSpec((MODEL_DIM, LC), lambda t: (0, 0)),
            pl.BlockSpec((1, LC), lambda t: (0, 0)),
        ],
        out_specs=(
            pl.BlockSpec((TIME_BLOCK, B, LATENT_SIZE, LATENT_CATEGORIES),
                         lambda t: (t, 0, 0, 0)),
            pl.BlockSpec((TIME_BLOCK, B, LATENT_SIZE, LATENT_CATEGORIES),
                         lambda t: (t, 0, 0, 0)),
        ),
    )
    out_shape = (
        jax.ShapeDtypeStruct((T, B, LATENT_SIZE, LATENT_CATEGORIES), jnp.bfloat16),
        jax.ShapeDtypeStruct((T, B, LATENT_SIZE, LATENT_CATEGORIES), jnp.bfloat16),
    )

    hard, probs = pl.pallas_call(
        encoder_kernel,
        grid_spec=grid_spec,
        out_shape=out_shape,
        compiler_params=pltpu.CompilerParams(
            dimension_semantics=("parallel",)),   # timestep blocks across TCs (v7x)
        cost_estimate=cost,
    )(hx, gumbel, params["w1"], params["b1"], params["w2"], params["b2"])

    # Forward value of `hard + probs - probs.detach()` is exactly the one-hot, so
    # we return `hard` directly.
    # TODO(synk): wrap the pallas_call in jax.custom_vjp so the straight-through
    # gradient (d sample / d logits ~= d probs / d logits) actually flows.
    return hard, probs


def init_params(key):
    """Mimics torch.nn.Linear default init (uniform +-1/sqrt(fan_in)); MXU weights bf16."""
    k1, k2, k3, k4 = jax.random.split(key, 4)
    lim1 = 1.0 / np.sqrt(IN_DIM)
    lim2 = 1.0 / np.sqrt(MODEL_DIM)
    return {
        "w1": jax.random.uniform(k1, (IN_DIM, MODEL_DIM), jnp.float32,
                                 -lim1, lim1).astype(jnp.bfloat16),
        "b1": jax.random.uniform(k2, (1, MODEL_DIM), jnp.float32, -lim1, lim1),
        "w2": jax.random.uniform(k3, (MODEL_DIM, LC), jnp.float32,
                                 -lim2, lim2).astype(jnp.bfloat16),
        "b2": jax.random.uniform(k4, (1, LC), jnp.float32, -lim2, lim2),
    }


if __name__ == "__main__":
    key = jax.random.PRNGKey(0)
    k_param, k_h, k_x, k_noise = jax.random.split(key, 4)

    params = init_params(k_param)
    h_seq = jax.random.normal(k_h, (TIME_STEPS, BATCH, RECURRENT_SIZE), jnp.float32)
    x_seq = jax.random.normal(k_x, (TIME_STEPS, BATCH, OBS_SIZE), jnp.float32)

    sampled, probs = encoder_forward(h_seq, x_seq, params, k_noise)
    sampled = jax.block_until_ready(sampled)
    probs = jax.block_until_ready(probs)

    # sanity checks
    assert sampled.shape == (TIME_STEPS, BATCH, LATENT_SIZE, LATENT_CATEGORIES)
    assert probs.shape == (TIME_STEPS, BATCH, LATENT_SIZE, LATENT_CATEGORIES)
    p = np.asarray(probs, dtype=np.float32)
    s = np.asarray(sampled, dtype=np.float32)
    assert np.all(p >= 0.0)
    assert np.allclose(p.sum(-1), 1.0, atol=1e-2)   # bf16 matmuls + bf16 output
    assert np.all((s == 0.0) | (s == 1.0))          # bf16 one-hot is exact
    assert np.allclose(s.sum(-1), 1.0, atol=1e-3)   # exactly one category sampled

    print("KERNEL_OK")
</pallas_src>

<mosaic_0001>
module attributes {stable_mosaic.version = 11 : i64} {
  func.func @encoder_kernel(%arg0: i32, %arg1: memref<16x8x64xf32, #tpu.memory_space<vmem>>, %arg2: memref<16x8x8x128xbf16, #tpu.memory_space<vmem>>, %arg3: memref<64x64xbf16, #tpu.memory_space<vmem>>, %arg4: memref<1x64xf32, #tpu.memory_space<vmem>>, %arg5: memref<64x1024xbf16, #tpu.memory_space<vmem>>, %arg6: memref<1x1024xf32, #tpu.memory_space<vmem>>, %arg7: memref<16x8x8x128xbf16, #tpu.memory_space<vmem>>, %arg8: memref<16x8x8x128xbf16, #tpu.memory_space<vmem>>) attributes {dimension_semantics = [#tpu.dimension_semantics<parallel>], iteration_bounds = array<i64: 2>, scalar_prefetch = 0 : i64, scratch_operands = 0 : i64, tpu.core_type = #tpu.core_type<tc>, window_params = [{transform_indices = @transform_0, window_bounds = array<i64: 16, 8, 64>}, {transform_indices = @transform_1, window_bounds = array<i64: 16, 8, 8, 128>}, {pipeline_mode = #tpu.pipeline_mode<synchronous>, transform_indices = @transform_2, window_bounds = array<i64: 64, 64>}, {pipeline_mode = #tpu.pipeline_mode<synchronous>, transform_indices = @transform_3, window_bounds = array<i64: 1, 64>}, {pipeline_mode = #tpu.pipeline_mode<synchronous>, transform_indices = @transform_4, window_bounds = array<i64: 64, 1024>}, {pipeline_mode = #tpu.pipeline_mode<synchronous>, transform_indices = @transform_5, window_bounds = array<i64: 1, 1024>}, {transform_indices = @transform_6, window_bounds = array<i64: 16, 8, 8, 128>}, {transform_indices = @transform_7, window_bounds = array<i64: 16, 8, 8, 128>}]} {
    %c0 = arith.constant 0 : index
    %c0_0 = arith.constant 0 : index
    %c0_1 = arith.constant 0 : index
    %0 = vector.load %arg1[%c0, %c0_0, %c0_1] : memref<16x8x64xf32, #tpu.memory_space<vmem>>, vector<16x8x64xf32>
    %1 = vector.shape_cast %0 : vector<16x8x64xf32> to vector<128x64xf32>
    %2 = arith.truncf %1 : vector<128x64xf32> to vector<128x64xbf16>
    %c0_2 = arith.constant 0 : index
    %c0_3 = arith.constant 0 : index
    %3 = vector.load %arg3[%c0_2, %c0_3] : memref<64x64xbf16, #tpu.memory_space<vmem>>, vector<64x64xbf16>
    %cst = arith.constant dense<0.000000e+00> : vector<128x64xf32>
    %4 = tpu.matmul %2, %3, %cst {dimension_numbers = #tpu.dot_dimension_numbers<[1], [0], [0], [1], [0, 0, 1, 1], [], []>} : vector<128x64xbf16>, vector<64x64xbf16>, vector<128x64xf32> -> vector<128x64xf32>
    %c0_4 = arith.constant 0 : index
    %c0_5 = arith.constant 0 : index
    %5 = vector.load %arg4[%c0_4, %c0_5] : memref<1x64xf32, #tpu.memory_space<vmem>>, vector<1x64xf32>
    %6 = vector.broadcast %5 : vector<1x64xf32> to vector<128x64xf32>
    %7 = arith.addf %4, %6 : vector<128x64xf32>
    %cst_6 = arith.constant 0.000000e+00 : f32
    %8 = vector.broadcast %cst_6 : f32 to vector<128x64xf32>
    %9 = arith.maximumf %7, %8 : vector<128x64xf32>
    %10 = arith.truncf %9 : vector<128x64xf32> to vector<128x64xbf16>
    %c0_7 = arith.constant 0 : index
    %c0_8 = arith.constant 0 : index
    %11 = vector.load %arg5[%c0_7, %c0_8] : memref<64x1024xbf16, #tpu.memory_space<vmem>>, vector<64x1024xbf16>
    %cst_9 = arith.constant dense<0.000000e+00> : vector<128x1024xf32>
    %12 = tpu.matmul %10, %11, %cst_9 {dimension_numbers = #tpu.dot_dimension_numbers<[1], [0], [0], [1], [0, 0, 1, 1], [], []>} : vector<128x64xbf16>, vector<64x1024xbf16>, vector<128x1024xf32> -> vector<128x1024xf32>
    %c0_10 = arith.constant 0 : index
    %c0_11 = arith.constant 0 : index
    %13 = vector.load %arg6[%c0_10, %c0_11] : memref<1x1024xf32, #tpu.memory_space<vmem>>, vector<1x1024xf32>
    %14 = vector.broadcast %13 : vector<1x1024xf32> to vector<128x1024xf32>
    %15 = arith.addf %12, %14 : vector<128x1024xf32>
    %16 = vector.shape_cast %15 : vector<128x1024xf32> to vector<128x8x128xf32>
    %cst_12 = arith.constant dense<0xFF800000> : vector<128x8xf32>
    %17 = vector.multi_reduction <maximumf>, %16, %cst_12 [2] : vector<128x8x128xf32> to vector<128x8xf32>
    %18 = vector.shape_cast %17 : vector<128x8xf32> to vector<128x8x1xf32>
    %19 = vector.broadcast %18 : vector<128x8x1xf32> to vector<128x8x128xf32>
    %20 = arith.subf %16, %19 : vector<128x8x128xf32>
    %21 = math.exp %20 : vector<128x8x128xf32>
    %cst_13 = arith.constant dense<0.000000e+00> : vector<128x8xf32>
    %22 = vector.multi_reduction <add>, %21, %cst_13 [2] : vector<128x8x128xf32> to vector<128x8xf32>
    %23 = vector.shape_cast %22 : vector<128x8xf32> to vector<128x8x1xf32>
    %24 = vector.broadcast %23 : vector<128x8x1xf32> to vector<128x8x128xf32>
    %25 = arith.divf %21, %24 : vector<128x8x128xf32>
    %c0_14 = arith.constant 0 : index
    %c0_15 = arith.constant 0 : index
    %c0_16 = arith.constant 0 : index
    %c0_17 = arith.constant 0 : index
    %26 = vector.load %arg2[%c0_14, %c0_15, %c0_16, %c0_17] : memref<16x8x8x128xbf16, #tpu.memory_space<vmem>>, vector<16x8x8x128xbf16>
    %27 = vector.shape_cast %26 : vector<16x8x8x128xbf16> to vector<128x8x128xbf16>
    %28 = arith.extf %27 : vector<128x8x128xbf16> to vector<128x8x128xf32>
    %29 = arith.addf %16, %28 : vector<128x8x128xf32>
    %cst_18 = arith.constant dense<0xFF800000> : vector<128x8xf32>
    %30 = vector.multi_reduction <maximumf>, %29, %cst_18 [2] : vector<128x8x128xf32> to vector<128x8xf32>
    %31 = vector.shape_cast %30 : vector<128x8xf32> to vector<128x8x1xf32>
    %32 = vector.broadcast %31 : vector<128x8x1xf32> to vector<128x8x128xf32>
    %33 = arith.cmpf oge, %29, %32 : vector<128x8x128xf32>
    %cst_19 = arith.constant 1.000000e+00 : f32
    %cst_20 = arith.constant 0.000000e+00 : f32
    %34 = vector.broadcast %cst_19 : f32 to vector<128x8x128xf32>
    %35 = vector.broadcast %cst_20 : f32 to vector<128x8x128xf32>
    %36 = arith.select %33, %34, %35 : vector<128x8x128xi1>, vector<128x8x128xf32>
    %37 = arith.truncf %25 : vector<128x8x128xf32> to vector<128x8x128xbf16>
    %38 = vector.shape_cast %37 : vector<128x8x128xbf16> to vector<16x8x8x128xbf16>
    %c0_21 = arith.constant 0 : index
    %c0_22 = arith.constant 0 : index
    %c0_23 = arith.constant 0 : index
    %c0_24 = arith.constant 0 : index
    %39 = vector.load %arg8[%c0_21, %c0_22, %c0_23, %c0_24] : memref<16x8x8x128xbf16, #tpu.memory_space<vmem>>, vector<16x8x8x128xbf16>
    tpu.vector_store %arg8[%c0_21, %c0_22, %c0_23, %c0_24], %38 {strides = array<i32>} : memref<16x8x8x128xbf16, #tpu.memory_space<vmem>>, vector<16x8x8x128xbf16>,
    %40 = arith.truncf %36 : vector<128x8x128xf32> to vector<128x8x128xbf16>
    %41 = vector.shape_cast %40 : vector<128x8x128xbf16> to vector<16x8x8x128xbf16>
    %c0_25 = arith.constant 0 : index
    %c0_26 = arith.constant 0 : index
    %c0_27 = arith.constant 0 : index
    %c0_28 = arith.constant 0 : index
    %42 = vector.load %arg7[%c0_25, %c0_26, %c0_27, %c0_28] : memref<16x8x8x128xbf16, #tpu.memory_space<vmem>>, vector<16x8x8x128xbf16>
    tpu.vector_store %arg7[%c0_25, %c0_26, %c0_27, %c0_28], %41 {strides = array<i32>} : memref<16x8x8x128xbf16, #tpu.memory_space<vmem>>, vector<16x8x8x128xbf16>,
    return
  }
  func.func @transform_0(%arg0: i32) -> (i32, i32, i32) {
    %c0_i32 = arith.constant 0 : i32
    %c0_i32_0 = arith.constant 0 : i32
    %c0_i32_1 = arith.constant 0 : i32
    return %arg0, %c0_i32, %c0_i32_0 : i32, i32, i32
  }
  func.func @transform_1(%arg0: i32) -> (i32, i32, i32, i32) {
    %c0_i32 = arith.constant 0 : i32
    %c0_i32_0 = arith.constant 0 : i32
    %c0_i32_1 = arith.constant 0 : i32
    %c0_i32_2 = arith.constant 0 : i32
    return %arg0, %c0_i32, %c0_i32_0, %c0_i32_1 : i32, i32, i32, i32
  }
  func.func @transform_2(%arg0: i32) -> (i32, i32) {
    %c0_i32 = arith.constant 0 : i32
    %c0_i32_0 = arith.constant 0 : i32
    %c0_i32_1 = arith.constant 0 : i32
    return %c0_i32, %c0_i32_0 : i32, i32
  }
  func.func @transform_3(%arg0: i32) -> (i32, i32) {
    %c0_i32 = arith.constant 0 : i32
    %c0_i32_0 = arith.constant 0 : i32
    %c0_i32_1 = arith.constant 0 : i32
    return %c0_i32, %c0_i32_0 : i32, i32
  }
  func.func @transform_4(%arg0: i32) -> (i32, i32) {
    %c0_i32 = arith.constant 0 : i32
    %c0_i32_0 = arith.constant 0 : i32
    %c0_i32_1 = arith.constant 0 : i32
    return %c0_i32, %c0_i32_0 : i32, i32
  }
  func.func @transform_5(%arg0: i32) -> (i32, i32) {
    %c0_i32 = arith.constant 0 : i32
    %c0_i32_0 = arith.constant 0 : i32
    %c0_i32_1 = arith.constant 0 : i32
    return %c0_i32, %c0_i32_0 : i32, i32
  }
  func.func @transform_6(%arg0: i32) -> (i32, i32, i32, i32) {
    %c0_i32 = arith.constant 0 : i32
    %c0_i32_0 = arith.constant 0 : i32
    %c0_i32_1 = arith.constant 0 : i32
    %c0_i32_2 = arith.constant 0 : i32
    return %arg0, %c0_i32, %c0_i32_0, %c0_i32_1 : i32, i32, i32, i32
  }
  func.func @transform_7(%arg0: i32) -> (i32, i32, i32, i32) {
    %c0_i32 = arith.constant 0 : i32
    %c0_i32_0 = arith.constant 0 : i32
    %c0_i32_1 = arith.constant 0 : i32
    %c0_i32_2 = arith.constant 0 : i32
    return %arg0, %c0_i32, %c0_i32_0, %c0_i32_1 : i32, i32, i32, i32
  }
}

</mosaic_0001>

<llo_original>
// kernel: tpu_custom_call.1
$region0: #{tpu_custom_call.1}
  #allocation0 [shape = 'u32[]', space=smem, size = 0x4, offset = 0x4, fixed_abs, tag = 'smem constant byte address 0x4 - core index']
  #allocation1 [shape = 'u32[144,128]{1,0:T(1,128)}', space=vmem, size = 0x12000, scoped, tag = 'internal scratch']
  %s0 = inlined_call_operand.hbm [shape: f32[32,8,64], index: 0, kind: input, shape index: {}]
  %s1 = inlined_call_operand.hbm [shape: bf16[32,8,8,128], index: 1, kind: input, shape index: {}]
  %s2 = inlined_call_operand.hbm [shape: bf16[64,64], index: 2, kind: input, shape index: {}]
  %s3 = inlined_call_operand.vmem [shape: f32[1,64], index: 3, kind: input, shape index: {}]
  %s4 = inlined_call_operand.hbm [shape: bf16[64,1024], index: 4, kind: input, shape index: {}]
  %s5 = inlined_call_operand.vmem [shape: f32[1,1024], index: 5, kind: input, shape index: {}]
  %s6 = inlined_call_operand.hbm [shape: bf16[32,8,8,128], index: 6, kind: output, shape index: {0}]
  %s7 = inlined_call_operand.hbm [shape: bf16[32,8,8,128], index: 7, kind: output, shape index: {1}]
  %8 = xla_tuple %s6, %s7
  %s9 = sld [smem:[#allocation0]]
  $region81: #{tpu_custom_call.1} parent=0
    _
  %s11 = ssub.s32 1, %s9
  %s12 = scalar_select 0, %s11, %s9
  $region1: #{tpu_custom_call.1} parent=0
    #allocation2 [shape = 'u8[131072]{0}', space=vmem, size = 0x20000, scoped, tag = 'input window, operand 0']
    #allocation3 [shape = 's32[2]{0}', space=sflag, size = 0x8, scoped, tag = 'scoped memory for tpu_custom_call.1']
    #allocation4 [shape = 's32[2]{0}', space=sflag, size = 0x8, scoped, tag = 'scoped memory for tpu_custom_call.1']
    #allocation5 [shape = 'u8[524288]{0}', space=vmem, size = 0x80000, scoped, tag = 'input window, operand 1']
    #allocation6 [shape = 's32[2]{0}', space=sflag, size = 0x8, scoped, tag = 'scoped memory for tpu_custom_call.1']
    #allocation7 [shape = 'u8[16384]{0}', space=vmem, size = 0x4000, scoped, tag = 'input window, operand 2, single buffered']
    #allocation8 [shape = 'u8[131072]{0}', space=vmem, size = 0x20000, scoped, tag = 'input window, operand 4, single buffered']
    #allocation9 [shape = 's32[1]{0}', space=sflag, size = 0x4, scoped, tag = 'scoped memory for tpu_custom_call.1']
    #allocation10 [shape = 'u8[524288]{0}', space=vmem, size = 0x80000, scoped, tag = 'output window, operand 0']
    #allocation11 [shape = 'u8[524288]{0}', space=vmem, size = 0x80000, scoped, tag = 'output window, operand 1']
    #allocation12 [shape = 's32[2]{0}', space=sflag, size = 0x8, scoped, tag = 'scoped memory for tpu_custom_call.1']
    %13 = vsyncpa [#allocation3], 0
    %s14 = scalar_lea.sflag [#allocation3], 1
    %15 = vsyncpa %s14, 0
    %16 = vsyncpa [#allocation6], 0
    %s17 = scalar_lea.sflag [#allocation6], 1
    %18 = vsyncpa %s17, 0
    %19 = vsyncpa [#allocation9], 0
    %20 = vsyncpa [#allocation4], 0
    %s21 = scalar_lea.sflag [#allocation4], 1
    %22 = vsyncpa %s21, 0
    %23 = vsyncpa [#allocation12], 0
    %s24 = scalar_lea.sflag [#allocation12], 1
    %25 = vsyncpa %s24, 0
    loop: start=0, step=1, limit=4
    $region2: #{tpu_custom_call.1} parent=1 // loop_pre_header
      _
    $region3: #{tpu_custom_call.1} parent=1 // loop_header
      %s27 = sphi 0, %s31
      %p28 = scmp.ge.s32.totalorder %s27, 4
      %s37 = sphi 0, %s39
      %s40 = sphi 0, %s37
      %s41 = sphi 0, %s40
      %s57 = sphi 0, %s41
      %s63 = sphi 0, %s65
      %s66 = sphi 0, %s63
      %s67 = sphi 0, %s66
      %s83 = sphi 0, %s67
      %s87 = sphi 0, %s87
      %s89 = sphi 0, %s87
      %s90 = sphi 0, %s89
      %s104 = sphi 0, %s90
      %s108 = sphi 0, %s108
      %s110 = sphi 0, %s108
      %s111 = sphi 0, %s110
      %s125 = sphi 0, %s111
      %s129 = sphi 0, %s129
      %s131 = sphi 0, %s129
      %s132 = sphi 0, %s131
      %s146 = sphi 0, %s132
      %s150 = sphi 0, %s150
      %s152 = sphi 0, %s150
      %s153 = sphi 0, %s152
      %s167 = sphi 0, %s153
      %s173 = sphi 0, %s175
      %s176 = sphi 0, %s173
      %s177 = sphi 0, %s176
      %s193 = sphi 0, %s177
      %s199 = sphi 0, %s201
      %s202 = sphi 0, %s199
      %s203 = sphi 0, %s202
      %s219 = sphi 0, %s203
    $region4: #{tpu_custom_call.1} parent=1 // loop_header_branch
      %30 = sbr.rel (%p28) target = $region8
    $region5: #{tpu_custom_call.1} parent=1 // loop_body
      %s32 = ssub.s32 %s27, 1
      %s33 = ssub.s32 %s27, 2
      %s34 = sadd.s32 %s27, 1
      %s35 = ssub.s32 %s27, %s34
      %p36 = scmp.eq.s32.totalorder %s35, 0
      %s38 = sadd.s32 %s37, 1
      %s39 = scalar_select %p36, %s37, %s38
      %p42 = pneg %p36
      %p43 = scmp.eq.s32.totalorder %s27, 1
      %p44 = por %p42, %p43
      %p45 = scmp.ne.s32.totalorder %s37, %s40
      %p46 = scmp.eq.s32.totalorder %s27, 0
      %p47 = por %p45, %p46
      %p48 = scmp.ne.s32.totalorder %s37, %s40
      %p49 = scmp.eq.s32.totalorder %s32, 1
      %p50 = por %p48, %p49
      %p51 = scmp.ne.s32.totalorder %s40, %s41
      %p52 = scmp.eq.s32.totalorder %s32, 0
      %p53 = por %p51, %p52
      %p54 = scmp.ne.s32.totalorder %s40, %s41
      %p55 = scmp.eq.s32.totalorder %s33, 1
      %p56 = por %p54, %p55
      %p58 = scmp.ne.s32.totalorder %s41, %s57
      %p59 = scmp.eq.s32.totalorder %s33, 0
      %p60 = por %p58, %p59
      %s61 = ssub.s32 %s27, %s34
      %p62 = scmp.eq.s32.totalorder %s61, 0
      %s64 = sadd.s32 %s63, 1
      %s65 = scalar_select %p62, %s63, %s64
      %p68 = pneg %p62
      %p69 = scmp.eq.s32.totalorder %s27, 1
      %p70 = por %p68, %p69
      %p71 = scmp.ne.s32.totalorder %s63, %s66
      %p72 = scmp.eq.s32.totalorder %s27, 0
      %p73 = por %p71, %p72
      %p74 = scmp.ne.s32.totalorder %s63, %s66
      %p75 = scmp.eq.s32.totalorder %s32, 1
      %p76 = por %p74, %p75
      %p77 = scmp.ne.s32.totalorder %s66, %s67
      %p78 = scmp.eq.s32.totalorder %s32, 0
      %p79 = por %p77, %p78
      %p80 = scmp.ne.s32.totalorder %s66, %s67
      %p81 = scmp.eq.s32.totalorder %s33, 1
      %p82 = por %p80, %p81
      %p84 = scmp.ne.s32.totalorder %s67, %s83
      %p85 = scmp.eq.s32.totalorder %s33, 0
      %p86 = por %p84, %p85
      %s88 = sadd.s32 %s87, 1
      %p91 = scmp.eq.s32.totalorder %s27, 1
      %p92 = scmp.ne.s32.totalorder %s87, %s89
      %p93 = scmp.eq.s32.totalorder %s27, 0
      %p94 = por %p92, %p93
      %p95 = scmp.ne.s32.totalorder %s87, %s89
      %p96 = scmp.eq.s32.totalorder %s32, 1
      %p97 = por %p95, %p96
      %p98 = scmp.ne.s32.totalorder %s89, %s90
      %p99 = scmp.eq.s32.totalorder %s32, 0
      %p100 = por %p98, %p99
      %p101 = scmp.ne.s32.totalorder %s89, %s90
      %p102 = scmp.eq.s32.totalorder %s33, 1
      %p103 = por %p101, %p102
      %p105 = scmp.ne.s32.totalorder %s90, %s104
      %p106 = scmp.eq.s32.totalorder %s33, 0
      %p107 = por %p105, %p106
      %s109 = sadd.s32 %s108, 1
      %p112 = scmp.eq.s32.totalorder %s27, 1
      %p113 = scmp.ne.s32.totalorder %s108, %s110
      %p114 = scmp.eq.s32.totalorder %s27, 0
      %p115 = por %p113, %p114
      %p116 = scmp.ne.s32.totalorder %s108, %s110
      %p117 = scmp.eq.s32.totalorder %s32, 1
      %p118 = por %p116, %p117
      %p119 = scmp.ne.s32.totalorder %s110, %s111
      %p120 = scmp.eq.s32.totalorder %s32, 0
      %p121 = por %p119, %p120
      %p122 = scmp.ne.s32.totalorder %s110, %s111
      %p123 = scmp.eq.s32.totalorder %s33, 1
      %p124 = por %p122, %p123
      %p126 = scmp.ne.s32.totalorder %s111, %s125
      %p127 = scmp.eq.s32.totalorder %s33, 0
      %p128 = por %p126, %p127
      %s130 = sadd.s32 %s129, 1
      %p133 = scmp.eq.s32.totalorder %s27, 1
      %p134 = scmp.ne.s32.totalorder %s129, %s131
      %p135 = scmp.eq.s32.totalorder %s27, 0
      %p136 = por %p134, %p135
      %p137 = scmp.ne.s32.totalorder %s129, %s131
      %p138 = scmp.eq.s32.totalorder %s32, 1
      %p139 = por %p137, %p138
      %p140 = scmp.ne.s32.totalorder %s131, %s132
      %p141 = scmp.eq.s32.totalorder %s32, 0
      %p142 = por %p140, %p141
      %p143 = scmp.ne.s32.totalorder %s131, %s132
      %p144 = scmp.eq.s32.totalorder %s33, 1
      %p145 = por %p143, %p144
      %p147 = scmp.ne.s32.totalorder %s132, %s146
      %p148 = scmp.eq.s32.totalorder %s33, 0
      %p149 = por %p147, %p148
      %s151 = sadd.s32 %s150, 1
      %p154 = scmp.eq.s32.totalorder %s27, 1
      %p155 = scmp.ne.s32.totalorder %s150, %s152
      %p156 = scmp.eq.s32.totalorder %s27, 0
      %p157 = por %p155, %p156
      %p158 = scmp.ne.s32.totalorder %s150, %s152
      %p159 = scmp.eq.s32.totalorder %s32, 1
      %p160 = por %p158, %p159
      %p161 = scmp.ne.s32.totalorder %s152, %s153
      %p162 = scmp.eq.s32.totalorder %s32, 0
      %p163 = por %p161, %p162
      %p164 = scmp.ne.s32.totalorder %s152, %s153
      %p165 = scmp.eq.s32.totalorder %s33, 1
      %p166 = por %p164, %p165
      %p168 = scmp.ne.s32.totalorder %s153, %s167
      %p169 = scmp.eq.s32.totalorder %s33, 0
      %p170 = por %p168, %p169
      %s171 = ssub.s32 %s27, %s34
      %p172 = scmp.eq.s32.totalorder %s171, 0
      %s174 = sadd.s32 %s173, 1
      %s175 = scalar_select %p172, %s173, %s174
      %p178 = pneg %p172
      %p179 = scmp.eq.s32.totalorder %s27, 1
      %p180 = por %p178, %p179
      %p181 = scmp.ne.s32.totalorder %s173, %s176
      %p182 = scmp.eq.s32.totalorder %s27, 0
      %p183 = por %p181, %p182
      %p184 = scmp.ne.s32.totalorder %s173, %s176
      %p185 = scmp.eq.s32.totalorder %s32, 1
      %p186 = por %p184, %p185
      %p187 = scmp.ne.s32.totalorder %s176, %s177
      %p188 = scmp.eq.s32.totalorder %s32, 0
      %p189 = por %p187, %p188
      %p190 = scmp.ne.s32.totalorder %s176, %s177
      %p191 = scmp.eq.s32.totalorder %s33, 1
      %p192 = por %p190, %p191
      %p194 = scmp.ne.s32.totalorder %s177, %s193
      %p195 = scmp.eq.s32.totalorder %s33, 0
      %p196 = por %p194, %p195
      %s197 = ssub.s32 %s27, %s34
      %p198 = scmp.eq.s32.totalorder %s197, 0
      %s200 = sadd.s32 %s199, 1
      %s201 = scalar_select %p198, %s199, %s200
      %p204 = pneg %p198
      %p205 = scmp.eq.s32.totalorder %s27, 1
      %p206 = por %p204, %p205
      %p207 = scmp.ne.s32.totalorder %s199, %s202
      %p208 = scmp.eq.s32.totalorder %s27, 0
      %p209 = por %p207, %p208
      %p210 = scmp.ne.s32.totalorder %s199, %s202
      %p211 = scmp.eq.s32.totalorder %s32, 1
      %p212 = por %p210, %p211
      %p213 = scmp.ne.s32.totalorder %s202, %s203
      %p214 = scmp.eq.s32.totalorder %s32, 0
      %p215 = por %p213, %p214
      %p216 = scmp.ne.s32.totalorder %s202, %s203
      %p217 = scmp.eq.s32.totalorder %s33, 1
      %p218 = por %p216, %p217
      %p220 = scmp.ne.s32.totalorder %s203, %s219
      %p221 = scmp.eq.s32.totalorder %s33, 0
      %p222 = por %p220, %p221
      %p223 = scmp.le.s32.totalorder 1, %s27
      %p224 = scmp.lt.s32.totalorder %s27, 3
      %p225 = pnand %p223, %p224
      %p226 = pneg %p225
      // Predicated region
      $region9: #{tpu_custom_call.1} parent=5 // pred_check
        _
      $region10: #{tpu_custom_call.1} parent=5 // pred_check_branch
        %228 = sbr.rel (%p225) target = $region12
      $region11: #{tpu_custom_call.1} parent=5 // pred_region
        %s229 = ssub.s32 %s27, 1
        // Predicated region
        $region13: #{tpu_custom_call.1} parent=11 // pred_check
          %p230 = pneg %p100
        $region14: #{tpu_custom_call.1} parent=11 // pred_check_branch
          %232 = sbr.rel (%p230) target = $region16
        $region15: #{tpu_custom_call.1} parent=11 // pred_region
          %s234 = ssub.s32 512, 512
          %235 = vsyncadd [#allocation6], %s234
          %s236 = sshll.u32 [#allocation7], 4
          %s237 = int_to_ptr.vmem [resolvable:$true] %s236
          %242 = dma.hbm_to_vmem [thread:$0]  %s2, 512, %s237, [#allocation6], 64, 64, 4
        $region16: #{tpu_custom_call.1} parent=11 // pred_fallthru
          _
        // Predicated region
        $region17: #{tpu_custom_call.1} parent=11 // pred_check
          %p243 = pneg %p121
        $region18: #{tpu_custom_call.1} parent=11 // pred_check_branch
          %245 = sbr.rel (%p243) target = $region20
        $region19: #{tpu_custom_call.1} parent=11 // pred_region
          _
        $region20: #{tpu_custom_call.1} parent=11 // pred_fallthru
          _
        // Predicated region
        $region21: #{tpu_custom_call.1} parent=11 // pred_check
          %p246 = pneg %p142
        $region22: #{tpu_custom_call.1} parent=11 // pred_check_branch
          %248 = sbr.rel (%p246) target = $region24
        $region23: #{tpu_custom_call.1} parent=11 // pred_region
          %s250 = ssub.s32 4096, 4096
          %251 = vsyncadd [#allocation9], %s250
          %s252 = sshll.u32 [#allocation8], 4
          %s253 = int_to_ptr.vmem [resolvable:$true] %s252
          %258 = dma.hbm_to_vmem [thread:$0]  %s4, 4096, %s253, [#allocation9], 512, 512, 32
        $region24: #{tpu_custom_call.1} parent=11 // pred_fallthru
          _
        // Predicated region
        $region25: #{tpu_custom_call.1} parent=11 // pred_check
          %p259 = pneg %p163
        $region26: #{tpu_custom_call.1} parent=11 // pred_check_branch
          %261 = sbr.rel (%p259) target = $region28
        $region27: #{tpu_custom_call.1} parent=11 // pred_region
          _
        $region28: #{tpu_custom_call.1} parent=11 // pred_fallthru
          _
      $region12: #{tpu_custom_call.1} parent=5 // pred_fallthru
        _
      %p262 = scmp.lt.s32.totalorder %s27, 2
      // Predicated region
      $region29: #{tpu_custom_call.1} parent=5 // pred_check
        %p263 = pneg %p262
      $region30: #{tpu_custom_call.1} parent=5 // pred_check_branch
        %265 = sbr.rel (%p263) target = $region32
      $region31: #{tpu_custom_call.1} parent=5 // pred_region
        // Predicated region
        $region33: #{tpu_custom_call.1} parent=31 // pred_check
          %p266 = pneg %p47
        $region34: #{tpu_custom_call.1} parent=31 // pred_check_branch
          %268 = sbr.rel (%p266) target = $region36
        $region35: #{tpu_custom_call.1} parent=31 // pred_region
          %s269 = sand.u32 %s37, 1
          %s270 = scalar_lea.sflag [#allocation3], %s269
          %s271 = sand.u32 %s37, 1
          %s272 = smul.addr %s271, 128
          %s273 = scalar_lea.vmem [#allocation2], %s272
          %s274 = smul.u32 16, %s27
          %s276 = ssub.s32 2048, 2048
          %277 = vsyncadd %s270, %s276
          %s278 = smul.addr %s274, 128
          %s279 = scalar_lea.hbm %s0, %s278
          %s280 = sshll.u32 %s273, 4
          %s281 = int_to_ptr.vmem [resolvable:$true] %s280
          %286 = dma.hbm_to_vmem [thread:$0]  %s279, 2048, %s281, %s270, 128, 128, 8
        $region36: #{tpu_custom_call.1} parent=31 // pred_fallthru
          _
        // Predicated region
        $region37: #{tpu_custom_call.1} parent=31 // pred_check
          %p287 = pneg %p73
        $region38: #{tpu_custom_call.1} parent=31 // pred_check_branch
          %289 = sbr.rel (%p287) target = $region40
        $region39: #{tpu_custom_call.1} parent=31 // pred_region
          %s290 = sand.u32 %s27, 1
          %s291 = scalar_lea.sflag [#allocation6], %s290
          %s292 = sand.u32 %s63, 1
          %s293 = smul.addr %s292, 512
          %s294 = scalar_lea.vmem [#allocation5], %s293
          %s295 = smul.u32 16, %s27
          %s297 = ssub.s32 8192, 8192
          %298 = vsyncadd %s291, %s297
          %s299 = smul.addr %s295, 8
          %s300 = smul.addr %s299, 64
          %s301 = scalar_lea.hbm %s1, %s300
          %s302 = sshll.u32 %s294, 4
          %s303 = int_to_ptr.vmem [resolvable:$true] %s302
          %308 = dma.hbm_to_vmem [thread:$0]  %s301, 8192, %s303, %s291, 64, 64, 4
        $region40: #{tpu_custom_call.1} parent=31 // pred_fallthru
          _
      $region32: #{tpu_custom_call.1} parent=5 // pred_fallthru
        _
      %p309 = scmp.le.s32.totalorder 1, %s27
      %p310 = scmp.lt.s32.totalorder %s27, 3
      %p311 = pnand %p309, %p310
      %p312 = pneg %p311
      // Predicated region
      $region41: #{tpu_custom_call.1} parent=5 // pred_check
        _
      $region42: #{tpu_custom_call.1} parent=5 // pred_check_branch
        %314 = sbr.rel (%p311) target = $region44
      $region43: #{tpu_custom_call.1} parent=5 // pred_region
        %s315 = ssub.s32 %s27, 1
        %s316 = sand.u32 %s40, 1
        %s317 = scalar_lea.sflag [#allocation3], %s316
        %s318 = sand.u32 %s40, 1
        %s319 = smul.addr %s318, 128
        %s320 = scalar_lea.vmem [#allocation2], %s319
        // Predicated region
        $region45: #{tpu_custom_call.1} parent=43 // pred_check
          %p321 = pneg %p53
        $region46: #{tpu_custom_call.1} parent=43 // pred_check_branch
          %323 = sbr.rel (%p321) target = $region48
        $region47: #{tpu_custom_call.1} parent=43 // pred_region
          %324 = dma.done %s317, 2048
        $region48: #{tpu_custom_call.1} parent=43 // pred_fallthru
          _
        %s325 = sand.u32 %s32, 1
        %s326 = scalar_lea.sflag [#allocation6], %s325
        %s327 = sand.u32 %s66, 1
        %s328 = smul.addr %s327, 512
        %s329 = scalar_lea.vmem [#allocation5], %s328
        // Predicated region
        $region49: #{tpu_custom_call.1} parent=43 // pred_check
          %p330 = pneg %p79
        $region50: #{tpu_custom_call.1} parent=43 // pred_check_branch
          %332 = sbr.rel (%p330) target = $region52
        $region51: #{tpu_custom_call.1} parent=43 // pred_region
          %333 = dma.done %s326, 8192
        $region52: #{tpu_custom_call.1} parent=43 // pred_fallthru
          _
        // Predicated region
        $region53: #{tpu_custom_call.1} parent=43 // pred_check
          %p334 = pneg %p100
        $region54: #{tpu_custom_call.1} parent=43 // pred_check_branch
          %336 = sbr.rel (%p334) target = $region56
        $region55: #{tpu_custom_call.1} parent=43 // pred_region
          %337 = dma.done [#allocation6], 512
        $region56: #{tpu_custom_call.1} parent=43 // pred_fallthru
          _
        // Predicated region
        $region57: #{tpu_custom_call.1} parent=43 // pred_check
          %p338 = pneg %p142
        $region58: #{tpu_custom_call.1} parent=43 // pred_check_branch
          %340 = sbr.rel (%p338) target = $region60
        $region59: #{tpu_custom_call.1} parent=43 // pred_region
          %341 = dma.done [#allocation9], 4096
        $region60: #{tpu_custom_call.1} parent=43 // pred_fallthru
          _
        %s342 = sand.u32 %s40, 1
        %s343 = scalar_lea.sflag [#allocation3], %s342
        %s344 = sand.u32 %s40, 1
        %s345 = smul.addr %s344, 128
        %s346 = scalar_lea.vmem [#allocation2], %s345
        %p347 = pneg %p53
        %p348 = pneg %p50
        %s349 = sand.u32 %s32, 1
        %s350 = scalar_lea.sflag [#allocation6], %s349
        %s351 = sand.u32 %s66, 1
        %s352 = smul.addr %s351, 512
        %s353 = scalar_lea.vmem [#allocation5], %s352
        %p354 = pneg %p79
        %p355 = pneg %p76
        %p356 = pneg %p100
        %p357 = pneg %p97
        %p358 = pneg %p121
        %p359 = pneg %p118
        %p360 = pneg %p142
        %p361 = pneg %p139
        %p362 = pneg %p163
        %p363 = pneg %p160
        %p364 = pneg %p189
        %p365 = pneg %p186
        %s366 = sand.u32 %s176, 1
        %s367 = scalar_lea.sflag [#allocation4], %s366
        %s368 = sand.u32 %s176, 1
        %s369 = smul.addr %s368, 512
        %s370 = scalar_lea.vmem [#allocation10], %s369
        %p371 = pneg %p215
        %p372 = pneg %p212
        %s373 = sand.u32 %s202, 1
        %s374 = scalar_lea.sflag [#allocation12], %s373
        %s375 = sand.u32 %s202, 1
        %s376 = smul.addr %s375, 512
        %s377 = scalar_lea.vmem [#allocation11], %s376
        %s378 = smul.u32 16, %s32
        %s379 = smul.u32 16, %s32
        %s380 = smul.u32 16, %s32
        %s381 = smul.u32 16, %s32
        %v383 = vld [vmem:[%s320] sm:$0xff]
        %v384 = vld [vmem:[%s320 + $0x8] sm:$0xff]
        %v385 = vld [vmem:[%s320 + $0x10] sm:$0xff]
        %v386 = vld [vmem:[%s320 + $0x18] sm:$0xff]
        %v387 = vld [vmem:[%s320 + $0x20] sm:$0xff]
        %v388 = vld [vmem:[%s320 + $0x28] sm:$0xff]
        %v389 = vld [vmem:[%s320 + $0x30] sm:$0xff]
        %v390 = vld [vmem:[%s320 + $0x38] sm:$0xff]
        %v391 = vld [vmem:[%s320 + $0x40] sm:$0xff]
        %v392 = vld [vmem:[%s320 + $0x48] sm:$0xff]
        %v393 = vld [vmem:[%s320 + $0x50] sm:$0xff]
        %v394 = vld [vmem:[%s320 + $0x58] sm:$0xff]
        %v395 = vld [vmem:[%s320 + $0x60] sm:$0xff]
        %v396 = vld [vmem:[%s320 + $0x68] sm:$0xff]
        %v397 = vld [vmem:[%s320 + $0x70] sm:$0xff]
        %v398 = vld [vmem:[%s320 + $0x78] sm:$0xff]
        %v399 = vpack.c.bf16 %v384, %v383
        %v400 = vpack.c.bf16 %v386, %v385
        %v401 = vpack.c.bf16 %v388, %v387
        %v402 = vpack.c.bf16 %v390, %v389
        %v403 = vpack.c.bf16 %v392, %v391
        %v404 = vpack.c.bf16 %v394, %v393
        %v405 = vpack.c.bf16 %v396, %v395
        %v406 = vpack.c.bf16 %v398, %v397
        %v407 = vld [vmem:[#allocation7] sm:$0xf]
        %v408 = vld [vmem:[#allocation7 + $0x4] sm:$0xf]
        %v409 = vld [vmem:[#allocation7 + $0x8] sm:$0xf]
        %v410 = vld [vmem:[#allocation7 + $0xc] sm:$0xf]
        %v411 = vld [vmem:[#allocation7 + $0x10] sm:$0xf]
        %v412 = vld [vmem:[#allocation7 + $0x14] sm:$0xf]
        %v413 = vld [vmem:[#allocation7 + $0x18] sm:$0xf]
        %v414 = vld [vmem:[#allocation7 + $0x1c] sm:$0xf]
        %v415 = vld [vmem:[%s3] sm:$0x1]
        %v417 = vlaneseq
        %v418 = vshrl.u32 %v417, 7
        %v419 = vsub.s32 0, %v418
        %v420 = vrot.slane %v415, %v419
        %v430 = vunpack.c.l.b16 %v407
        %v431 = vunpack.c.l.b16 %v408
        %v432 = vunpack.c.l.b16 %v409
        %v433 = vunpack.c.l.b16 %v410
        %v434 = vunpack.c.l.b16 %v411
        %v435 = vunpack.c.l.b16 %v412
        %v436 = vunpack.c.l.b16 %v413
        %v437 = vunpack.c.l.b16 %v414
        %v438 = vpack.c.b16 %v431, %v430
        %v439 = vpack.c.b16 %v433, %v432
        %v440 = vpack.c.b16 %v435, %v434
        %v441 = vpack.c.b16 %v437, %v436
        %vm446 = vcmask 523264
        %v448 = vsel %vm446, %v399, 0
        %v451 = vsel %vm446, %v400, 0
        %v454 = vsel %vm446, %v401, 0
        %v457 = vsel %vm446, %v402, 0
        %v460 = vsel %vm446, %v403, 0
        %v463 = vsel %vm446, %v404, 0
        %v466 = vsel %vm446, %v405, 0
        %v469 = vsel %vm446, %v406, 0
        %471 = vmatprep.subr.bf16.mxu0 0
        %472 = vmatpush1.bf16.msra.mxu0 %v438
        %473 = vmatprep.subr.bf16.mxu0 0
        %474 = vmatpush1.bf16.msra.mxu0 %v439
        %475 = vmatprep.subr.bf16.mxu0 0
        %476 = vmatpush1.bf16.msra.mxu0 %v440
        %477 = vmatprep.subr.bf16.mxu0 0
        %478 = vmatpush1.bf16.msra.mxu0 %v441
        %479 = vmatprep.subr.bf16.mxu0 0
        %480 = vmatpush1.bf16.msra.mxu0 0
        %481 = vmatprep.subr.bf16.mxu0 0
        %482 = vmatpush1.bf16.msra.mxu0 0
        %483 = vmatprep.subr.bf16.mxu0 0
        %484 = vmatpush1.bf16.msra.mxu0 0
        %485 = vmatprep.subr.bf16.mxu0 0
        %486 = vmatpush1.bf16.msra.mxu0 0
        %487 = vmatprep.subr.bf16.mxu0 0
        %488 = vmatpush1.bf16.msra.mxu0 0
        %489 = vmatprep.subr.bf16.mxu0 0
        %490 = vmatpush1.bf16.msra.mxu0 0
        %491 = vmatprep.subr.bf16.mxu0 0
        %492 = vmatpush1.bf16.msra.mxu0 0
        %493 = vmatprep.subr.bf16.mxu0 0
        %494 = vmatpush1.bf16.msra.mxu0 0
        %495 = vmatprep.subr.bf16.mxu0 0
        %496 = vmatpush1.bf16.msra.mxu0 0
        %497 = vmatprep.subr.bf16.mxu0 0
        %498 = vmatpush1.bf16.msra.mxu0 0
        %499 = vmatprep.subr.bf16.mxu0 0
        %500 = vmatpush1.bf16.msra.mxu0 0
        %501 = vmatprep.subr.bf16.mxu0 0
        %502 = vmatpush1.bf16.msra.mxu0 0
        %503 = vmatprep.mubr.bf16.mxu0 0
        %504 = vmatmul.mubr.bf16.gmra.mrb[0].mxu0 %v448
        %v505 = vpop.f32.mrb[0].mxu0
        %v506 = vadd.f32 %v420, %v505
        %v507 = vpop.f32.mrb[0].mxu0
        %v508 = vpop.f32.mrb[0].mxu0
        %v509 = vadd.f32 %v420, %v508
        %v510 = vpop.f32.mrb[0].mxu0
        %511 = vmatprep.mubr.bf16.mxu0 0
        %512 = vmatmul.mubr.bf16.gmra.mrb[0].mxu0 %v451
        %v513 = vpop.f32.mrb[0].mxu0
        %v514 = vadd.f32 %v420, %v513
        %v515 = vpop.f32.mrb[0].mxu0
        %v516 = vpop.f32.mrb[0].mxu0
        %v517 = vadd.f32 %v420, %v516
        %v518 = vpop.f32.mrb[0].mxu0
        %519 = vmatprep.mubr.bf16.mxu0 0
        %520 = vmatmul.mubr.bf16.gmra.mrb[0].mxu0 %v454
        %v521 = vpop.f32.mrb[0].mxu0
        %v522 = vadd.f32 %v420, %v521
        %v523 = vpop.f32.mrb[0].mxu0
        %v524 = vpop.f32.mrb[0].mxu0
        %v525 = vadd.f32 %v420, %v524
        %v526 = vpop.f32.mrb[0].mxu0
        %527 = vmatprep.mubr.bf16.mxu0 0
        %528 = vmatmul.mubr.bf16.gmra.mrb[0].mxu0 %v457
        %v529 = vpop.f32.mrb[0].mxu0
        %v530 = vadd.f32 %v420, %v529
        %v531 = vpop.f32.mrb[0].mxu0
        %v532 = vpop.f32.mrb[0].mxu0
        %v533 = vadd.f32 %v420, %v532
        %v534 = vpop.f32.mrb[0].mxu0
        %535 = vmatprep.mubr.bf16.mxu0 0
        %536 = vmatmul.mubr.bf16.gmra.mrb[0].mxu0 %v460
        %v537 = vpop.f32.mrb[0].mxu0
        %v538 = vadd.f32 %v420, %v537
        %v539 = vpop.f32.mrb[0].mxu0
        %v540 = vpop.f32.mrb[0].mxu0
        %v541 = vadd.f32 %v420, %v540
        %v542 = vpop.f32.mrb[0].mxu0
        %543 = vmatprep.mubr.bf16.mxu0 0
        %544 = vmatmul.mubr.bf16.gmra.mrb[0].mxu0 %v463
        %v545 = vpop.f32.mrb[0].mxu0
        %v546 = vadd.f32 %v420, %v545
        %v547 = vpop.f32.mrb[0].mxu0
        %v548 = vpop.f32.mrb[0].mxu0
        %v549 = vadd.f32 %v420, %v548
        %v550 = vpop.f32.mrb[0].mxu0
        %551 = vmatprep.mubr.bf16.mxu0 0
        %552 = vmatmul.mubr.bf16.gmra.mrb[0].mxu0 %v466
        %v553 = vpop.f32.mrb[0].mxu0
        %v554 = vadd.f32 %v420, %v553
        %v555 = vpop.f32.mrb[0].mxu0
        %v556 = vpop.f32.mrb[0].mxu0
        %v557 = vadd.f32 %v420, %v556
        %v558 = vpop.f32.mrb[0].mxu0
        %559 = vmatprep.mubr.bf16.mxu0 0
        %560 = vmatmul.mubr.bf16.gmra.mrb[0].mxu0 %v469
        %v561 = vpop.f32.mrb[0].mxu0
        %v562 = vadd.f32 %v420, %v561
        %v563 = vpop.f32.mrb[0].mxu0
        %v564 = vpop.f32.mrb[0].mxu0
        %v565 = vadd.f32 %v420, %v564
        %v566 = vpop.f32.mrb[0].mxu0
        %567 = vdwg.mxu0
        %v568 = vmax.f32 %v506, 0.0
        %v569 = vmax.f32 %v509, 0.0
        %v570 = vmax.f32 %v514, 0.0
        %v571 = vmax.f32 %v517, 0.0
        %v572 = vmax.f32 %v522, 0.0
        %v573 = vmax.f32 %v525, 0.0
        %v574 = vmax.f32 %v530, 0.0
        %v575 = vmax.f32 %v533, 0.0
        %v576 = vmax.f32 %v538, 0.0
        %v577 = vmax.f32 %v541, 0.0
        %v578 = vmax.f32 %v546, 0.0
        %v579 = vmax.f32 %v549, 0.0
        %v580 = vmax.f32 %v554, 0.0
        %v581 = vmax.f32 %v557, 0.0
        %v582 = vmax.f32 %v562, 0.0
        %v583 = vmax.f32 %v565, 0.0
        %v584 = vpack.c.bf16 %v569, %v568
        %v585 = vpack.c.bf16 %v571, %v570
        %v586 = vpack.c.bf16 %v573, %v572
        %v587 = vpack.c.bf16 %v575, %v574
        %v588 = vpack.c.bf16 %v577, %v576
        %v589 = vpack.c.bf16 %v579, %v578
        %v590 = vpack.c.bf16 %v581, %v580
        %v591 = vpack.c.bf16 %v583, %v582
        %v592 = vld [vmem:[#allocation8] sm:$0xff]
        %v593 = vld [vmem:[#allocation8 + $0x8] sm:$0xff]
        %v594 = vld [vmem:[#allocation8 + $0x10] sm:$0xff]
        %v595 = vld [vmem:[#allocation8 + $0x18] sm:$0xff]
        %v596 = vld [vmem:[#allocation8 + $0x20] sm:$0xff]
        %v597 = vld [vmem:[#allocation8 + $0x28] sm:$0xff]
        %v598 = vld [vmem:[#allocation8 + $0x30] sm:$0xff]
        %v599 = vld [vmem:[#allocation8 + $0x38] sm:$0xff]
        %v600 = vld [vmem:[#allocation8 + $0x40] sm:$0xff]
        %v601 = vld [vmem:[#allocation8 + $0x48] sm:$0xff]
        %v602 = vld [vmem:[#allocation8 + $0x50] sm:$0xff]
        %v603 = vld [vmem:[#allocation8 + $0x58] sm:$0xff]
        %v604 = vld [vmem:[#allocation8 + $0x60] sm:$0xff]
        %v605 = vld [vmem:[#allocation8 + $0x68] sm:$0xff]
        %v606 = vld [vmem:[#allocation8 + $0x70] sm:$0xff]
        %v607 = vld [vmem:[#allocation8 + $0x78] sm:$0xff]
        %v608 = vld [vmem:[#allocation8 + $0x80] sm:$0xff]
        %v609 = vld [vmem:[#allocation8 + $0x88] sm:$0xff]
        %v610 = vld [vmem:[#allocation8 + $0x90] sm:$0xff]
        %v611 = vld [vmem:[#allocation8 + $0x98] sm:$0xff]
        %v612 = vld [vmem:[#allocation8 + $0xa0] sm:$0xff]
        %v613 = vld [vmem:[#allocation8 + $0xa8] sm:$0xff]
        %v614 = vld [vmem:[#allocation8 + $0xb0] sm:$0xff]
        %v615 = vld [vmem:[#allocation8 + $0xb8] sm:$0xff]
        %v616 = vld [vmem:[#allocation8 + $0xc0] sm:$0xff]
        %v617 = vld [vmem:[#allocation8 + $0xc8] sm:$0xff]
        %v618 = vld [vmem:[#allocation8 + $0xd0] sm:$0xff]
        %v619 = vld [vmem:[#allocation8 + $0xd8] sm:$0xff]
        %v620 = vld [vmem:[#allocation8 + $0xe0] sm:$0xff]
        %v621 = vld [vmem:[#allocation8 + $0xe8] sm:$0xff]
        %v622 = vld [vmem:[#allocation8 + $0xf0] sm:$0xff]
        %v623 = vld [vmem:[#allocation8 + $0xf8] sm:$0xff]
        %v624 = vld [vmem:[%s5] sm:$0xff]
        %v626 = vlaneseq
        %v627 = vshrl.u32 %v626, 7
        %v628 = vsub.s32 0, %v627
        %v629 = vrot.slane %v624, %v628
        %v630 = vlaneseq
        %v631 = vshrl.u32 %v630, 7
        %v632 = vsub.s32 1, %v631
        %v633 = vrot.slane %v624, %v632
        %v634 = vlaneseq
        %v635 = vshrl.u32 %v634, 7
        %v636 = vsub.s32 2, %v635
        %v637 = vrot.slane %v624, %v636
        %v638 = vlaneseq
        %v639 = vshrl.u32 %v638, 7
        %v640 = vsub.s32 3, %v639
        %v641 = vrot.slane %v624, %v640
        %v642 = vlaneseq
        %v643 = vshrl.u32 %v642, 7
        %v644 = vsub.s32 4, %v643
        %v645 = vrot.slane %v624, %v644
        %v646 = vlaneseq
        %v647 = vshrl.u32 %v646, 7
        %v648 = vsub.s32 5, %v647
        %v649 = vrot.slane %v624, %v648
        %v650 = vlaneseq
        %v651 = vshrl.u32 %v650, 7
        %v652 = vsub.s32 6, %v651
        %v653 = vrot.slane %v624, %v652
        %v654 = vlaneseq
        %v655 = vshrl.u32 %v654, 7
        %v656 = vsub.s32 7, %v655
        %v657 = vrot.slane %v624, %v656
        %v698 = vunpack.c.l.b16 %v592
        %v699 = vunpack.c.h.b16 %v592
        %v700 = vunpack.c.l.b16 %v593
        %v701 = vunpack.c.h.b16 %v593
        %v702 = vunpack.c.l.b16 %v594
        %v703 = vunpack.c.h.b16 %v594
        %v704 = vunpack.c.l.b16 %v595
        %v705 = vunpack.c.h.b16 %v595
        %v706 = vunpack.c.l.b16 %v596
        %v707 = vunpack.c.h.b16 %v596
        %v708 = vunpack.c.l.b16 %v597
        %v709 = vunpack.c.h.b16 %v597
        %v710 = vunpack.c.l.b16 %v598
        %v711 = vunpack.c.h.b16 %v598
        %v712 = vunpack.c.l.b16 %v599
        %v713 = vunpack.c.h.b16 %v599
        %v714 = vunpack.c.l.b16 %v600
        %v715 = vunpack.c.h.b16 %v600
        %v716 = vunpack.c.l.b16 %v601
        %v717 = vunpack.c.h.b16 %v601
        %v718 = vunpack.c.l.b16 %v602
        %v719 = vunpack.c.h.b16 %v602
        %v720 = vunpack.c.l.b16 %v603
        %v721 = vunpack.c.h.b16 %v603
        %v722 = vunpack.c.l.b16 %v604
        %v723 = vunpack.c.h.b16 %v604
        %v724 = vunpack.c.l.b16 %v605
        %v725 = vunpack.c.h.b16 %v605
        %v726 = vunpack.c.l.b16 %v606
        %v727 = vunpack.c.h.b16 %v606
        %v728 = vunpack.c.l.b16 %v607
        %v729 = vunpack.c.h.b16 %v607
        %v730 = vunpack.c.l.b16 %v608
        %v731 = vunpack.c.h.b16 %v608
        %v732 = vunpack.c.l.b16 %v609
        %v733 = vunpack.c.h.b16 %v609
        %v734 = vunpack.c.l.b16 %v610
        %v735 = vunpack.c.h.b16 %v610
        %v736 = vunpack.c.l.b16 %v611
        %v737 = vunpack.c.h.b16 %v611
        %v738 = vunpack.c.l.b16 %v612
        %v739 = vunpack.c.h.b16 %v612
        %v740 = vunpack.c.l.b16 %v613
        %v741 = vunpack.c.h.b16 %v613
        %v742 = vunpack.c.l.b16 %v614
        %v743 = vunpack.c.h.b16 %v614
        %v744 = vunpack.c.l.b16 %v615
        %v745 = vunpack.c.h.b16 %v615
        %v746 = vunpack.c.l.b16 %v616
        %v747 = vunpack.c.h.b16 %v616
        %v748 = vunpack.c.l.b16 %v617
        %v749 = vunpack.c.h.b16 %v617
        %v750 = vunpack.c.l.b16 %v618
        %v751 = vunpack.c.h.b16 %v618
        %v752 = vunpack.c.l.b16 %v619
        %v753 = vunpack.c.h.b16 %v619
        %v754 = vunpack.c.l.b16 %v620
        %v755 = vunpack.c.h.b16 %v620
        %v756 = vunpack.c.l.b16 %v621
        %v757 = vunpack.c.h.b16 %v621
        %v758 = vunpack.c.l.b16 %v622
        %v759 = vunpack.c.h.b16 %v622
        %v760 = vunpack.c.l.b16 %v623
        %v761 = vunpack.c.h.b16 %v623
        %v762 = vpack.c.b16 %v706, %v698
        %v763 = vpack.c.b16 %v707, %v699
        %v764 = vpack.c.b16 %v708, %v700
        %v765 = vpack.c.b16 %v709, %v701
        %v766 = vpack.c.b16 %v710, %v702
        %v767 = vpack.c.b16 %v711, %v703
        %v768 = vpack.c.b16 %v712, %v704
        %v769 = vpack.c.b16 %v713, %v705
        %v770 = vpack.c.b16 %v722, %v714
        %v771 = vpack.c.b16 %v723, %v715
        %v772 = vpack.c.b16 %v724, %v716
        %v773 = vpack.c.b16 %v725, %v717
        %v774 = vpack.c.b16 %v726, %v718
        %v775 = vpack.c.b16 %v727, %v719
        %v776 = vpack.c.b16 %v728, %v720
        %v777 = vpack.c.b16 %v729, %v721
        %v778 = vpack.c.b16 %v738, %v730
        %v779 = vpack.c.b16 %v739, %v731
        %v780 = vpack.c.b16 %v740, %v732
        %v781 = vpack.c.b16 %v741, %v733
        %v782 = vpack.c.b16 %v742, %v734
        %v783 = vpack.c.b16 %v743, %v735
        %v784 = vpack.c.b16 %v744, %v736
        %v785 = vpack.c.b16 %v745, %v737
        %v786 = vpack.c.b16 %v754, %v746
        %v787 = vpack.c.b16 %v755, %v747
        %v788 = vpack.c.b16 %v756, %v748
        %v789 = vpack.c.b16 %v757, %v749
        %v790 = vpack.c.b16 %v758, %v750
        %v791 = vpack.c.b16 %v759, %v751
        %v792 = vpack.c.b16 %v760, %v752
        %v793 = vpack.c.b16 %v761, %v753
        %v827 = vsel %vm446, %v584, 0
        %v830 = vsel %vm446, %v585, 0
        %v833 = vsel %vm446, %v586, 0
        %v836 = vsel %vm446, %v587, 0
        %v839 = vsel %vm446, %v588, 0
        %v842 = vsel %vm446, %v589, 0
        %v845 = vsel %vm446, %v590, 0
        %v848 = vsel %vm446, %v591, 0
        %850 = vmatprep.subr.bf16.mxu0 %v763
        %851 = vmatpush1.bf16.msra.mxu0 %v762
        %852 = vmatprep.subr.bf16.mxu0 %v771
        %853 = vmatpush1.bf16.msra.mxu0 %v770
        %854 = vmatprep.subr.bf16.mxu0 %v779
        %855 = vmatpush1.bf16.msra.mxu0 %v778
        %856 = vmatprep.subr.bf16.mxu0 %v787
        %857 = vmatpush1.bf16.msra.mxu0 %v786
        %858 = vmatprep.subr.bf16.mxu0 0
        %859 = vmatpush1.bf16.msra.mxu0 0
        %860 = vmatprep.subr.bf16.mxu0 0
        %861 = vmatpush1.bf16.msra.mxu0 0
        %862 = vmatprep.subr.bf16.mxu0 0
        %863 = vmatpush1.bf16.msra.mxu0 0
        %864 = vmatprep.subr.bf16.mxu0 0
        %865 = vmatpush1.bf16.msra.mxu0 0
        %866 = vmatprep.subr.bf16.mxu0 0
        %867 = vmatpush1.bf16.msra.mxu0 0
        %868 = vmatprep.subr.bf16.mxu0 0
        %869 = vmatpush1.bf16.msra.mxu0 0
        %870 = vmatprep.subr.bf16.mxu0 0
        %871 = vmatpush1.bf16.msra.mxu0 0
        %872 = vmatprep.subr.bf16.mxu0 0
        %873 = vmatpush1.bf16.msra.mxu0 0
        %874 = vmatprep.subr.bf16.mxu0 0
        %875 = vmatpush1.bf16.msra.mxu0 0
        %876 = vmatprep.subr.bf16.mxu0 0
        %877 = vmatpush1.bf16.msra.mxu0 0
        %878 = vmatprep.subr.bf16.mxu0 0
        %879 = vmatpush1.bf16.msra.mxu0 0
        %880 = vmatprep.subr.bf16.mxu0 0
        %881 = vmatpush1.bf16.msra.mxu0 0
        %882 = vmatprep.mubr.bf16.mxu0 0
        %883 = vmatmul.mubr.bf16.gmra.mrb[0].mxu0 %v827
        %v884 = vpop.f32.mrb[0].mxu0
        %v885 = vadd.f32 %v629, %v884
        %v886 = vpop.f32.mrb[0].mxu0
        %v887 = vadd.f32 %v633, %v886
        %v888 = vpop.f32.mrb[0].mxu0
        %v889 = vadd.f32 %v629, %v888
        %v890 = vpop.f32.mrb[0].mxu0
        %v891 = vadd.f32 %v633, %v890
        %892 = vmatprep.mubr.bf16.mxu0 0
        %893 = vmatmul.mubr.bf16.gmra.mrb[0].mxu0 %v830
        %v894 = vpop.f32.mrb[0].mxu0
        %v895 = vadd.f32 %v629, %v894
        %v896 = vpop.f32.mrb[0].mxu0
        %v897 = vadd.f32 %v633, %v896
        %v898 = vpop.f32.mrb[0].mxu0
        %v899 = vadd.f32 %v629, %v898
        %v900 = vpop.f32.mrb[0].mxu0
        %v901 = vadd.f32 %v633, %v900
        %902 = vmatprep.mubr.bf16.mxu0 0
        %903 = vmatmul.mubr.bf16.gmra.mrb[0].mxu0 %v833
        %v904 = vpop.f32.mrb[0].mxu0
        %v905 = vadd.f32 %v629, %v904
        %v906 = vpop.f32.mrb[0].mxu0
        %v907 = vadd.f32 %v633, %v906
        %v908 = vpop.f32.mrb[0].mxu0
        %v909 = vadd.f32 %v629, %v908
        %v910 = vpop.f32.mrb[0].mxu0
        %v911 = vadd.f32 %v633, %v910
        %912 = vmatprep.mubr.bf16.mxu0 0
        %913 = vmatmul.mubr.bf16.gmra.mrb[0].mxu0 %v836
        %v914 = vpop.f32.mrb[0].mxu0
        %v915 = vadd.f32 %v629, %v914
        %v916 = vpop.f32.mrb[0].mxu0
        %v917 = vadd.f32 %v633, %v916
        %v918 = vpop.f32.mrb[0].mxu0
        %v919 = vadd.f32 %v629, %v918
        %v920 = vpop.f32.mrb[0].mxu0
        %v921 = vadd.f32 %v633, %v920
        %922 = vmatprep.mubr.bf16.mxu0 0
        %923 = vmatmul.mubr.bf16.gmra.mrb[0].mxu0 %v839
        %v924 = vpop.f32.mrb[0].mxu0
        %v925 = vadd.f32 %v629, %v924
        %v926 = vpop.f32.mrb[0].mxu0
        %v927 = vadd.f32 %v633, %v926
        %v928 = vpop.f32.mrb[0].mxu0
        %v929 = vadd.f32 %v629, %v928
        %v930 = vpop.f32.mrb[0].mxu0
        %v931 = vadd.f32 %v633, %v930
        %932 = vmatprep.mubr.bf16.mxu0 0
        %933 = vmatmul.mubr.bf16.gmra.mrb[0].mxu0 %v842
        %v934 = vpop.f32.mrb[0].mxu0
        %v935 = vadd.f32 %v629, %v934
        %v936 = vpop.f32.mrb[0].mxu0
        %v937 = vadd.f32 %v633, %v936
        %v938 = vpop.f32.mrb[0].mxu0
        %v939 = vadd.f32 %v629, %v938
        %v940 = vpop.f32.mrb[0].mxu0
        %v941 = vadd.f32 %v633, %v940
        %942 = vmatprep.mubr.bf16.mxu0 0
        %943 = vmatmul.mubr.bf16.gmra.mrb[0].mxu0 %v845
        %v944 = vpop.f32.mrb[0].mxu0
        %v945 = vadd.f32 %v629, %v944
        %v946 = vpop.f32.mrb[0].mxu0
        %v947 = vadd.f32 %v633, %v946
        %v948 = vpop.f32.mrb[0].mxu0
        %v949 = vadd.f32 %v629, %v948
        %v950 = vpop.f32.mrb[0].mxu0
        %v951 = vadd.f32 %v633, %v950
        %952 = vmatprep.mubr.bf16.mxu0 0
        %953 = vmatmul.mubr.bf16.gmra.mrb[0].mxu0 %v848
        %v954 = vpop.f32.mrb[0].mxu0
        %v955 = vadd.f32 %v629, %v954
        %v956 = vpop.f32.mrb[0].mxu0
        %v957 = vadd.f32 %v633, %v956
        %v958 = vpop.f32.mrb[0].mxu0
        %v959 = vadd.f32 %v629, %v958
        %v960 = vpop.f32.mrb[0].mxu0
        %v961 = vadd.f32 %v633, %v960
        %962 = vdwg.mxu0
        %963 = vmatprep.subr.bf16.mxu0 %v765
        %964 = vmatpush1.bf16.msra.mxu0 %v764
        %965 = vmatprep.subr.bf16.mxu0 %v773
        %966 = vmatpush1.bf16.msra.mxu0 %v772
        %967 = vmatprep.subr.bf16.mxu0 %v781
        %968 = vmatpush1.bf16.msra.mxu0 %v780
        %969 = vmatprep.subr.bf16.mxu0 %v789
        %970 = vmatpush1.bf16.msra.mxu0 %v788
        %971 = vmatprep.subr.bf16.mxu0 0
        %972 = vmatpush1.bf16.msra.mxu0 0
        %973 = vmatprep.subr.bf16.mxu0 0
        %974 = vmatpush1.bf16.msra.mxu0 0
        %975 = vmatprep.subr.bf16.mxu0 0
        %976 = vmatpush1.bf16.msra.mxu0 0
        %977 = vmatprep.subr.bf16.mxu0 0
        %978 = vmatpush1.bf16.msra.mxu0 0
        %979 = vmatprep.subr.bf16.mxu0 0
        %980 = vmatpush1.bf16.msra.mxu0 0
        %981 = vmatprep.subr.bf16.mxu0 0
        %982 = vmatpush1.bf16.msra.mxu0 0
        %983 = vmatprep.subr.bf16.mxu0 0
        %984 = vmatpush1.bf16.msra.mxu0 0
        %985 = vmatprep.subr.bf16.mxu0 0
        %986 = vmatpush1.bf16.msra.mxu0 0
        %987 = vmatprep.subr.bf16.mxu0 0
        %988 = vmatpush1.bf16.msra.mxu0 0
        %989 = vmatprep.subr.bf16.mxu0 0
        %990 = vmatpush1.bf16.msra.mxu0 0
        %991 = vmatprep.subr.bf16.mxu0 0
        %992 = vmatpush1.bf16.msra.mxu0 0
        %993 = vmatprep.subr.bf16.mxu0 0
        %994 = vmatpush1.bf16.msra.mxu0 0
        %995 = vmatprep.mubr.bf16.mxu0 0
        %996 = vmatmul.mubr.bf16.gmra.mrb[0].mxu0 %v827
        %v997 = vpop.f32.mrb[0].mxu0
        %v998 = vadd.f32 %v637, %v997
        %v999 = vpop.f32.mrb[0].mxu0
        %v1000 = vadd.f32 %v641, %v999
        %v1001 = vpop.f32.mrb[0].mxu0
        %v1002 = vadd.f32 %v637, %v1001
        %v1003 = vpop.f32.mrb[0].mxu0
        %v1004 = vadd.f32 %v641, %v1003
        %1005 = vmatprep.mubr.bf16.mxu0 0
        %1006 = vmatmul.mubr.bf16.gmra.mrb[0].mxu0 %v830
        %v1007 = vpop.f32.mrb[0].mxu0
        %v1008 = vadd.f32 %v637, %v1007
        %v1009 = vpop.f32.mrb[0].mxu0
        %v1010 = vadd.f32 %v641, %v1009
        %v1011 = vpop.f32.mrb[0].mxu0
        %v1012 = vadd.f32 %v637, %v1011
        %v1013 = vpop.f32.mrb[0].mxu0
        %v1014 = vadd.f32 %v641, %v1013
        %1015 = vmatprep.mubr.bf16.mxu0 0
        %1016 = vmatmul.mubr.bf16.gmra.mrb[0].mxu0 %v833
        %v1017 = vpop.f32.mrb[0].mxu0
        %v1018 = vadd.f32 %v637, %v1017
        %v1019 = vpop.f32.mrb[0].mxu0
        %v1020 = vadd.f32 %v641, %v1019
        %v1021 = vpop.f32.mrb[0].mxu0
        %v1022 = vadd.f32 %v637, %v1021
        %v1023 = vpop.f32.mrb[0].mxu0
        %v1024 = vadd.f32 %v641, %v1023
        %1025 = vmatprep.mubr.bf16.mxu0 0
        %1026 = vmatmul.mubr.bf16.gmra.mrb[0].mxu0 %v836
        %v1027 = vpop.f32.mrb[0].mxu0
        %v1028 = vadd.f32 %v637, %v1027
        %v1029 = vpop.f32.mrb[0].mxu0
        %v1030 = vadd.f32 %v641, %v1029
        %v1031 = vpop.f32.mrb[0].mxu0
        %v1032 = vadd.f32 %v637, %v1031
        %v1033 = vpop.f32.mrb[0].mxu0
        %v1034 = vadd.f32 %v641, %v1033
        %1035 = vmatprep.mubr.bf16.mxu0 0
        %1036 = vmatmul.mubr.bf16.gmra.mrb[0].mxu0 %v839
        %v1037 = vpop.f32.mrb[0].mxu0
        %v1038 = vadd.f32 %v637, %v1037
        %v1039 = vpop.f32.mrb[0].mxu0
        %v1040 = vadd.f32 %v641, %v1039
        %v1041 = vpop.f32.mrb[0].mxu0
        %v1042 = vadd.f32 %v637, %v1041
        %v1043 = vpop.f32.mrb[0].mxu0
        %v1044 = vadd.f32 %v641, %v1043
        %1045 = vmatprep.mubr.bf16.mxu0 0
        %1046 = vmatmul.mubr.bf16.gmra.mrb[0].mxu0 %v842
        %v1047 = vpop.f32.mrb[0].mxu0
        %v1048 = vadd.f32 %v637, %v1047
        %v1049 = vpop.f32.mrb[0].mxu0
        %v1050 = vadd.f32 %v641, %v1049
        %v1051 = vpop.f32.mrb[0].mxu0
        %v1052 = vadd.f32 %v637, %v1051
        %v1053 = vpop.f32.mrb[0].mxu0
        %v1054 = vadd.f32 %v641, %v1053
        %1055 = vmatprep.mubr.bf16.mxu0 0
        %1056 = vmatmul.mubr.bf16.gmra.mrb[0].mxu0 %v845
        %v1057 = vpop.f32.mrb[0].mxu0
        %v1058 = vadd.f32 %v637, %v1057
        %v1059 = vpop.f32.mrb[0].mxu0
        %v1060 = vadd.f32 %v641, %v1059
        %v1061 = vpop.f32.mrb[0].mxu0
        %v1062 = vadd.f32 %v637, %v1061
        %v1063 = vpop.f32.mrb[0].mxu0
        %v1064 = vadd.f32 %v641, %v1063
        %1065 = vmatprep.mubr.bf16.mxu0 0
        %1066 = vmatmul.mubr.bf16.gmra.mrb[0].mxu0 %v848
        %v1067 = vpop.f32.mrb[0].mxu0
        %v1068 = vadd.f32 %v637, %v1067
        %v1069 = vpop.f32.mrb[0].mxu0
        %v1070 = vadd.f32 %v641, %v1069
        %v1071 = vpop.f32.mrb[0].mxu0
        %v1072 = vadd.f32 %v637, %v1071
        %v1073 = vpop.f32.mrb[0].mxu0
        %v1074 = vadd.f32 %v641, %v1073
        %1075 = vdwg.mxu0
        %1076 = vmatprep.subr.bf16.mxu0 %v767
        %1077 = vmatpush1.bf16.msra.mxu0 %v766
        %1078 = vmatprep.subr.bf16.mxu0 %v775
        %1079 = vmatpush1.bf16.msra.mxu0 %v774
        %1080 = vmatprep.subr.bf16.mxu0 %v783
        %1081 = vmatpush1.bf16.msra.mxu0 %v782
        %1082 = vmatprep.subr.bf16.mxu0 %v791
        %1083 = vmatpush1.bf16.msra.mxu0 %v790
        %1084 = vmatprep.subr.bf16.mxu0 0
        %1085 = vmatpush1.bf16.msra.mxu0 0
        %1086 = vmatprep.subr.bf16.mxu0 0
        %1087 = vmatpush1.bf16.msra.mxu0 0
        %1088 = vmatprep.subr.bf16.mxu0 0
        %1089 = vmatpush1.bf16.msra.mxu0 0
        %1090 = vmatprep.subr.bf16.mxu0 0
        %1091 = vmatpush1.bf16.msra.mxu0 0
        %1092 = vmatprep.subr.bf16.mxu0 0
        %1093 = vmatpush1.bf16.msra.mxu0 0
        %1094 = vmatprep.subr.bf16.mxu0 0
        %1095 = vmatpush1.bf16.msra.mxu0 0
        %1096 = vmatprep.subr.bf16.mxu0 0
        %1097 = vmatpush1.bf16.msra.mxu0 0
        %1098 = vmatprep.subr.bf16.mxu0 0
        %1099 = vmatpush1.bf16.msra.mxu0 0
        %1100 = vmatprep.subr.bf16.mxu0 0
        %1101 = vmatpush1.bf16.msra.mxu0 0
        %1102 = vmatprep.subr.bf16.mxu0 0
        %1103 = vmatpush1.bf16.msra.mxu0 0
        %1104 = vmatprep.subr.bf16.mxu0 0
        %1105 = vmatpush1.bf16.msra.mxu0 0
        %1106 = vmatprep.subr.bf16.mxu0 0
        %1107 = vmatpush1.bf16.msra.mxu0 0
        %1108 = vmatprep.mubr.bf16.mxu0 0
        %1109 = vmatmul.mubr.bf16.gmra.mrb[0].mxu0 %v827
        %v1110 = vpop.f32.mrb[0].mxu0
        %v1111 = vadd.f32 %v645, %v1110
        %v1112 = vpop.f32.mrb[0].mxu0
        %v1113 = vadd.f32 %v649, %v1112
        %v1114 = vpop.f32.mrb[0].mxu0
        %v1115 = vadd.f32 %v645, %v1114
        %v1116 = vpop.f32.mrb[0].mxu0
        %v1117 = vadd.f32 %v649, %v1116
        %1118 = vmatprep.mubr.bf16.mxu0 0
        %1119 = vmatmul.mubr.bf16.gmra.mrb[0].mxu0 %v830
        %v1120 = vpop.f32.mrb[0].mxu0
        %v1121 = vadd.f32 %v645, %v1120
        %v1122 = vpop.f32.mrb[0].mxu0
        %v1123 = vadd.f32 %v649, %v1122
        %v1124 = vpop.f32.mrb[0].mxu0
        %v1125 = vadd.f32 %v645, %v1124
        %v1126 = vpop.f32.mrb[0].mxu0
        %v1127 = vadd.f32 %v649, %v1126
        %1128 = vmatprep.mubr.bf16.mxu0 0
        %1129 = vmatmul.mubr.bf16.gmra.mrb[0].mxu0 %v833
        %v1130 = vpop.f32.mrb[0].mxu0
        %v1131 = vadd.f32 %v645, %v1130
        %v1132 = vpop.f32.mrb[0].mxu0
        %v1133 = vadd.f32 %v649, %v1132
        %v1134 = vpop.f32.mrb[0].mxu0
        %v1135 = vadd.f32 %v645, %v1134
        %v1136 = vpop.f32.mrb[0].mxu0
        %v1137 = vadd.f32 %v649, %v1136
        %1138 = vmatprep.mubr.bf16.mxu0 0
        %1139 = vmatmul.mubr.bf16.gmra.mrb[0].mxu0 %v836
        %v1140 = vpop.f32.mrb[0].mxu0
        %v1141 = vadd.f32 %v645, %v1140
        %v1142 = vpop.f32.mrb[0].mxu0
        %v1143 = vadd.f32 %v649, %v1142
        %v1144 = vpop.f32.mrb[0].mxu0
        %v1145 = vadd.f32 %v645, %v1144
        %v1146 = vpop.f32.mrb[0].mxu0
        %v1147 = vadd.f32 %v649, %v1146
        %1148 = vmatprep.mubr.bf16.mxu0 0
        %1149 = vmatmul.mubr.bf16.gmra.mrb[0].mxu0 %v839
        %v1150 = vpop.f32.mrb[0].mxu0
        %v1151 = vadd.f32 %v645, %v1150
        %v1152 = vpop.f32.mrb[0].mxu0
        %v1153 = vadd.f32 %v649, %v1152
        %v1154 = vpop.f32.mrb[0].mxu0
        %v1155 = vadd.f32 %v645, %v1154
        %v1156 = vpop.f32.mrb[0].mxu0
        %v1157 = vadd.f32 %v649, %v1156
        %1158 = vmatprep.mubr.bf16.mxu0 0
        %1159 = vmatmul.mubr.bf16.gmra.mrb[0].mxu0 %v842
        %v1160 = vpop.f32.mrb[0].mxu0
        %v1161 = vadd.f32 %v645, %v1160
        %v1162 = vpop.f32.mrb[0].mxu0
        %v1163 = vadd.f32 %v649, %v1162
        %v1164 = vpop.f32.mrb[0].mxu0
        %v1165 = vadd.f32 %v645, %v1164
        %v1166 = vpop.f32.mrb[0].mxu0
        %v1167 = vadd.f32 %v649, %v1166
        %1168 = vmatprep.mubr.bf16.mxu0 0
        %1169 = vmatmul.mubr.bf16.gmra.mrb[0].mxu0 %v845
        %v1170 = vpop.f32.mrb[0].mxu0
        %v1171 = vadd.f32 %v645, %v1170
        %v1172 = vpop.f32.mrb[0].mxu0
        %v1173 = vadd.f32 %v649, %v1172
        %v1174 = vpop.f32.mrb[0].mxu0
        %v1175 = vadd.f32 %v645, %v1174
        %v1176 = vpop.f32.mrb[0].mxu0
        %v1177 = vadd.f32 %v649, %v1176
        %1178 = vmatprep.mubr.bf16.mxu0 0
        %1179 = vmatmul.mubr.bf16.gmra.mrb[0].mxu0 %v848
        %v1180 = vpop.f32.mrb[0].mxu0
        %v1181 = vadd.f32 %v645, %v1180
        %v1182 = vpop.f32.mrb[0].mxu0
        %v1183 = vadd.f32 %v649, %v1182
        %v1184 = vpop.f32.mrb[0].mxu0
        %v1185 = vadd.f32 %v645, %v1184
        %v1186 = vpop.f32.mrb[0].mxu0
        %v1187 = vadd.f32 %v649, %v1186
        %1188 = vdwg.mxu0
        %1189 = vmatprep.subr.bf16.mxu0 %v769
        %1190 = vmatpush1.bf16.msra.mxu0 %v768
        %1191 = vmatprep.subr.bf16.mxu0 %v777
        %1192 = vmatpush1.bf16.msra.mxu0 %v776
        %1193 = vmatprep.subr.bf16.mxu0 %v785
        %1194 = vmatpush1.bf16.msra.mxu0 %v784
        %1195 = vmatprep.subr.bf16.mxu0 %v793
        %1196 = vmatpush1.bf16.msra.mxu0 %v792
        %1197 = vmatprep.subr.bf16.mxu0 0
        %1198 = vmatpush1.bf16.msra.mxu0 0
        %1199 = vmatprep.subr.bf16.mxu0 0
        %1200 = vmatpush1.bf16.msra.mxu0 0
        %1201 = vmatprep.subr.bf16.mxu0 0
        %1202 = vmatpush1.bf16.msra.mxu0 0
        %1203 = vmatprep.subr.bf16.mxu0 0
        %1204 = vmatpush1.bf16.msra.mxu0 0
        %1205 = vmatprep.subr.bf16.mxu0 0
        %1206 = vmatpush1.bf16.msra.mxu0 0
        %1207 = vmatprep.subr.bf16.mxu0 0
        %1208 = vmatpush1.bf16.msra.mxu0 0
        %1209 = vmatprep.subr.bf16.mxu0 0
        %1210 = vmatpush1.bf16.msra.mxu0 0
        %1211 = vmatprep.subr.bf16.mxu0 0
        %1212 = vmatpush1.bf16.msra.mxu0 0
        %1213 = vmatprep.subr.bf16.mxu0 0
        %1214 = vmatpush1.bf16.msra.mxu0 0
        %1215 = vmatprep.subr.bf16.mxu0 0
        %1216 = vmatpush1.bf16.msra.mxu0 0
        %1217 = vmatprep.subr.bf16.mxu0 0
        %1218 = vmatpush1.bf16.msra.mxu0 0
        %1219 = vmatprep.subr.bf16.mxu0 0
        %1220 = vmatpush1.bf16.msra.mxu0 0
        %1221 = vmatprep.mubr.bf16.mxu0 0
        %1222 = vmatmul.mubr.bf16.gmra.mrb[0].mxu0 %v827
        %v1223 = vpop.f32.mrb[0].mxu0
        %v1224 = vadd.f32 %v653, %v1223
        %v1225 = vpop.f32.mrb[0].mxu0
        %v1226 = vadd.f32 %v657, %v1225
        %v1227 = vpop.f32.mrb[0].mxu0
        %v1228 = vadd.f32 %v653, %v1227
        %v1229 = vpop.f32.mrb[0].mxu0
        %v1230 = vadd.f32 %v657, %v1229
        %1231 = vmatprep.mubr.bf16.mxu0 0
        %1232 = vmatmul.mubr.bf16.gmra.mrb[0].mxu0 %v830
        %v1233 = vpop.f32.mrb[0].mxu0
        %v1234 = vadd.f32 %v653, %v1233
        %v1235 = vpop.f32.mrb[0].mxu0
        %v1236 = vadd.f32 %v657, %v1235
        %v1237 = vpop.f32.mrb[0].mxu0
        %v1238 = vadd.f32 %v653, %v1237
        %v1239 = vpop.f32.mrb[0].mxu0
        %v1240 = vadd.f32 %v657, %v1239
        %1241 = vmatprep.mubr.bf16.mxu0 0
        %1242 = vmatmul.mubr.bf16.gmra.mrb[0].mxu0 %v833
        %v1243 = vpop.f32.mrb[0].mxu0
        %v1244 = vadd.f32 %v653, %v1243
        %v1245 = vpop.f32.mrb[0].mxu0
        %v1246 = vadd.f32 %v657, %v1245
        %v1247 = vpop.f32.mrb[0].mxu0
        %v1248 = vadd.f32 %v653, %v1247
        %v1249 = vpop.f32.mrb[0].mxu0
        %v1250 = vadd.f32 %v657, %v1249
        %1251 = vmatprep.mubr.bf16.mxu0 0
        %1252 = vmatmul.mubr.bf16.gmra.mrb[0].mxu0 %v836
        %v1253 = vpop.f32.mrb[0].mxu0
        %v1254 = vadd.f32 %v653, %v1253
        %v1255 = vpop.f32.mrb[0].mxu0
        %v1256 = vadd.f32 %v657, %v1255
        %v1257 = vpop.f32.mrb[0].mxu0
        %v1258 = vadd.f32 %v653, %v1257
        %v1259 = vpop.f32.mrb[0].mxu0
        %v1260 = vadd.f32 %v657, %v1259
        %1261 = vmatprep.mubr.bf16.mxu0 0
        %1262 = vmatmul.mubr.bf16.gmra.mrb[0].mxu0 %v839
        %v1263 = vpop.f32.mrb[0].mxu0
        %v1264 = vadd.f32 %v653, %v1263
        %v1265 = vpop.f32.mrb[0].mxu0
        %v1266 = vadd.f32 %v657, %v1265
        %v1267 = vpop.f32.mrb[0].mxu0
        %v1268 = vadd.f32 %v653, %v1267
        %v1269 = vpop.f32.mrb[0].mxu0
        %v1270 = vadd.f32 %v657, %v1269
        %1271 = vmatprep.mubr.bf16.mxu0 0
        %1272 = vmatmul.mubr.bf16.gmra.mrb[0].mxu0 %v842
        %v1273 = vpop.f32.mrb[0].mxu0
        %v1274 = vadd.f32 %v653, %v1273
        %v1275 = vpop.f32.mrb[0].mxu0
        %v1276 = vadd.f32 %v657, %v1275
        %v1277 = vpop.f32.mrb[0].mxu0
        %v1278 = vadd.f32 %v653, %v1277
        %v1279 = vpop.f32.mrb[0].mxu0
        %v1280 = vadd.f32 %v657, %v1279
        %1281 = vmatprep.mubr.bf16.mxu0 0
        %1282 = vmatmul.mubr.bf16.gmra.mrb[0].mxu0 %v845
        %v1283 = vpop.f32.mrb[0].mxu0
        %v1284 = vadd.f32 %v653, %v1283
        %v1285 = vpop.f32.mrb[0].mxu0
        %v1286 = vadd.f32 %v657, %v1285
        %v1287 = vpop.f32.mrb[0].mxu0
        %v1288 = vadd.f32 %v653, %v1287
        %v1289 = vpop.f32.mrb[0].mxu0
        %v1290 = vadd.f32 %v657, %v1289
        %1291 = vmatprep.mubr.bf16.mxu0 0
        %1292 = vmatmul.mubr.bf16.gmra.mrb[0].mxu0 %v848
        %v1293 = vpop.f32.mrb[0].mxu0
        %v1294 = vadd.f32 %v653, %v1293
        %v1295 = vpop.f32.mrb[0].mxu0
        %v1296 = vadd.f32 %v657, %v1295
        %v1297 = vpop.f32.mrb[0].mxu0
        %v1298 = vadd.f32 %v653, %v1297
        %v1299 = vpop.f32.mrb[0].mxu0
        %v1300 = vadd.f32 %v657, %v1299
        %1301 = vdwg.mxu0
        %v1302 = vcombine.low %v885, %v998
        %v1303 = vcombine.high %v885, %v998
        %v1305 = vunpack.c.l.s4 1983009808
        %v1306 = vunpack.c.0.s8 %v1305
        %v1307 = vlaneseq
        %v1308 = vshrl.u32 %v1307, 7
        %v1309 = vsub.s32 %v1306, %v1308
        %v1310 = vrot.slane %v1302, %v1309
        %v1312 = vunpack.c.l.s4 1983009808
        %v1313 = vunpack.c.0.s8 %v1312
        %v1314 = vlaneseq
        %v1315 = vshrl.u32 %v1314, 7
        %v1316 = vsub.s32 %v1313, %v1315
        %v1317 = vrot.slane %v1303, %v1316
        %v1318 = vcombine.low %v887, %v1000
        %v1319 = vcombine.high %v887, %v1000
        %v1321 = vunpack.c.l.s4 1983009808
        %v1322 = vunpack.c.0.s8 %v1321
        %v1323 = vlaneseq
        %v1324 = vshrl.u32 %v1323, 7
        %v1325 = vsub.s32 %v1322, %v1324
        %v1326 = vrot.slane %v1318, %v1325
        %v1328 = vunpack.c.l.s4 1983009808
        %v1329 = vunpack.c.0.s8 %v1328
        %v1330 = vlaneseq
        %v1331 = vshrl.u32 %v1330, 7
        %v1332 = vsub.s32 %v1329, %v1331
        %v1333 = vrot.slane %v1319, %v1332
        %v1334 = vcombine.low %v1111, %v1224
        %v1335 = vcombine.high %v1111, %v1224
        %v1337 = vunpack.c.l.s4 1983009808
        %v1338 = vunpack.c.0.s8 %v1337
        %v1339 = vlaneseq
        %v1340 = vshrl.u32 %v1339, 7
        %v1341 = vsub.s32 %v1338, %v1340
        %v1342 = vrot.slane %v1334, %v1341
        %v1344 = vunpack.c.l.s4 1983009808
        %v1345 = vunpack.c.0.s8 %v1344
        %v1346 = vlaneseq
        %v1347 = vshrl.u32 %v1346, 7
        %v1348 = vsub.s32 %v1345, %v1347
        %v1349 = vrot.slane %v1335, %v1348
        %v1350 = vcombine.low %v1113, %v1226
        %v1351 = vcombine.high %v1113, %v1226
        %v1353 = vunpack.c.l.s4 1983009808
        %v1354 = vunpack.c.0.s8 %v1353
        %v1355 = vlaneseq
        %v1356 = vshrl.u32 %v1355, 7
        %v1357 = vsub.s32 %v1354, %v1356
        %v1358 = vrot.slane %v1350, %v1357
        %v1360 = vunpack.c.l.s4 1983009808
        %v1361 = vunpack.c.0.s8 %v1360
        %v1362 = vlaneseq
        %v1363 = vshrl.u32 %v1362, 7
        %v1364 = vsub.s32 %v1361, %v1363
        %v1365 = vrot.slane %v1351, %v1364
        %v1366 = vcombine.low %v1310, %v1326
        %v1367 = vcombine.high %v1310, %v1326
        %v1369 = vunpack.c.l.s4 1934713408
        %v1370 = vunpack.c.0.s8 %v1369
        %v1371 = vlaneseq
        %v1372 = vshrl.u32 %v1371, 7
        %v1373 = vsub.s32 %v1370, %v1372
        %v1374 = vrot.slane %v1366, %v1373
        %v1376 = vunpack.c.l.s4 1934713408
        %v1377 = vunpack.c.0.s8 %v1376
        %v1378 = vlaneseq
        %v1379 = vshrl.u32 %v1378, 7
        %v1380 = vsub.s32 %v1377, %v1379
        %v1381 = vrot.slane %v1367, %v1380
        %v1382 = vcombine.low %v1317, %v1333
        %v1383 = vcombine.high %v1317, %v1333
        %v1385 = vunpack.c.l.s4 1934713408
        %v1386 = vunpack.c.0.s8 %v1385
        %v1387 = vlaneseq
        %v1388 = vshrl.u32 %v1387, 7
        %v1389 = vsub.s32 %v1386, %v1388
        %v1390 = vrot.slane %v1382, %v1389
        %v1392 = vunpack.c.l.s4 1934713408
        %v1393 = vunpack.c.0.s8 %v1392
        %v1394 = vlaneseq
        %v1395 = vshrl.u32 %v1394, 7
        %v1396 = vsub.s32 %v1393, %v1395
        %v1397 = vrot.slane %v1383, %v1396
        %v1398 = vcombine.low %v1342, %v1358
        %v1399 = vcombine.high %v1342, %v1358
        %v1401 = vunpack.c.l.s4 1934713408
        %v1402 = vunpack.c.0.s8 %v1401
        %v1403 = vlaneseq
        %v1404 = vshrl.u32 %v1403, 7
        %v1405 = vsub.s32 %v1402, %v1404
        %v1406 = vrot.slane %v1398, %v1405
        %v1408 = vunpack.c.l.s4 1934713408
        %v1409 = vunpack.c.0.s8 %v1408
        %v1410 = vlaneseq
        %v1411 = vshrl.u32 %v1410, 7
        %v1412 = vsub.s32 %v1409, %v1411
        %v1413 = vrot.slane %v1399, %v1412
        %v1414 = vcombine.low %v1349, %v1365
        %v1415 = vcombine.high %v1349, %v1365
        %v1417 = vunpack.c.l.s4 1934713408
        %v1418 = vunpack.c.0.s8 %v1417
        %v1419 = vlaneseq
        %v1420 = vshrl.u32 %v1419, 7
        %v1421 = vsub.s32 %v1418, %v1420
        %v1422 = vrot.slane %v1414, %v1421
        %v1424 = vunpack.c.l.s4 1934713408
        %v1425 = vunpack.c.0.s8 %v1424
        %v1426 = vlaneseq
        %v1427 = vshrl.u32 %v1426, 7
        %v1428 = vsub.s32 %v1425, %v1427
        %v1429 = vrot.slane %v1415, %v1428
        %v1430 = vcombine.low %v1374, %v1406
        %v1431 = vcombine.high %v1374, %v1406
        %v1432 = vcombine.low %v1381, %v1413
        %v1433 = vcombine.high %v1381, %v1413
        %v1434 = vcombine.low %v1390, %v1422
        %v1435 = vcombine.high %v1390, %v1422
        %v1436 = vcombine.low %v1397, %v1429
        %v1437 = vcombine.high %v1397, %v1429
        %v1438 = vcombine.low %v889, %v1002
        %v1439 = vcombine.high %v889, %v1002
        %v1441 = vunpack.c.l.s4 1983009808
        %v1442 = vunpack.c.0.s8 %v1441
        %v1443 = vlaneseq
        %v1444 = vshrl.u32 %v1443, 7
        %v1445 = vsub.s32 %v1442, %v1444
        %v1446 = vrot.slane %v1438, %v1445
        %v1448 = vunpack.c.l.s4 1983009808
        %v1449 = vunpack.c.0.s8 %v1448
        %v1450 = vlaneseq
        %v1451 = vshrl.u32 %v1450, 7
        %v1452 = vsub.s32 %v1449, %v1451
        %v1453 = vrot.slane %v1439, %v1452
        %v1454 = vcombine.low %v891, %v1004
        %v1455 = vcombine.high %v891, %v1004
        %v1457 = vunpack.c.l.s4 1983009808
        %v1458 = vunpack.c.0.s8 %v1457
        %v1459 = vlaneseq
        %v1460 = vshrl.u32 %v1459, 7
        %v1461 = vsub.s32 %v1458, %v1460
        %v1462 = vrot.slane %v1454, %v1461
        %v1464 = vunpack.c.l.s4 1983009808
        %v1465 = vunpack.c.0.s8 %v1464
        %v1466 = vlaneseq
        %v1467 = vshrl.u32 %v1466, 7
        %v1468 = vsub.s32 %v1465, %v1467
        %v1469 = vrot.slane %v1455, %v1468
        %v1470 = vcombine.low %v1115, %v1228
        %v1471 = vcombine.high %v1115, %v1228
        %v1473 = vunpack.c.l.s4 1983009808
        %v1474 = vunpack.c.0.s8 %v1473
        %v1475 = vlaneseq
        %v1476 = vshrl.u32 %v1475, 7
        %v1477 = vsub.s32 %v1474, %v1476
        %v1478 = vrot.slane %v1470, %v1477
        %v1480 = vunpack.c.l.s4 1983009808
        %v1481 = vunpack.c.0.s8 %v1480
        %v1482 = vlaneseq
        %v1483 = vshrl.u32 %v1482, 7
        %v1484 = vsub.s32 %v1481, %v1483
        %v1485 = vrot.slane %v1471, %v1484
        %v1486 = vcombine.low %v1117, %v1230
        %v1487 = vcombine.high %v1117, %v1230
        %v1489 = vunpack.c.l.s4 1983009808
        %v1490 = vunpack.c.0.s8 %v1489
        %v1491 = vlaneseq
        %v1492 = vshrl.u32 %v1491, 7
        %v1493 = vsub.s32 %v1490, %v1492
        %v1494 = vrot.slane %v1486, %v1493
        %v1496 = vunpack.c.l.s4 1983009808
        %v1497 = vunpack.c.0.s8 %v1496
        %v1498 = vlaneseq
        %v1499 = vshrl.u32 %v1498, 7
        %v1500 = vsub.s32 %v1497, %v1499
        %v1501 = vrot.slane %v1487, %v1500
        %v1502 = vcombine.low %v1446, %v1462
        %v1503 = vcombine.high %v1446, %v1462
        %v1505 = vunpack.c.l.s4 1934713408
        %v1506 = vunpack.c.0.s8 %v1505
        %v1507 = vlaneseq
        %v1508 = vshrl.u32 %v1507, 7
        %v1509 = vsub.s32 %v1506, %v1508
        %v1510 = vrot.slane %v1502, %v1509
        %v1512 = vunpack.c.l.s4 1934713408
        %v1513 = vunpack.c.0.s8 %v1512
        %v1514 = vlaneseq
        %v1515 = vshrl.u32 %v1514, 7
        %v1516 = vsub.s32 %v1513, %v1515
        %v1517 = vrot.slane %v1503, %v1516
        %v1518 = vcombine.low %v1453, %v1469
        %v1519 = vcombine.high %v1453, %v1469
        %v1521 = vunpack.c.l.s4 1934713408
        %v1522 = vunpack.c.0.s8 %v1521
        %v1523 = vlaneseq
        %v1524 = vshrl.u32 %v1523, 7
        %v1525 = vsub.s32 %v1522, %v1524
        %v1526 = vrot.slane %v1518, %v1525
        %v1528 = vunpack.c.l.s4 1934713408
        %v1529 = vunpack.c.0.s8 %v1528
        %v1530 = vlaneseq
        %v1531 = vshrl.u32 %v1530, 7
        %v1532 = vsub.s32 %v1529, %v1531
        %v1533 = vrot.slane %v1519, %v1532
        %v1534 = vcombine.low %v1478, %v1494
        %v1535 = vcombine.high %v1478, %v1494
        %v1537 = vunpack.c.l.s4 1934713408
        %v1538 = vunpack.c.0.s8 %v1537
        %v1539 = vlaneseq
        %v1540 = vshrl.u32 %v1539, 7
        %v1541 = vsub.s32 %v1538, %v1540
        %v1542 = vrot.slane %v1534, %v1541
        %v1544 = vunpack.c.l.s4 1934713408
        %v1545 = vunpack.c.0.s8 %v1544
        %v1546 = vlaneseq
        %v1547 = vshrl.u32 %v1546, 7
        %v1548 = vsub.s32 %v1545, %v1547
        %v1549 = vrot.slane %v1535, %v1548
        %v1550 = vcombine.low %v1485, %v1501
        %v1551 = vcombine.high %v1485, %v1501
        %v1553 = vunpack.c.l.s4 1934713408
        %v1554 = vunpack.c.0.s8 %v1553
        %v1555 = vlaneseq
        %v1556 = vshrl.u32 %v1555, 7
        %v1557 = vsub.s32 %v1554, %v1556
        %v1558 = vrot.slane %v1550, %v1557
        %v1560 = vunpack.c.l.s4 1934713408
        %v1561 = vunpack.c.0.s8 %v1560
        %v1562 = vlaneseq
        %v1563 = vshrl.u32 %v1562, 7
        %v1564 = vsub.s32 %v1561, %v1563
        %v1565 = vrot.slane %v1551, %v1564
        %v1566 = vcombine.low %v1510, %v1542
        %v1567 = vcombine.high %v1510, %v1542
        %v1568 = vcombine.low %v1517, %v1549
        %v1569 = vcombine.high %v1517, %v1549
        %v1570 = vcombine.low %v1526, %v1558
        %v1571 = vcombine.high %v1526, %v1558
        %v1572 = vcombine.low %v1533, %v1565
        %v1573 = vcombine.high %v1533, %v1565
        %v1574 = vcombine.low %v895, %v1008
        %v1575 = vcombine.high %v895, %v1008
        %v1577 = vunpack.c.l.s4 1983009808
        %v1578 = vunpack.c.0.s8 %v1577
        %v1579 = vlaneseq
        %v1580 = vshrl.u32 %v1579, 7
        %v1581 = vsub.s32 %v1578, %v1580
        %v1582 = vrot.slane %v1574, %v1581
        %v1584 = vunpack.c.l.s4 1983009808
        %v1585 = vunpack.c.0.s8 %v1584
        %v1586 = vlaneseq
        %v1587 = vshrl.u32 %v1586, 7
        %v1588 = vsub.s32 %v1585, %v1587
        %v1589 = vrot.slane %v1575, %v1588
        %v1590 = vcombine.low %v897, %v1010
        %v1591 = vcombine.high %v897, %v1010
        %v1593 = vunpack.c.l.s4 1983009808
        %v1594 = vunpack.c.0.s8 %v1593
        %v1595 = vlaneseq
        %v1596 = vshrl.u32 %v1595, 7
        %v1597 = vsub.s32 %v1594, %v1596
        %v1598 = vrot.slane %v1590, %v1597
        %v1600 = vunpack.c.l.s4 1983009808
        %v1601 = vunpack.c.0.s8 %v1600
        %v1602 = vlaneseq
        %v1603 = vshrl.u32 %v1602, 7
        %v1604 = vsub.s32 %v1601, %v1603
        %v1605 = vrot.slane %v1591, %v1604
        %v1606 = vcombine.low %v1121, %v1234
        %v1607 = vcombine.high %v1121, %v1234
        %v1609 = vunpack.c.l.s4 1983009808
        %v1610 = vunpack.c.0.s8 %v1609
        %v1611 = vlaneseq
        %v1612 = vshrl.u32 %v1611, 7
        %v1613 = vsub.s32 %v1610, %v1612
        %v1614 = vrot.slane %v1606, %v1613
        %v1616 = vunpack.c.l.s4 1983009808
        %v1617 = vunpack.c.0.s8 %v1616
        %v1618 = vlaneseq
        %v1619 = vshrl.u32 %v1618, 7
        %v1620 = vsub.s32 %v1617, %v1619
        %v1621 = vrot.slane %v1607, %v1620
        %v1622 = vcombine.low %v1123, %v1236
        %v1623 = vcombine.high %v1123, %v1236
        %v1625 = vunpack.c.l.s4 1983009808
        %v1626 = vunpack.c.0.s8 %v1625
        %v1627 = vlaneseq
        %v1628 = vshrl.u32 %v1627, 7
        %v1629 = vsub.s32 %v1626, %v1628
        %v1630 = vrot.slane %v1622, %v1629
        %v1632 = vunpack.c.l.s4 1983009808
        %v1633 = vunpack.c.0.s8 %v1632
        %v1634 = vlaneseq
        %v1635 = vshrl.u32 %v1634, 7
        %v1636 = vsub.s32 %v1633, %v1635
        %v1637 = vrot.slane %v1623, %v1636
        %v1638 = vcombine.low %v1582, %v1598
        %v1639 = vcombine.high %v1582, %v1598
        %v1641 = vunpack.c.l.s4 1934713408
        %v1642 = vunpack.c.0.s8 %v1641
        %v1643 = vlaneseq
        %v1644 = vshrl.u32 %v1643, 7
        %v1645 = vsub.s32 %v1642, %v1644
        %v1646 = vrot.slane %v1638, %v1645
        %v1648 = vunpack.c.l.s4 1934713408
        %v1649 = vunpack.c.0.s8 %v1648
        %v1650 = vlaneseq
        %v1651 = vshrl.u32 %v1650, 7
        %v1652 = vsub.s32 %v1649, %v1651
        %v1653 = vrot.slane %v1639, %v1652
        %v1654 = vcombine.low %v1589, %v1605
        %v1655 = vcombine.high %v1589, %v1605
        %v1657 = vunpack.c.l.s4 1934713408
        %v1658 = vunpack.c.0.s8 %v1657
        %v1659 = vlaneseq
        %v1660 = vshrl.u32 %v1659, 7
        %v1661 = vsub.s32 %v1658, %v1660
        %v1662 = vrot.slane %v1654, %v1661
        %v1664 = vunpack.c.l.s4 1934713408
        %v1665 = vunpack.c.0.s8 %v1664
        %v1666 = vlaneseq
        %v1667 = vshrl.u32 %v1666, 7
        %v1668 = vsub.s32 %v1665, %v1667
        %v1669 = vrot.slane %v1655, %v1668
        %v1670 = vcombine.low %v1614, %v1630
        %v1671 = vcombine.high %v1614, %v1630
        %v1673 = vunpack.c.l.s4 1934713408
        %v1674 = vunpack.c.0.s8 %v1673
        %v1675 = vlaneseq
        %v1676 = vshrl.u32 %v1675, 7
        %v1677 = vsub.s32 %v1674, %v1676
        %v1678 = vrot.slane %v1670, %v1677
        %v1680 = vunpack.c.l.s4 1934713408
        %v1681 = vunpack.c.0.s8 %v1680
        %v1682 = vlaneseq
        %v1683 = vshrl.u32 %v1682, 7
        %v1684 = vsub.s32 %v1681, %v1683
        %v1685 = vrot.slane %v1671, %v1684
        %v1686 = vcombine.low %v1621, %v1637
        %v1687 = vcombine.high %v1621, %v1637
        %v1689 = vunpack.c.l.s4 1934713408
        %v1690 = vunpack.c.0.s8 %v1689
        %v1691 = vlaneseq
        %v1692 = vshrl.u32 %v1691, 7
        %v1693 = vsub.s32 %v1690, %v1692
        %v1694 = vrot.slane %v1686, %v1693
        %v1696 = vunpack.c.l.s4 1934713408
        %v1697 = vunpack.c.0.s8 %v1696
        %v1698 = vlaneseq
        %v1699 = vshrl.u32 %v1698, 7
        %v1700 = vsub.s32 %v1697, %v1699
        %v1701 = vrot.slane %v1687, %v1700
        %v1702 = vcombine.low %v1646, %v1678
        %v1703 = vcombine.high %v1646, %v1678
        %v1704 = vcombine.low %v1653, %v1685
        %v1705 = vcombine.high %v1653, %v1685
        %v1706 = vcombine.low %v1662, %v1694
        %v1707 = vcombine.high %v1662, %v1694
        %v1708 = vcombine.low %v1669, %v1701
        %v1709 = vcombine.high %v1669, %v1701
        %v1710 = vcombine.low %v899, %v1012
        %v1711 = vcombine.high %v899, %v1012
        %v1713 = vunpack.c.l.s4 1983009808
        %v1714 = vunpack.c.0.s8 %v1713
        %v1715 = vlaneseq
        %v1716 = vshrl.u32 %v1715, 7
        %v1717 = vsub.s32 %v1714, %v1716
        %v1718 = vrot.slane %v1710, %v1717
        %v1720 = vunpack.c.l.s4 1983009808
        %v1721 = vunpack.c.0.s8 %v1720
        %v1722 = vlaneseq
        %v1723 = vshrl.u32 %v1722, 7
        %v1724 = vsub.s32 %v1721, %v1723
        %v1725 = vrot.slane %v1711, %v1724
        %v1726 = vcombine.low %v901, %v1014
        %v1727 = vcombine.high %v901, %v1014
        %v1729 = vunpack.c.l.s4 1983009808
        %v1730 = vunpack.c.0.s8 %v1729
        %v1731 = vlaneseq
        %v1732 = vshrl.u32 %v1731, 7
        %v1733 = vsub.s32 %v1730, %v1732
        %v1734 = vrot.slane %v1726, %v1733
        %v1736 = vunpack.c.l.s4 1983009808
        %v1737 = vunpack.c.0.s8 %v1736
        %v1738 = vlaneseq
        %v1739 = vshrl.u32 %v1738, 7
        %v1740 = vsub.s32 %v1737, %v1739
        %v1741 = vrot.slane %v1727, %v1740
        %v1742 = vcombine.low %v1125, %v1238
        %v1743 = vcombine.high %v1125, %v1238
        %v1745 = vunpack.c.l.s4 1983009808
        %v1746 = vunpack.c.0.s8 %v1745
        %v1747 = vlaneseq
        %v1748 = vshrl.u32 %v1747, 7
        %v1749 = vsub.s32 %v1746, %v1748
        %v1750 = vrot.slane %v1742, %v1749
        %v1752 = vunpack.c.l.s4 1983009808
        %v1753 = vunpack.c.0.s8 %v1752
        %v1754 = vlaneseq
        %v1755 = vshrl.u32 %v1754, 7
        %v1756 = vsub.s32 %v1753, %v1755
        %v1757 = vrot.slane %v1743, %v1756
        %v1758 = vcombine.low %v1127, %v1240
        %v1759 = vcombine.high %v1127, %v1240
        %v1761 = vunpack.c.l.s4 1983009808
        %v1762 = vunpack.c.0.s8 %v1761
        %v1763 = vlaneseq
        %v1764 = vshrl.u32 %v1763, 7
        %v1765 = vsub.s32 %v1762, %v1764
        %v1766 = vrot.slane %v1758, %v1765
        %v1768 = vunpack.c.l.s4 1983009808
        %v1769 = vunpack.c.0.s8 %v1768
        %v1770 = vlaneseq
        %v1771 = vshrl.u32 %v1770, 7
        %v1772 = vsub.s32 %v1769, %v1771
        %v1773 = vrot.slane %v1759, %v1772
        %v1774 = vcombine.low %v1718, %v1734
        %v1775 = vcombine.high %v1718, %v1734
        %v1777 = vunpack.c.l.s4 1934713408
        %v1778 = vunpack.c.0.s8 %v1777
        %v1779 = vlaneseq
        %v1780 = vshrl.u32 %v1779, 7
        %v1781 = vsub.s32 %v1778, %v1780
        %v1782 = vrot.slane %v1774, %v1781
        %v1784 = vunpack.c.l.s4 1934713408
        %v1785 = vunpack.c.0.s8 %v1784
        %v1786 = vlaneseq
        %v1787 = vshrl.u32 %v1786, 7
        %v1788 = vsub.s32 %v1785, %v1787
        %v1789 = vrot.slane %v1775, %v1788
        %v1790 = vcombine.low %v1725, %v1741
        %v1791 = vcombine.high %v1725, %v1741
        %v1793 = vunpack.c.l.s4 1934713408
        %v1794 = vunpack.c.0.s8 %v1793
        %v1795 = vlaneseq
        %v1796 = vshrl.u32 %v1795, 7
        %v1797 = vsub.s32 %v1794, %v1796
        %v1798 = vrot.slane %v1790, %v1797
        %v1800 = vunpack.c.l.s4 1934713408
        %v1801 = vunpack.c.0.s8 %v1800
        %v1802 = vlaneseq
        %v1803 = vshrl.u32 %v1802, 7
        %v1804 = vsub.s32 %v1801, %v1803
        %v1805 = vrot.slane %v1791, %v1804
        %v1806 = vcombine.low %v1750, %v1766
        %v1807 = vcombine.high %v1750, %v1766
        %v1809 = vunpack.c.l.s4 1934713408
        %v1810 = vunpack.c.0.s8 %v1809
        %v1811 = vlaneseq
        %v1812 = vshrl.u32 %v1811, 7
        %v1813 = vsub.s32 %v1810, %v1812
        %v1814 = vrot.slane %v1806, %v1813
        %v1816 = vunpack.c.l.s4 1934713408
        %v1817 = vunpack.c.0.s8 %v1816
        %v1818 = vlaneseq
        %v1819 = vshrl.u32 %v1818, 7
        %v1820 = vsub.s32 %v1817, %v1819
        %v1821 = vrot.slane %v1807, %v1820
        %v1822 = vcombine.low %v1757, %v1773
        %v1823 = vcombine.high %v1757, %v1773
        %v1825 = vunpack.c.l.s4 1934713408
        %v1826 = vunpack.c.0.s8 %v1825
        %v1827 = vlaneseq
        %v1828 = vshrl.u32 %v1827, 7
        %v1829 = vsub.s32 %v1826, %v1828
        %v1830 = vrot.slane %v1822, %v1829
        %v1832 = vunpack.c.l.s4 1934713408
        %v1833 = vunpack.c.0.s8 %v1832
        %v1834 = vlaneseq
        %v1835 = vshrl.u32 %v1834, 7
        %v1836 = vsub.s32 %v1833, %v1835
        %v1837 = vrot.slane %v1823, %v1836
        %v1838 = vcombine.low %v1782, %v1814
        %v1839 = vcombine.high %v1782, %v1814
        %v1840 = vcombine.low %v1789, %v1821
        %v1841 = vcombine.high %v1789, %v1821
        %v1842 = vcombine.low %v1798, %v1830
        %v1843 = vcombine.high %v1798, %v1830
        %v1844 = vcombine.low %v1805, %v1837
        %v1845 = vcombine.high %v1805, %v1837
        %v1846 = vcombine.low %v905, %v1018
        %v1847 = vcombine.high %v905, %v1018
        %v1849 = vunpack.c.l.s4 1983009808
        %v1850 = vunpack.c.0.s8 %v1849
        %v1851 = vlaneseq
        %v1852 = vshrl.u32 %v1851, 7
        %v1853 = vsub.s32 %v1850, %v1852
        %v1854 = vrot.slane %v1846, %v1853
        %v1856 = vunpack.c.l.s4 1983009808
        %v1857 = vunpack.c.0.s8 %v1856
        %v1858 = vlaneseq
        %v1859 = vshrl.u32 %v1858, 7
        %v1860 = vsub.s32 %v1857, %v1859
        %v1861 = vrot.slane %v1847, %v1860
        %v1862 = vcombine.low %v907, %v1020
        %v1863 = vcombine.high %v907, %v1020
        %v1865 = vunpack.c.l.s4 1983009808
        %v1866 = vunpack.c.0.s8 %v1865
        %v1867 = vlaneseq
        %v1868 = vshrl.u32 %v1867, 7
        %v1869 = vsub.s32 %v1866, %v1868
        %v1870 = vrot.slane %v1862, %v1869
        %v1872 = vunpack.c.l.s4 1983009808
        %v1873 = vunpack.c.0.s8 %v1872
        %v1874 = vlaneseq
        %v1875 = vshrl.u32 %v1874, 7
        %v1876 = vsub.s32 %v1873, %v1875
        %v1877 = vrot.slane %v1863, %v1876
        %v1878 = vcombine.low %v1131, %v1244
        %v1879 = vcombine.high %v1131, %v1244
        %v1881 = vunpack.c.l.s4 1983009808
        %v1882 = vunpack.c.0.s8 %v1881
        %v1883 = vlaneseq
        %v1884 = vshrl.u32 %v1883, 7
        %v1885 = vsub.s32 %v1882, %v1884
        %v1886 = vrot.slane %v1878, %v1885
        %v1888 = vunpack.c.l.s4 1983009808
        %v1889 = vunpack.c.0.s8 %v1888
        %v1890 = vlaneseq
        %v1891 = vshrl.u32 %v1890, 7
        %v1892 = vsub.s32 %v1889, %v1891
        %v1893 = vrot.slane %v1879, %v1892
        %v1894 = vcombine.low %v1133, %v1246
        %v1895 = vcombine.high %v1133, %v1246
        %v1897 = vunpack.c.l.s4 1983009808
        %v1898 = vunpack.c.0.s8 %v1897
        %v1899 = vlaneseq
        %v1900 = vshrl.u32 %v1899, 7
        %v1901 = vsub.s32 %v1898, %v1900
        %v1902 = vrot.slane %v1894, %v1901
        %v1904 = vunpack.c.l.s4 1983009808
        %v1905 = vunpack.c.0.s8 %v1904
        %v1906 = vlaneseq
        %v1907 = vshrl.u32 %v1906, 7
        %v1908 = vsub.s32 %v1905, %v1907
        %v1909 = vrot.slane %v1895, %v1908
        %v1910 = vcombine.low %v1854, %v1870
        %v1911 = vcombine.high %v1854, %v1870
        %v1913 = vunpack.c.l.s4 1934713408
        %v1914 = vunpack.c.0.s8 %v1913
        %v1915 = vlaneseq
        %v1916 = vshrl.u32 %v1915, 7
        %v1917 = vsub.s32 %v1914, %v1916
        %v1918 = vrot.slane %v1910, %v1917
        %v1920 = vunpack.c.l.s4 1934713408
        %v1921 = vunpack.c.0.s8 %v1920
        %v1922 = vlaneseq
        %v1923 = vshrl.u32 %v1922, 7
        %v1924 = vsub.s32 %v1921, %v1923
        %v1925 = vrot.slane %v1911, %v1924
        %v1926 = vcombine.low %v1861, %v1877
        %v1927 = vcombine.high %v1861, %v1877
        %v1929 = vunpack.c.l.s4 1934713408
        %v1930 = vunpack.c.0.s8 %v1929
        %v1931 = vlaneseq
        %v1932 = vshrl.u32 %v1931, 7
        %v1933 = vsub.s32 %v1930, %v1932
        %v1934 = vrot.slane %v1926, %v1933
        %v1936 = vunpack.c.l.s4 1934713408
        %v1937 = vunpack.c.0.s8 %v1936
        %v1938 = vlaneseq
        %v1939 = vshrl.u32 %v1938, 7
        %v1940 = vsub.s32 %v1937, %v1939
        %v1941 = vrot.slane %v1927, %v1940
        %v1942 = vcombine.low %v1886, %v1902
        %v1943 = vcombine.high %v1886, %v1902
        %v1945 = vunpack.c.l.s4 1934713408
        %v1946 = vunpack.c.0.s8 %v1945
        %v1947 = vlaneseq
        %v1948 = vshrl.u32 %v1947, 7
        %v1949 = vsub.s32 %v1946, %v1948
        %v1950 = vrot.slane %v1942, %v1949
        %v1952 = vunpack.c.l.s4 1934713408
        %v1953 = vunpack.c.0.s8 %v1952
        %v1954 = vlaneseq
        %v1955 = vshrl.u32 %v1954, 7
        %v1956 = vsub.s32 %v1953, %v1955
        %v1957 = vrot.slane %v1943, %v1956
        %v1958 = vcombine.low %v1893, %v1909
        %v1959 = vcombine.high %v1893, %v1909
        %v1961 = vunpack.c.l.s4 1934713408
        %v1962 = vunpack.c.0.s8 %v1961
        %v1963 = vlaneseq
        %v1964 = vshrl.u32 %v1963, 7
        %v1965 = vsub.s32 %v1962, %v1964
        %v1966 = vrot.slane %v1958, %v1965
        %v1968 = vunpack.c.l.s4 1934713408
        %v1969 = vunpack.c.0.s8 %v1968
        %v1970 = vlaneseq
        %v1971 = vshrl.u32 %v1970, 7
        %v1972 = vsub.s32 %v1969, %v1971
        %v1973 = vrot.slane %v1959, %v1972
        %v1974 = vcombine.low %v1918, %v1950
        %v1975 = vcombine.high %v1918, %v1950
        %v1976 = vcombine.low %v1925, %v1957
        %v1977 = vcombine.high %v1925, %v1957
        %v1978 = vcombine.low %v1934, %v1966
        %v1979 = vcombine.high %v1934, %v1966
        %v1980 = vcombine.low %v1941, %v1973
        %v1981 = vcombine.high %v1941, %v1973
        %v1982 = vcombine.low %v909, %v1022
        %v1983 = vcombine.high %v909, %v1022
        %v1985 = vunpack.c.l.s4 1983009808
        %v1986 = vunpack.c.0.s8 %v1985
        %v1987 = vlaneseq
        %v1988 = vshrl.u32 %v1987, 7
        %v1989 = vsub.s32 %v1986, %v1988
        %v1990 = vrot.slane %v1982, %v1989
        %v1992 = vunpack.c.l.s4 1983009808
        %v1993 = vunpack.c.0.s8 %v1992
        %v1994 = vlaneseq
        %v1995 = vshrl.u32 %v1994, 7
        %v1996 = vsub.s32 %v1993, %v1995
        %v1997 = vrot.slane %v1983, %v1996
        %v1998 = vcombine.low %v911, %v1024
        %v1999 = vcombine.high %v911, %v1024
        %v2001 = vunpack.c.l.s4 1983009808
        %v2002 = vunpack.c.0.s8 %v2001
        %v2003 = vlaneseq
        %v2004 = vshrl.u32 %v2003, 7
        %v2005 = vsub.s32 %v2002, %v2004
        %v2006 = vrot.slane %v1998, %v2005
        %v2008 = vunpack.c.l.s4 1983009808
        %v2009 = vunpack.c.0.s8 %v2008
        %v2010 = vlaneseq
        %v2011 = vshrl.u32 %v2010, 7
        %v2012 = vsub.s32 %v2009, %v2011
        %v2013 = vrot.slane %v1999, %v2012
        %v2014 = vcombine.low %v1135, %v1248
        %v2015 = vcombine.high %v1135, %v1248
        %v2017 = vunpack.c.l.s4 1983009808
        %v2018 = vunpack.c.0.s8 %v2017
        %v2019 = vlaneseq
        %v2020 = vshrl.u32 %v2019, 7
        %v2021 = vsub.s32 %v2018, %v2020
        %v2022 = vrot.slane %v2014, %v2021
        %v2024 = vunpack.c.l.s4 1983009808
        %v2025 = vunpack.c.0.s8 %v2024
        %v2026 = vlaneseq
        %v2027 = vshrl.u32 %v2026, 7
        %v2028 = vsub.s32 %v2025, %v2027
        %v2029 = vrot.slane %v2015, %v2028
        %v2030 = vcombine.low %v1137, %v1250
        %v2031 = vcombine.high %v1137, %v1250
        %v2033 = vunpack.c.l.s4 1983009808
        %v2034 = vunpack.c.0.s8 %v2033
        %v2035 = vlaneseq
        %v2036 = vshrl.u32 %v2035, 7
        %v2037 = vsub.s32 %v2034, %v2036
        %v2038 = vrot.slane %v2030, %v2037
        %v2040 = vunpack.c.l.s4 1983009808
        %v2041 = vunpack.c.0.s8 %v2040
        %v2042 = vlaneseq
        %v2043 = vshrl.u32 %v2042, 7
        %v2044 = vsub.s32 %v2041, %v2043
        %v2045 = vrot.slane %v2031, %v2044
        %v2046 = vcombine.low %v1990, %v2006
        %v2047 = vcombine.high %v1990, %v2006
        %v2049 = vunpack.c.l.s4 1934713408
        %v2050 = vunpack.c.0.s8 %v2049
        %v2051 = vlaneseq
        %v2052 = vshrl.u32 %v2051, 7
        %v2053 = vsub.s32 %v2050, %v2052
        %v2054 = vrot.slane %v2046, %v2053
        %v2056 = vunpack.c.l.s4 1934713408
        %v2057 = vunpack.c.0.s8 %v2056
        %v2058 = vlaneseq
        %v2059 = vshrl.u32 %v2058, 7
        %v2060 = vsub.s32 %v2057, %v2059
        %v2061 = vrot.slane %v2047, %v2060
        %v2062 = vcombine.low %v1997, %v2013
        %v2063 = vcombine.high %v1997, %v2013
        %v2065 = vunpack.c.l.s4 1934713408
        %v2066 = vunpack.c.0.s8 %v2065
        %v2067 = vlaneseq
        %v2068 = vshrl.u32 %v2067, 7
        %v2069 = vsub.s32 %v2066, %v2068
        %v2070 = vrot.slane %v2062, %v2069
        %v2072 = vunpack.c.l.s4 1934713408
        %v2073 = vunpack.c.0.s8 %v2072
        %v2074 = vlaneseq
        %v2075 = vshrl.u32 %v2074, 7
        %v2076 = vsub.s32 %v2073, %v2075
        %v2077 = vrot.slane %v2063, %v2076
        %v2078 = vcombine.low %v2022, %v2038
        %v2079 = vcombine.high %v2022, %v2038
        %v2081 = vunpack.c.l.s4 1934713408
        %v2082 = vunpack.c.0.s8 %v2081
        %v2083 = vlaneseq
        %v2084 = vshrl.u32 %v2083, 7
        %v2085 = vsub.s32 %v2082, %v2084
        %v2086 = vrot.slane %v2078, %v2085
        %v2088 = vunpack.c.l.s4 1934713408
        %v2089 = vunpack.c.0.s8 %v2088
        %v2090 = vlaneseq
        %v2091 = vshrl.u32 %v2090, 7
        %v2092 = vsub.s32 %v2089, %v2091
        %v2093 = vrot.slane %v2079, %v2092
        %v2094 = vcombine.low %v2029, %v2045
        %v2095 = vcombine.high %v2029, %v2045
        %v2097 = vunpack.c.l.s4 1934713408
        %v2098 = vunpack.c.0.s8 %v2097
        %v2099 = vlaneseq
        %v2100 = vshrl.u32 %v2099, 7
        %v2101 = vsub.s32 %v2098, %v2100
        %v2102 = vrot.slane %v2094, %v2101
        %v2104 = vunpack.c.l.s4 1934713408
        %v2105 = vunpack.c.0.s8 %v2104
        %v2106 = vlaneseq
        %v2107 = vshrl.u32 %v2106, 7
        %v2108 = vsub.s32 %v2105, %v2107
        %v2109 = vrot.slane %v2095, %v2108
        %v2110 = vcombine.low %v2054, %v2086
        %v2111 = vcombine.high %v2054, %v2086
        %v2112 = vcombine.low %v2061, %v2093
        %v2113 = vcombine.high %v2061, %v2093
        %v2114 = vcombine.low %v2070, %v2102
        %v2115 = vcombine.high %v2070, %v2102
        %v2116 = vcombine.low %v2077, %v2109
        %v2117 = vcombine.high %v2077, %v2109
        %v2118 = vcombine.low %v915, %v1028
        %v2119 = vcombine.high %v915, %v1028
        %v2121 = vunpack.c.l.s4 1983009808
        %v2122 = vunpack.c.0.s8 %v2121
        %v2123 = vlaneseq
        %v2124 = vshrl.u32 %v2123, 7
        %v2125 = vsub.s32 %v2122, %v2124
        %v2126 = vrot.slane %v2118, %v2125
        %v2128 = vunpack.c.l.s4 1983009808
        %v2129 = vunpack.c.0.s8 %v2128
        %v2130 = vlaneseq
        %v2131 = vshrl.u32 %v2130, 7
        %v2132 = vsub.s32 %v2129, %v2131
        %v2133 = vrot.slane %v2119, %v2132
        %v2134 = vcombine.low %v917, %v1030
        %v2135 = vcombine.high %v917, %v1030
        %v2137 = vunpack.c.l.s4 1983009808
        %v2138 = vunpack.c.0.s8 %v2137
        %v2139 = vlaneseq
        %v2140 = vshrl.u32 %v2139, 7
        %v2141 = vsub.s32 %v2138, %v2140
        %v2142 = vrot.slane %v2134, %v2141
        %v2144 = vunpack.c.l.s4 1983009808
        %v2145 = vunpack.c.0.s8 %v2144
        %v2146 = vlaneseq
        %v2147 = vshrl.u32 %v2146, 7
        %v2148 = vsub.s32 %v2145, %v2147
        %v2149 = vrot.slane %v2135, %v2148
        %v2150 = vcombine.low %v1141, %v1254
        %v2151 = vcombine.high %v1141, %v1254
        %v2153 = vunpack.c.l.s4 1983009808
        %v2154 = vunpack.c.0.s8 %v2153
        %v2155 = vlaneseq
        %v2156 = vshrl.u32 %v2155, 7
        %v2157 = vsub.s32 %v2154, %v2156
        %v2158 = vrot.slane %v2150, %v2157
        %v2160 = vunpack.c.l.s4 1983009808
        %v2161 = vunpack.c.0.s8 %v2160
        %v2162 = vlaneseq
        %v2163 = vshrl.u32 %v2162, 7
        %v2164 = vsub.s32 %v2161, %v2163
        %v2165 = vrot.slane %v2151, %v2164
        %v2166 = vcombine.low %v1143, %v1256
        %v2167 = vcombine.high %v1143, %v1256
        %v2169 = vunpack.c.l.s4 1983009808
        %v2170 = vunpack.c.0.s8 %v2169
        %v2171 = vlaneseq
        %v2172 = vshrl.u32 %v2171, 7
        %v2173 = vsub.s32 %v2170, %v2172
        %v2174 = vrot.slane %v2166, %v2173
        %v2176 = vunpack.c.l.s4 1983009808
        %v2177 = vunpack.c.0.s8 %v2176
        %v2178 = vlaneseq
        %v2179 = vshrl.u32 %v2178, 7
        %v2180 = vsub.s32 %v2177, %v2179
        %v2181 = vrot.slane %v2167, %v2180
        %v2182 = vcombine.low %v2126, %v2142
        %v2183 = vcombine.high %v2126, %v2142
        %v2185 = vunpack.c.l.s4 1934713408
        %v2186 = vunpack.c.0.s8 %v2185
        %v2187 = vlaneseq
        %v2188 = vshrl.u32 %v2187, 7
        %v2189 = vsub.s32 %v2186, %v2188
        %v2190 = vrot.slane %v2182, %v2189
        %v2192 = vunpack.c.l.s4 1934713408
        %v2193 = vunpack.c.0.s8 %v2192
        %v2194 = vlaneseq
        %v2195 = vshrl.u32 %v2194, 7
        %v2196 = vsub.s32 %v2193, %v2195
        %v2197 = vrot.slane %v2183, %v2196
        %v2198 = vcombine.low %v2133, %v2149
        %v2199 = vcombine.high %v2133, %v2149
        %v2201 = vunpack.c.l.s4 1934713408
        %v2202 = vunpack.c.0.s8 %v2201
        %v2203 = vlaneseq
        %v2204 = vshrl.u32 %v2203, 7
        %v2205 = vsub.s32 %v2202, %v2204
        %v2206 = vrot.slane %v2198, %v2205
        %v2208 = vunpack.c.l.s4 1934713408
        %v2209 = vunpack.c.0.s8 %v2208
        %v2210 = vlaneseq
        %v2211 = vshrl.u32 %v2210, 7
        %v2212 = vsub.s32 %v2209, %v2211
        %v2213 = vrot.slane %v2199, %v2212
        %v2214 = vcombine.low %v2158, %v2174
        %v2215 = vcombine.high %v2158, %v2174
        %v2217 = vunpack.c.l.s4 1934713408
        %v2218 = vunpack.c.0.s8 %v2217
        %v2219 = vlaneseq
        %v2220 = vshrl.u32 %v2219, 7
        %v2221 = vsub.s32 %v2218, %v2220
        %v2222 = vrot.slane %v2214, %v2221
        %v2224 = vunpack.c.l.s4 1934713408
        %v2225 = vunpack.c.0.s8 %v2224
        %v2226 = vlaneseq
        %v2227 = vshrl.u32 %v2226, 7
        %v2228 = vsub.s32 %v2225, %v2227
        %v2229 = vrot.slane %v2215, %v2228
        %v2230 = vcombine.low %v2165, %v2181
        %v2231 = vcombine.high %v2165, %v2181
        %v2233 = vunpack.c.l.s4 1934713408
        %v2234 = vunpack.c.0.s8 %v2233
        %v2235 = vlaneseq
        %v2236 = vshrl.u32 %v2235, 7
        %v2237 = vsub.s32 %v2234, %v2236
        %v2238 = vrot.slane %v2230, %v2237
        %v2240 = vunpack.c.l.s4 1934713408
        %v2241 = vunpack.c.0.s8 %v2240
        %v2242 = vlaneseq
        %v2243 = vshrl.u32 %v2242, 7
        %v2244 = vsub.s32 %v2241, %v2243
        %v2245 = vrot.slane %v2231, %v2244
        %v2246 = vcombine.low %v2190, %v2222
        %v2247 = vcombine.high %v2190, %v2222
        %v2248 = vcombine.low %v2197, %v2229
        %v2249 = vcombine.high %v2197, %v2229
        %v2250 = vcombine.low %v2206, %v2238
        %v2251 = vcombine.high %v2206, %v2238
        %v2252 = vcombine.low %v2213, %v2245
        %v2253 = vcombine.high %v2213, %v2245
        %v2254 = vcombine.low %v919, %v1032
        %v2255 = vcombine.high %v919, %v1032
        %v2257 = vunpack.c.l.s4 1983009808
        %v2258 = vunpack.c.0.s8 %v2257
        %v2259 = vlaneseq
        %v2260 = vshrl.u32 %v2259, 7
        %v2261 = vsub.s32 %v2258, %v2260
        %v2262 = vrot.slane %v2254, %v2261
        %v2264 = vunpack.c.l.s4 1983009808
        %v2265 = vunpack.c.0.s8 %v2264
        %v2266 = vlaneseq
        %v2267 = vshrl.u32 %v2266, 7
        %v2268 = vsub.s32 %v2265, %v2267
        %v2269 = vrot.slane %v2255, %v2268
        %v2270 = vcombine.low %v921, %v1034
        %v2271 = vcombine.high %v921, %v1034
        %v2273 = vunpack.c.l.s4 1983009808
        %v2274 = vunpack.c.0.s8 %v2273
        %v2275 = vlaneseq
        %v2276 = vshrl.u32 %v2275, 7
        %v2277 = vsub.s32 %v2274, %v2276
        %v2278 = vrot.slane %v2270, %v2277
        %v2280 = vunpack.c.l.s4 1983009808
        %v2281 = vunpack.c.0.s8 %v2280
        %v2282 = vlaneseq
        %v2283 = vshrl.u32 %v2282, 7
        %v2284 = vsub.s32 %v2281, %v2283
        %v2285 = vrot.slane %v2271, %v2284
        %v2286 = vcombine.low %v1145, %v1258
        %v2287 = vcombine.high %v1145, %v1258
        %v2289 = vunpack.c.l.s4 1983009808
        %v2290 = vunpack.c.0.s8 %v2289
        %v2291 = vlaneseq
        %v2292 = vshrl.u32 %v2291, 7
        %v2293 = vsub.s32 %v2290, %v2292
        %v2294 = vrot.slane %v2286, %v2293
        %v2296 = vunpack.c.l.s4 1983009808
        %v2297 = vunpack.c.0.s8 %v2296
        %v2298 = vlaneseq
        %v2299 = vshrl.u32 %v2298, 7
        %v2300 = vsub.s32 %v2297, %v2299
        %v2301 = vrot.slane %v2287, %v2300
        %v2302 = vcombine.low %v1147, %v1260
        %v2303 = vcombine.high %v1147, %v1260
        %v2305 = vunpack.c.l.s4 1983009808
        %v2306 = vunpack.c.0.s8 %v2305
        %v2307 = vlaneseq
        %v2308 = vshrl.u32 %v2307, 7
        %v2309 = vsub.s32 %v2306, %v2308
        %v2310 = vrot.slane %v2302, %v2309
        %v2312 = vunpack.c.l.s4 1983009808
        %v2313 = vunpack.c.0.s8 %v2312
        %v2314 = vlaneseq
        %v2315 = vshrl.u32 %v2314, 7
        %v2316 = vsub.s32 %v2313, %v2315
        %v2317 = vrot.slane %v2303, %v2316
        %v2318 = vcombine.low %v2262, %v2278
        %v2319 = vcombine.high %v2262, %v2278
        %v2321 = vunpack.c.l.s4 1934713408
        %v2322 = vunpack.c.0.s8 %v2321
        %v2323 = vlaneseq
        %v2324 = vshrl.u32 %v2323, 7
        %v2325 = vsub.s32 %v2322, %v2324
        %v2326 = vrot.slane %v2318, %v2325
        %v2328 = vunpack.c.l.s4 1934713408
        %v2329 = vunpack.c.0.s8 %v2328
        %v2330 = vlaneseq
        %v2331 = vshrl.u32 %v2330, 7
        %v2332 = vsub.s32 %v2329, %v2331
        %v2333 = vrot.slane %v2319, %v2332
        %v2334 = vcombine.low %v2269, %v2285
        %v2335 = vcombine.high %v2269, %v2285
        %v2337 = vunpack.c.l.s4 1934713408
        %v2338 = vunpack.c.0.s8 %v2337
        %v2339 = vlaneseq
        %v2340 = vshrl.u32 %v2339, 7
        %v2341 = vsub.s32 %v2338, %v2340
        %v2342 = vrot.slane %v2334, %v2341
        %v2344 = vunpack.c.l.s4 1934713408
        %v2345 = vunpack.c.0.s8 %v2344
        %v2346 = vlaneseq
        %v2347 = vshrl.u32 %v2346, 7
        %v2348 = vsub.s32 %v2345, %v2347
        %v2349 = vrot.slane %v2335, %v2348
        %v2350 = vcombine.low %v2294, %v2310
        %v2351 = vcombine.high %v2294, %v2310
        %v2353 = vunpack.c.l.s4 1934713408
        %v2354 = vunpack.c.0.s8 %v2353
        %v2355 = vlaneseq
        %v2356 = vshrl.u32 %v2355, 7
        %v2357 = vsub.s32 %v2354, %v2356
        %v2358 = vrot.slane %v2350, %v2357
        %v2360 = vunpack.c.l.s4 1934713408
        %v2361 = vunpack.c.0.s8 %v2360
        %v2362 = vlaneseq
        %v2363 = vshrl.u32 %v2362, 7
        %v2364 = vsub.s32 %v2361, %v2363
        %v2365 = vrot.slane %v2351, %v2364
        %v2366 = vcombine.low %v2301, %v2317
        %v2367 = vcombine.high %v2301, %v2317
        %v2369 = vunpack.c.l.s4 1934713408
        %v2370 = vunpack.c.0.s8 %v2369
        %v2371 = vlaneseq
        %v2372 = vshrl.u32 %v2371, 7
        %v2373 = vsub.s32 %v2370, %v2372
        %v2374 = vrot.slane %v2366, %v2373
        %v2376 = vunpack.c.l.s4 1934713408
        %v2377 = vunpack.c.0.s8 %v2376
        %v2378 = vlaneseq
        %v2379 = vshrl.u32 %v2378, 7
        %v2380 = vsub.s32 %v2377, %v2379
        %v2381 = vrot.slane %v2367, %v2380
        %v2382 = vcombine.low %v2326, %v2358
        %v2383 = vcombine.high %v2326, %v2358
        %v2384 = vcombine.low %v2333, %v2365
        %v2385 = vcombine.high %v2333, %v2365
        %v2386 = vcombine.low %v2342, %v2374
        %v2387 = vcombine.high %v2342, %v2374
        %v2388 = vcombine.low %v2349, %v2381
        %v2389 = vcombine.high %v2349, %v2381
        %v2390 = vcombine.low %v925, %v1038
        %v2391 = vcombine.high %v925, %v1038
        %v2393 = vunpack.c.l.s4 1983009808
        %v2394 = vunpack.c.0.s8 %v2393
        %v2395 = vlaneseq
        %v2396 = vshrl.u32 %v2395, 7
        %v2397 = vsub.s32 %v2394, %v2396
        %v2398 = vrot.slane %v2390, %v2397
        %v2400 = vunpack.c.l.s4 1983009808
        %v2401 = vunpack.c.0.s8 %v2400
        %v2402 = vlaneseq
        %v2403 = vshrl.u32 %v2402, 7
        %v2404 = vsub.s32 %v2401, %v2403
        %v2405 = vrot.slane %v2391, %v2404
        %v2406 = vcombine.low %v927, %v1040
        %v2407 = vcombine.high %v927, %v1040
        %v2409 = vunpack.c.l.s4 1983009808
        %v2410 = vunpack.c.0.s8 %v2409
        %v2411 = vlaneseq
        %v2412 = vshrl.u32 %v2411, 7
        %v2413 = vsub.s32 %v2410, %v2412
        %v2414 = vrot.slane %v2406, %v2413
        %v2416 = vunpack.c.l.s4 1983009808
        %v2417 = vunpack.c.0.s8 %v2416
        %v2418 = vlaneseq
        %v2419 = vshrl.u32 %v2418, 7
        %v2420 = vsub.s32 %v2417, %v2419
        %v2421 = vrot.slane %v2407, %v2420
        %v2422 = vcombine.low %v1151, %v1264
        %v2423 = vcombine.high %v1151, %v1264
        %v2425 = vunpack.c.l.s4 1983009808
        %v2426 = vunpack.c.0.s8 %v2425
        %v2427 = vlaneseq
        %v2428 = vshrl.u32 %v2427, 7
        %v2429 = vsub.s32 %v2426, %v2428
        %v2430 = vrot.slane %v2422, %v2429
        %v2432 = vunpack.c.l.s4 1983009808
        %v2433 = vunpack.c.0.s8 %v2432
        %v2434 = vlaneseq
        %v2435 = vshrl.u32 %v2434, 7
        %v2436 = vsub.s32 %v2433, %v2435
        %v2437 = vrot.slane %v2423, %v2436
        %v2438 = vcombine.low %v1153, %v1266
        %v2439 = vcombine.high %v1153, %v1266
        %v2441 = vunpack.c.l.s4 1983009808
        %v2442 = vunpack.c.0.s8 %v2441
        %v2443 = vlaneseq
        %v2444 = vshrl.u32 %v2443, 7
        %v2445 = vsub.s32 %v2442, %v2444
        %v2446 = vrot.slane %v2438, %v2445
        %v2448 = vunpack.c.l.s4 1983009808
        %v2449 = vunpack.c.0.s8 %v2448
        %v2450 = vlaneseq
        %v2451 = vshrl.u32 %v2450, 7
        %v2452 = vsub.s32 %v2449, %v2451
        %v2453 = vrot.slane %v2439, %v2452
        %v2454 = vcombine.low %v2398, %v2414
        %v2455 = vcombine.high %v2398, %v2414
        %v2457 = vunpack.c.l.s4 1934713408
        %v2458 = vunpack.c.0.s8 %v2457
        %v2459 = vlaneseq
        %v2460 = vshrl.u32 %v2459, 7
        %v2461 = vsub.s32 %v2458, %v2460
        %v2462 = vrot.slane %v2454, %v2461
        %v2464 = vunpack.c.l.s4 1934713408
        %v2465 = vunpack.c.0.s8 %v2464
        %v2466 = vlaneseq
        %v2467 = vshrl.u32 %v2466, 7
        %v2468 = vsub.s32 %v2465, %v2467
        %v2469 = vrot.slane %v2455, %v2468
        %v2470 = vcombine.low %v2405, %v2421
        %v2471 = vcombine.high %v2405, %v2421
        %v2473 = vunpack.c.l.s4 1934713408
        %v2474 = vunpack.c.0.s8 %v2473
        %v2475 = vlaneseq
        %v2476 = vshrl.u32 %v2475, 7
        %v2477 = vsub.s32 %v2474, %v2476
        %v2478 = vrot.slane %v2470, %v2477
        %v2480 = vunpack.c.l.s4 1934713408
        %v2481 = vunpack.c.0.s8 %v2480
        %v2482 = vlaneseq
        %v2483 = vshrl.u32 %v2482, 7
        %v2484 = vsub.s32 %v2481, %v2483
        %v2485 = vrot.slane %v2471, %v2484
        %v2486 = vcombine.low %v2430, %v2446
        %v2487 = vcombine.high %v2430, %v2446
        %v2489 = vunpack.c.l.s4 1934713408
        %v2490 = vunpack.c.0.s8 %v2489
        %v2491 = vlaneseq
        %v2492 = vshrl.u32 %v2491, 7
        %v2493 = vsub.s32 %v2490, %v2492
        %v2494 = vrot.slane %v2486, %v2493
        %v2496 = vunpack.c.l.s4 1934713408
        %v2497 = vunpack.c.0.s8 %v2496
        %v2498 = vlaneseq
        %v2499 = vshrl.u32 %v2498, 7
        %v2500 = vsub.s32 %v2497, %v2499
        %v2501 = vrot.slane %v2487, %v2500
        %v2502 = vcombine.low %v2437, %v2453
        %v2503 = vcombine.high %v2437, %v2453
        %v2505 = vunpack.c.l.s4 1934713408
        %v2506 = vunpack.c.0.s8 %v2505
        %v2507 = vlaneseq
        %v2508 = vshrl.u32 %v2507, 7
        %v2509 = vsub.s32 %v2506, %v2508
        %v2510 = vrot.slane %v2502, %v2509
        %v2512 = vunpack.c.l.s4 1934713408
        %v2513 = vunpack.c.0.s8 %v2512
        %v2514 = vlaneseq
        %v2515 = vshrl.u32 %v2514, 7
        %v2516 = vsub.s32 %v2513, %v2515
        %v2517 = vrot.slane %v2503, %v2516
        %v2518 = vcombine.low %v2462, %v2494
        %v2519 = vcombine.high %v2462, %v2494
        %v2520 = vcombine.low %v2469, %v2501
        %v2521 = vcombine.high %v2469, %v2501
        %v2522 = vcombine.low %v2478, %v2510
        %v2523 = vcombine.high %v2478, %v2510
        %v2524 = vcombine.low %v2485, %v2517
        %v2525 = vcombine.high %v2485, %v2517
        %v2526 = vcombine.low %v929, %v1042
        %v2527 = vcombine.high %v929, %v1042
        %v2529 = vunpack.c.l.s4 1983009808
        %v2530 = vunpack.c.0.s8 %v2529
        %v2531 = vlaneseq
        %v2532 = vshrl.u32 %v2531, 7
        %v2533 = vsub.s32 %v2530, %v2532
        %v2534 = vrot.slane %v2526, %v2533
        %v2536 = vunpack.c.l.s4 1983009808
        %v2537 = vunpack.c.0.s8 %v2536
        %v2538 = vlaneseq
        %v2539 = vshrl.u32 %v2538, 7
        %v2540 = vsub.s32 %v2537, %v2539
        %v2541 = vrot.slane %v2527, %v2540
        %v2542 = vcombine.low %v931, %v1044
        %v2543 = vcombine.high %v931, %v1044
        %v2545 = vunpack.c.l.s4 1983009808
        %v2546 = vunpack.c.0.s8 %v2545
        %v2547 = vlaneseq
        %v2548 = vshrl.u32 %v2547, 7
        %v2549 = vsub.s32 %v2546, %v2548
        %v2550 = vrot.slane %v2542, %v2549
        %v2552 = vunpack.c.l.s4 1983009808
        %v2553 = vunpack.c.0.s8 %v2552
        %v2554 = vlaneseq
        %v2555 = vshrl.u32 %v2554, 7
        %v2556 = vsub.s32 %v2553, %v2555
        %v2557 = vrot.slane %v2543, %v2556
        %v2558 = vcombine.low %v1155, %v1268
        %v2559 = vcombine.high %v1155, %v1268
        %v2561 = vunpack.c.l.s4 1983009808
        %v2562 = vunpack.c.0.s8 %v2561
        %v2563 = vlaneseq
        %v2564 = vshrl.u32 %v2563, 7
        %v2565 = vsub.s32 %v2562, %v2564
        %v2566 = vrot.slane %v2558, %v2565
        %v2568 = vunpack.c.l.s4 1983009808
        %v2569 = vunpack.c.0.s8 %v2568
        %v2570 = vlaneseq
        %v2571 = vshrl.u32 %v2570, 7
        %v2572 = vsub.s32 %v2569, %v2571
        %v2573 = vrot.slane %v2559, %v2572
        %v2574 = vcombine.low %v1157, %v1270
        %v2575 = vcombine.high %v1157, %v1270
        %v2577 = vunpack.c.l.s4 1983009808
        %v2578 = vunpack.c.0.s8 %v2577
        %v2579 = vlaneseq
        %v2580 = vshrl.u32 %v2579, 7
        %v2581 = vsub.s32 %v2578, %v2580
        %v2582 = vrot.slane %v2574, %v2581
        %v2584 = vunpack.c.l.s4 1983009808
        %v2585 = vunpack.c.0.s8 %v2584
        %v2586 = vlaneseq
        %v2587 = vshrl.u32 %v2586, 7
        %v2588 = vsub.s32 %v2585, %v2587
        %v2589 = vrot.slane %v2575, %v2588
        %v2590 = vcombine.low %v2534, %v2550
        %v2591 = vcombine.high %v2534, %v2550
        %v2593 = vunpack.c.l.s4 1934713408
        %v2594 = vunpack.c.0.s8 %v2593
        %v2595 = vlaneseq
        %v2596 = vshrl.u32 %v2595, 7
        %v2597 = vsub.s32 %v2594, %v2596
        %v2598 = vrot.slane %v2590, %v2597
        %v2600 = vunpack.c.l.s4 1934713408
        %v2601 = vunpack.c.0.s8 %v2600
        %v2602 = vlaneseq
        %v2603 = vshrl.u32 %v2602, 7
        %v2604 = vsub.s32 %v2601, %v2603
        %v2605 = vrot.slane %v2591, %v2604
        %v2606 = vcombine.low %v2541, %v2557
        %v2607 = vcombine.high %v2541, %v2557
        %v2609 = vunpack.c.l.s4 1934713408
        %v2610 = vunpack.c.0.s8 %v2609
        %v2611 = vlaneseq
        %v2612 = vshrl.u32 %v2611, 7
        %v2613 = vsub.s32 %v2610, %v2612
        %v2614 = vrot.slane %v2606, %v2613
        %v2616 = vunpack.c.l.s4 1934713408
        %v2617 = vunpack.c.0.s8 %v2616
        %v2618 = vlaneseq
        %v2619 = vshrl.u32 %v2618, 7
        %v2620 = vsub.s32 %v2617, %v2619
        %v2621 = vrot.slane %v2607, %v2620
        %v2622 = vcombine.low %v2566, %v2582
        %v2623 = vcombine.high %v2566, %v2582
        %v2625 = vunpack.c.l.s4 1934713408
        %v2626 = vunpack.c.0.s8 %v2625
        %v2627 = vlaneseq
        %v2628 = vshrl.u32 %v2627, 7
        %v2629 = vsub.s32 %v2626, %v2628
        %v2630 = vrot.slane %v2622, %v2629
        %v2632 = vunpack.c.l.s4 1934713408
        %v2633 = vunpack.c.0.s8 %v2632
        %v2634 = vlaneseq
        %v2635 = vshrl.u32 %v2634, 7
        %v2636 = vsub.s32 %v2633, %v2635
        %v2637 = vrot.slane %v2623, %v2636
        %v2638 = vcombine.low %v2573, %v2589
        %v2639 = vcombine.high %v2573, %v2589
        %v2641 = vunpack.c.l.s4 1934713408
        %v2642 = vunpack.c.0.s8 %v2641
        %v2643 = vlaneseq
        %v2644 = vshrl.u32 %v2643, 7
        %v2645 = vsub.s32 %v2642, %v2644
        %v2646 = vrot.slane %v2638, %v2645
        %v2648 = vunpack.c.l.s4 1934713408
        %v2649 = vunpack.c.0.s8 %v2648
        %v2650 = vlaneseq
        %v2651 = vshrl.u32 %v2650, 7
        %v2652 = vsub.s32 %v2649, %v2651
        %v2653 = vrot.slane %v2639, %v2652
        %v2654 = vcombine.low %v2598, %v2630
        %v2655 = vcombine.high %v2598, %v2630
        %v2656 = vcombine.low %v2605, %v2637
        %v2657 = vcombine.high %v2605, %v2637
        %v2658 = vcombine.low %v2614, %v2646
        %v2659 = vcombine.high %v2614, %v2646
        %v2660 = vcombine.low %v2621, %v2653
        %v2661 = vcombine.high %v2621, %v2653
        %v2662 = vcombine.low %v935, %v1048
        %v2663 = vcombine.high %v935, %v1048
        %v2665 = vunpack.c.l.s4 1983009808
        %v2666 = vunpack.c.0.s8 %v2665
        %v2667 = vlaneseq
        %v2668 = vshrl.u32 %v2667, 7
        %v2669 = vsub.s32 %v2666, %v2668
        %v2670 = vrot.slane %v2662, %v2669
        %v2672 = vunpack.c.l.s4 1983009808
        %v2673 = vunpack.c.0.s8 %v2672
        %v2674 = vlaneseq
        %v2675 = vshrl.u32 %v2674, 7
        %v2676 = vsub.s32 %v2673, %v2675
        %v2677 = vrot.slane %v2663, %v2676
        %v2678 = vcombine.low %v937, %v1050
        %v2679 = vcombine.high %v937, %v1050
        %v2681 = vunpack.c.l.s4 1983009808
        %v2682 = vunpack.c.0.s8 %v2681
        %v2683 = vlaneseq
        %v2684 = vshrl.u32 %v2683, 7
        %v2685 = vsub.s32 %v2682, %v2684
        %v2686 = vrot.slane %v2678, %v2685
        %v2688 = vunpack.c.l.s4 1983009808
        %v2689 = vunpack.c.0.s8 %v2688
        %v2690 = vlaneseq
        %v2691 = vshrl.u32 %v2690, 7
        %v2692 = vsub.s32 %v2689, %v2691
        %v2693 = vrot.slane %v2679, %v2692
        %v2694 = vcombine.low %v1161, %v1274
        %v2695 = vcombine.high %v1161, %v1274
        %v2697 = vunpack.c.l.s4 1983009808
        %v2698 = vunpack.c.0.s8 %v2697
        %v2699 = vlaneseq
        %v2700 = vshrl.u32 %v2699, 7
        %v2701 = vsub.s32 %v2698, %v2700
        %v2702 = vrot.slane %v2694, %v2701
        %v2704 = vunpack.c.l.s4 1983009808
        %v2705 = vunpack.c.0.s8 %v2704
        %v2706 = vlaneseq
        %v2707 = vshrl.u32 %v2706, 7
        %v2708 = vsub.s32 %v2705, %v2707
        %v2709 = vrot.slane %v2695, %v2708
        %v2710 = vcombine.low %v1163, %v1276
        %v2711 = vcombine.high %v1163, %v1276
        %v2713 = vunpack.c.l.s4 1983009808
        %v2714 = vunpack.c.0.s8 %v2713
        %v2715 = vlaneseq
        %v2716 = vshrl.u32 %v2715, 7
        %v2717 = vsub.s32 %v2714, %v2716
        %v2718 = vrot.slane %v2710, %v2717
        %v2720 = vunpack.c.l.s4 1983009808
        %v2721 = vunpack.c.0.s8 %v2720
        %v2722 = vlaneseq
        %v2723 = vshrl.u32 %v2722, 7
        %v2724 = vsub.s32 %v2721, %v2723
        %v2725 = vrot.slane %v2711, %v2724
        %v2726 = vcombine.low %v2670, %v2686
        %v2727 = vcombine.high %v2670, %v2686
        %v2729 = vunpack.c.l.s4 1934713408
        %v2730 = vunpack.c.0.s8 %v2729
        %v2731 = vlaneseq
        %v2732 = vshrl.u32 %v2731, 7
        %v2733 = vsub.s32 %v2730, %v2732
        %v2734 = vrot.slane %v2726, %v2733
        %v2736 = vunpack.c.l.s4 1934713408
        %v2737 = vunpack.c.0.s8 %v2736
        %v2738 = vlaneseq
        %v2739 = vshrl.u32 %v2738, 7
        %v2740 = vsub.s32 %v2737, %v2739
        %v2741 = vrot.slane %v2727, %v2740
        %v2742 = vcombine.low %v2677, %v2693
        %v2743 = vcombine.high %v2677, %v2693
        %v2745 = vunpack.c.l.s4 1934713408
        %v2746 = vunpack.c.0.s8 %v2745
        %v2747 = vlaneseq
        %v2748 = vshrl.u32 %v2747, 7
        %v2749 = vsub.s32 %v2746, %v2748
        %v2750 = vrot.slane %v2742, %v2749
        %v2752 = vunpack.c.l.s4 1934713408
        %v2753 = vunpack.c.0.s8 %v2752
        %v2754 = vlaneseq
        %v2755 = vshrl.u32 %v2754, 7
        %v2756 = vsub.s32 %v2753, %v2755
        %v2757 = vrot.slane %v2743, %v2756
        %v2758 = vcombine.low %v2702, %v2718
        %v2759 = vcombine.high %v2702, %v2718
        %v2761 = vunpack.c.l.s4 1934713408
        %v2762 = vunpack.c.0.s8 %v2761
        %v2763 = vlaneseq
        %v2764 = vshrl.u32 %v2763, 7
        %v2765 = vsub.s32 %v2762, %v2764
        %v2766 = vrot.slane %v2758, %v2765
        %v2768 = vunpack.c.l.s4 1934713408
        %v2769 = vunpack.c.0.s8 %v2768
        %v2770 = vlaneseq
        %v2771 = vshrl.u32 %v2770, 7
        %v2772 = vsub.s32 %v2769, %v2771
        %v2773 = vrot.slane %v2759, %v2772
        %v2774 = vcombine.low %v2709, %v2725
        %v2775 = vcombine.high %v2709, %v2725
        %v2777 = vunpack.c.l.s4 1934713408
        %v2778 = vunpack.c.0.s8 %v2777
        %v2779 = vlaneseq
        %v2780 = vshrl.u32 %v2779, 7
        %v2781 = vsub.s32 %v2778, %v2780
        %v2782 = vrot.slane %v2774, %v2781
        %v2784 = vunpack.c.l.s4 1934713408
        %v2785 = vunpack.c.0.s8 %v2784
        %v2786 = vlaneseq
        %v2787 = vshrl.u32 %v2786, 7
        %v2788 = vsub.s32 %v2785, %v2787
        %v2789 = vrot.slane %v2775, %v2788
        %v2790 = vcombine.low %v2734, %v2766
        %v2791 = vcombine.high %v2734, %v2766
        %v2792 = vcombine.low %v2741, %v2773
        %v2793 = vcombine.high %v2741, %v2773
        %v2794 = vcombine.low %v2750, %v2782
        %v2795 = vcombine.high %v2750, %v2782
        %v2796 = vcombine.low %v2757, %v2789
        %v2797 = vcombine.high %v2757, %v2789
        %v2798 = vcombine.low %v939, %v1052
        %v2799 = vcombine.high %v939, %v1052
        %v2801 = vunpack.c.l.s4 1983009808
        %v2802 = vunpack.c.0.s8 %v2801
        %v2803 = vlaneseq
        %v2804 = vshrl.u32 %v2803, 7
        %v2805 = vsub.s32 %v2802, %v2804
        %v2806 = vrot.slane %v2798, %v2805
        %v2808 = vunpack.c.l.s4 1983009808
        %v2809 = vunpack.c.0.s8 %v2808
        %v2810 = vlaneseq
        %v2811 = vshrl.u32 %v2810, 7
        %v2812 = vsub.s32 %v2809, %v2811
        %v2813 = vrot.slane %v2799, %v2812
        %v2814 = vcombine.low %v941, %v1054
        %v2815 = vcombine.high %v941, %v1054
        %v2817 = vunpack.c.l.s4 1983009808
        %v2818 = vunpack.c.0.s8 %v2817
        %v2819 = vlaneseq
        %v2820 = vshrl.u32 %v2819, 7
        %v2821 = vsub.s32 %v2818, %v2820
        %v2822 = vrot.slane %v2814, %v2821
        %v2824 = vunpack.c.l.s4 1983009808
        %v2825 = vunpack.c.0.s8 %v2824
        %v2826 = vlaneseq
        %v2827 = vshrl.u32 %v2826, 7
        %v2828 = vsub.s32 %v2825, %v2827
        %v2829 = vrot.slane %v2815, %v2828
        %v2830 = vcombine.low %v1165, %v1278
        %v2831 = vcombine.high %v1165, %v1278
        %v2833 = vunpack.c.l.s4 1983009808
        %v2834 = vunpack.c.0.s8 %v2833
        %v2835 = vlaneseq
        %v2836 = vshrl.u32 %v2835, 7
        %v2837 = vsub.s32 %v2834, %v2836
        %v2838 = vrot.slane %v2830, %v2837
        %v2840 = vunpack.c.l.s4 1983009808
        %v2841 = vunpack.c.0.s8 %v2840
        %v2842 = vlaneseq
        %v2843 = vshrl.u32 %v2842, 7
        %v2844 = vsub.s32 %v2841, %v2843
        %v2845 = vrot.slane %v2831, %v2844
        %v2846 = vcombine.low %v1167, %v1280
        %v2847 = vcombine.high %v1167, %v1280
        %v2849 = vunpack.c.l.s4 1983009808
        %v2850 = vunpack.c.0.s8 %v2849
        %v2851 = vlaneseq
        %v2852 = vshrl.u32 %v2851, 7
        %v2853 = vsub.s32 %v2850, %v2852
        %v2854 = vrot.slane %v2846, %v2853
        %v2856 = vunpack.c.l.s4 1983009808
        %v2857 = vunpack.c.0.s8 %v2856
        %v2858 = vlaneseq
        %v2859 = vshrl.u32 %v2858, 7
        %v2860 = vsub.s32 %v2857, %v2859
        %v2861 = vrot.slane %v2847, %v2860
        %v2862 = vcombine.low %v2806, %v2822
        %v2863 = vcombine.high %v2806, %v2822
        %v2865 = vunpack.c.l.s4 1934713408
        %v2866 = vunpack.c.0.s8 %v2865
        %v2867 = vlaneseq
        %v2868 = vshrl.u32 %v2867, 7
        %v2869 = vsub.s32 %v2866, %v2868
        %v2870 = vrot.slane %v2862, %v2869
        %v2872 = vunpack.c.l.s4 1934713408
        %v2873 = vunpack.c.0.s8 %v2872
        %v2874 = vlaneseq
        %v2875 = vshrl.u32 %v2874, 7
        %v2876 = vsub.s32 %v2873, %v2875
        %v2877 = vrot.slane %v2863, %v2876
        %v2878 = vcombine.low %v2813, %v2829
        %v2879 = vcombine.high %v2813, %v2829
        %v2881 = vunpack.c.l.s4 1934713408
        %v2882 = vunpack.c.0.s8 %v2881
        %v2883 = vlaneseq
        %v2884 = vshrl.u32 %v2883, 7
        %v2885 = vsub.s32 %v2882, %v2884
        %v2886 = vrot.slane %v2878, %v2885
        %v2888 = vunpack.c.l.s4 1934713408
        %v2889 = vunpack.c.0.s8 %v2888
        %v2890 = vlaneseq
        %v2891 = vshrl.u32 %v2890, 7
        %v2892 = vsub.s32 %v2889, %v2891
        %v2893 = vrot.slane %v2879, %v2892
        %v2894 = vcombine.low %v2838, %v2854
        %v2895 = vcombine.high %v2838, %v2854
        %v2897 = vunpack.c.l.s4 1934713408
        %v2898 = vunpack.c.0.s8 %v2897
        %v2899 = vlaneseq
        %v2900 = vshrl.u32 %v2899, 7
        %v2901 = vsub.s32 %v2898, %v2900
        %v2902 = vrot.slane %v2894, %v2901
        %v2904 = vunpack.c.l.s4 1934713408
        %v2905 = vunpack.c.0.s8 %v2904
        %v2906 = vlaneseq
        %v2907 = vshrl.u32 %v2906, 7
        %v2908 = vsub.s32 %v2905, %v2907
        %v2909 = vrot.slane %v2895, %v2908
        %v2910 = vcombine.low %v2845, %v2861
        %v2911 = vcombine.high %v2845, %v2861
        %v2913 = vunpack.c.l.s4 1934713408
        %v2914 = vunpack.c.0.s8 %v2913
        %v2915 = vlaneseq
        %v2916 = vshrl.u32 %v2915, 7
        %v2917 = vsub.s32 %v2914, %v2916
        %v2918 = vrot.slane %v2910, %v2917
        %v2920 = vunpack.c.l.s4 1934713408
        %v2921 = vunpack.c.0.s8 %v2920
        %v2922 = vlaneseq
        %v2923 = vshrl.u32 %v2922, 7
        %v2924 = vsub.s32 %v2921, %v2923
        %v2925 = vrot.slane %v2911, %v2924
        %v2926 = vcombine.low %v2870, %v2902
        %v2927 = vcombine.high %v2870, %v2902
        %v2928 = vcombine.low %v2877, %v2909
        %v2929 = vcombine.high %v2877, %v2909
        %v2930 = vcombine.low %v2886, %v2918
        %v2931 = vcombine.high %v2886, %v2918
        %v2932 = vcombine.low %v2893, %v2925
        %v2933 = vcombine.high %v2893, %v2925
        %v2934 = vcombine.low %v945, %v1058
        %v2935 = vcombine.high %v945, %v1058
        %v2937 = vunpack.c.l.s4 1983009808
        %v2938 = vunpack.c.0.s8 %v2937
        %v2939 = vlaneseq
        %v2940 = vshrl.u32 %v2939, 7
        %v2941 = vsub.s32 %v2938, %v2940
        %v2942 = vrot.slane %v2934, %v2941
        %v2944 = vunpack.c.l.s4 1983009808
        %v2945 = vunpack.c.0.s8 %v2944
        %v2946 = vlaneseq
        %v2947 = vshrl.u32 %v2946, 7
        %v2948 = vsub.s32 %v2945, %v2947
        %v2949 = vrot.slane %v2935, %v2948
        %v2950 = vcombine.low %v947, %v1060
        %v2951 = vcombine.high %v947, %v1060
        %v2953 = vunpack.c.l.s4 1983009808
        %v2954 = vunpack.c.0.s8 %v2953
        %v2955 = vlaneseq
        %v2956 = vshrl.u32 %v2955, 7
        %v2957 = vsub.s32 %v2954, %v2956
        %v2958 = vrot.slane %v2950, %v2957
        %v2960 = vunpack.c.l.s4 1983009808
        %v2961 = vunpack.c.0.s8 %v2960
        %v2962 = vlaneseq
        %v2963 = vshrl.u32 %v2962, 7
        %v2964 = vsub.s32 %v2961, %v2963
        %v2965 = vrot.slane %v2951, %v2964
        %v2966 = vcombine.low %v1171, %v1284
        %v2967 = vcombine.high %v1171, %v1284
        %v2969 = vunpack.c.l.s4 1983009808
        %v2970 = vunpack.c.0.s8 %v2969
        %v2971 = vlaneseq
        %v2972 = vshrl.u32 %v2971, 7
        %v2973 = vsub.s32 %v2970, %v2972
        %v2974 = vrot.slane %v2966, %v2973
        %v2976 = vunpack.c.l.s4 1983009808
        %v2977 = vunpack.c.0.s8 %v2976
        %v2978 = vlaneseq
        %v2979 = vshrl.u32 %v2978, 7
        %v2980 = vsub.s32 %v2977, %v2979
        %v2981 = vrot.slane %v2967, %v2980
        %v2982 = vcombine.low %v1173, %v1286
        %v2983 = vcombine.high %v1173, %v1286
        %v2985 = vunpack.c.l.s4 1983009808
        %v2986 = vunpack.c.0.s8 %v2985
        %v2987 = vlaneseq
        %v2988 = vshrl.u32 %v2987, 7
        %v2989 = vsub.s32 %v2986, %v2988
        %v2990 = vrot.slane %v2982, %v2989
        %v2992 = vunpack.c.l.s4 1983009808
        %v2993 = vunpack.c.0.s8 %v2992
        %v2994 = vlaneseq
        %v2995 = vshrl.u32 %v2994, 7
        %v2996 = vsub.s32 %v2993, %v2995
        %v2997 = vrot.slane %v2983, %v2996
        %v2998 = vcombine.low %v2942, %v2958
        %v2999 = vcombine.high %v2942, %v2958
        %v3001 = vunpack.c.l.s4 1934713408
        %v3002 = vunpack.c.0.s8 %v3001
        %v3003 = vlaneseq
        %v3004 = vshrl.u32 %v3003, 7
        %v3005 = vsub.s32 %v3002, %v3004
        %v3006 = vrot.slane %v2998, %v3005
        %v3008 = vunpack.c.l.s4 1934713408
        %v3009 = vunpack.c.0.s8 %v3008
        %v3010 = vlaneseq
        %v3011 = vshrl.u32 %v3010, 7
        %v3012 = vsub.s32 %v3009, %v3011
        %v3013 = vrot.slane %v2999, %v3012
        %v3014 = vcombine.low %v2949, %v2965
        %v3015 = vcombine.high %v2949, %v2965
        %v3017 = vunpack.c.l.s4 1934713408
        %v3018 = vunpack.c.0.s8 %v3017
        %v3019 = vlaneseq
        %v3020 = vshrl.u32 %v3019, 7
        %v3021 = vsub.s32 %v3018, %v3020
        %v3022 = vrot.slane %v3014, %v3021
        %v3024 = vunpack.c.l.s4 1934713408
        %v3025 = vunpack.c.0.s8 %v3024
        %v3026 = vlaneseq
        %v3027 = vshrl.u32 %v3026, 7
        %v3028 = vsub.s32 %v3025, %v3027
        %v3029 = vrot.slane %v3015, %v3028
        %v3030 = vcombine.low %v2974, %v2990
        %v3031 = vcombine.high %v2974, %v2990
        %v3033 = vunpack.c.l.s4 1934713408
        %v3034 = vunpack.c.0.s8 %v3033
        %v3035 = vlaneseq
        %v3036 = vshrl.u32 %v3035, 7
        %v3037 = vsub.s32 %v3034, %v3036
        %v3038 = vrot.slane %v3030, %v3037
        %v3040 = vunpack.c.l.s4 1934713408
        %v3041 = vunpack.c.0.s8 %v3040
        %v3042 = vlaneseq
        %v3043 = vshrl.u32 %v3042, 7
        %v3044 = vsub.s32 %v3041, %v3043
        %v3045 = vrot.slane %v3031, %v3044
        %v3046 = vcombine.low %v2981, %v2997
        %v3047 = vcombine.high %v2981, %v2997
        %v3049 = vunpack.c.l.s4 1934713408
        %v3050 = vunpack.c.0.s8 %v3049
        %v3051 = vlaneseq
        %v3052 = vshrl.u32 %v3051, 7
        %v3053 = vsub.s32 %v3050, %v3052
        %v3054 = vrot.slane %v3046, %v3053
        %v3056 = vunpack.c.l.s4 1934713408
        %v3057 = vunpack.c.0.s8 %v3056
        %v3058 = vlaneseq
        %v3059 = vshrl.u32 %v3058, 7
        %v3060 = vsub.s32 %v3057, %v3059
        %v3061 = vrot.slane %v3047, %v3060
        %v3062 = vcombine.low %v3006, %v3038
        %v3063 = vcombine.high %v3006, %v3038
        %v3064 = vcombine.low %v3013, %v3045
        %v3065 = vcombine.high %v3013, %v3045
        %v3066 = vcombine.low %v3022, %v3054
        %v3067 = vcombine.high %v3022, %v3054
        %v3068 = vcombine.low %v3029, %v3061
        %v3069 = vcombine.high %v3029, %v3061
        %v3070 = vcombine.low %v949, %v1062
        %v3071 = vcombine.high %v949, %v1062
        %v3073 = vunpack.c.l.s4 1983009808
        %v3074 = vunpack.c.0.s8 %v3073
        %v3075 = vlaneseq
        %v3076 = vshrl.u32 %v3075, 7
        %v3077 = vsub.s32 %v3074, %v3076
        %v3078 = vrot.slane %v3070, %v3077
        %v3080 = vunpack.c.l.s4 1983009808
        %v3081 = vunpack.c.0.s8 %v3080
        %v3082 = vlaneseq
        %v3083 = vshrl.u32 %v3082, 7
        %v3084 = vsub.s32 %v3081, %v3083
        %v3085 = vrot.slane %v3071, %v3084
        %v3086 = vcombine.low %v951, %v1064
        %v3087 = vcombine.high %v951, %v1064
        %v3089 = vunpack.c.l.s4 1983009808
        %v3090 = vunpack.c.0.s8 %v3089
        %v3091 = vlaneseq
        %v3092 = vshrl.u32 %v3091, 7
        %v3093 = vsub.s32 %v3090, %v3092
        %v3094 = vrot.slane %v3086, %v3093
        %v3096 = vunpack.c.l.s4 1983009808
        %v3097 = vunpack.c.0.s8 %v3096
        %v3098 = vlaneseq
        %v3099 = vshrl.u32 %v3098, 7
        %v3100 = vsub.s32 %v3097, %v3099
        %v3101 = vrot.slane %v3087, %v3100
        %v3102 = vcombine.low %v1175, %v1288
        %v3103 = vcombine.high %v1175, %v1288
        %v3105 = vunpack.c.l.s4 1983009808
        %v3106 = vunpack.c.0.s8 %v3105
        %v3107 = vlaneseq
        %v3108 = vshrl.u32 %v3107, 7
        %v3109 = vsub.s32 %v3106, %v3108
        %v3110 = vrot.slane %v3102, %v3109
        %v3112 = vunpack.c.l.s4 1983009808
        %v3113 = vunpack.c.0.s8 %v3112
        %v3114 = vlaneseq
        %v3115 = vshrl.u32 %v3114, 7
        %v3116 = vsub.s32 %v3113, %v3115
        %v3117 = vrot.slane %v3103, %v3116
        %v3118 = vcombine.low %v1177, %v1290
        %v3119 = vcombine.high %v1177, %v1290
        %v3121 = vunpack.c.l.s4 1983009808
        %v3122 = vunpack.c.0.s8 %v3121
        %v3123 = vlaneseq
        %v3124 = vshrl.u32 %v3123, 7
        %v3125 = vsub.s32 %v3122, %v3124
        %v3126 = vrot.slane %v3118, %v3125
        %v3128 = vunpack.c.l.s4 1983009808
        %v3129 = vunpack.c.0.s8 %v3128
        %v3130 = vlaneseq
        %v3131 = vshrl.u32 %v3130, 7
        %v3132 = vsub.s32 %v3129, %v3131
        %v3133 = vrot.slane %v3119, %v3132
        %v3134 = vcombine.low %v3078, %v3094
        %v3135 = vcombine.high %v3078, %v3094
        %v3137 = vunpack.c.l.s4 1934713408
        %v3138 = vunpack.c.0.s8 %v3137
        %v3139 = vlaneseq
        %v3140 = vshrl.u32 %v3139, 7
        %v3141 = vsub.s32 %v3138, %v3140
        %v3142 = vrot.slane %v3134, %v3141
        %v3144 = vunpack.c.l.s4 1934713408
        %v3145 = vunpack.c.0.s8 %v3144
        %v3146 = vlaneseq
        %v3147 = vshrl.u32 %v3146, 7
        %v3148 = vsub.s32 %v3145, %v3147
        %v3149 = vrot.slane %v3135, %v3148
        %v3150 = vcombine.low %v3085, %v3101
        %v3151 = vcombine.high %v3085, %v3101
        %v3153 = vunpack.c.l.s4 1934713408
        %v3154 = vunpack.c.0.s8 %v3153
        %v3155 = vlaneseq
        %v3156 = vshrl.u32 %v3155, 7
        %v3157 = vsub.s32 %v3154, %v3156
        %v3158 = vrot.slane %v3150, %v3157
        %v3160 = vunpack.c.l.s4 1934713408
        %v3161 = vunpack.c.0.s8 %v3160
        %v3162 = vlaneseq
        %v3163 = vshrl.u32 %v3162, 7
        %v3164 = vsub.s32 %v3161, %v3163
        %v3165 = vrot.slane %v3151, %v3164
        %v3166 = vcombine.low %v3110, %v3126
        %v3167 = vcombine.high %v3110, %v3126
        %v3169 = vunpack.c.l.s4 1934713408
        %v3170 = vunpack.c.0.s8 %v3169
        %v3171 = vlaneseq
        %v3172 = vshrl.u32 %v3171, 7
        %v3173 = vsub.s32 %v3170, %v3172
        %v3174 = vrot.slane %v3166, %v3173
        %v3176 = vunpack.c.l.s4 1934713408
        %v3177 = vunpack.c.0.s8 %v3176
        %v3178 = vlaneseq
        %v3179 = vshrl.u32 %v3178, 7
        %v3180 = vsub.s32 %v3177, %v3179
        %v3181 = vrot.slane %v3167, %v3180
        %v3182 = vcombine.low %v3117, %v3133
        %v3183 = vcombine.high %v3117, %v3133
        %v3185 = vunpack.c.l.s4 1934713408
        %v3186 = vunpack.c.0.s8 %v3185
        %v3187 = vlaneseq
        %v3188 = vshrl.u32 %v3187, 7
        %v3189 = vsub.s32 %v3186, %v3188
        %v3190 = vrot.slane %v3182, %v3189
        %v3192 = vunpack.c.l.s4 1934713408
        %v3193 = vunpack.c.0.s8 %v3192
        %v3194 = vlaneseq
        %v3195 = vshrl.u32 %v3194, 7
        %v3196 = vsub.s32 %v3193, %v3195
        %v3197 = vrot.slane %v3183, %v3196
        %v3198 = vcombine.low %v3142, %v3174
        %v3199 = vcombine.high %v3142, %v3174
        %v3200 = vcombine.low %v3149, %v3181
        %v3201 = vcombine.high %v3149, %v3181
        %v3202 = vcombine.low %v3158, %v3190
        %v3203 = vcombine.high %v3158, %v3190
        %v3204 = vcombine.low %v3165, %v3197
        %v3205 = vcombine.high %v3165, %v3197
        %v3206 = vcombine.low %v955, %v1068
        %v3207 = vcombine.high %v955, %v1068
        %v3209 = vunpack.c.l.s4 1983009808
        %v3210 = vunpack.c.0.s8 %v3209
        %v3211 = vlaneseq
        %v3212 = vshrl.u32 %v3211, 7
        %v3213 = vsub.s32 %v3210, %v3212
        %v3214 = vrot.slane %v3206, %v3213
        %v3216 = vunpack.c.l.s4 1983009808
        %v3217 = vunpack.c.0.s8 %v3216
        %v3218 = vlaneseq
        %v3219 = vshrl.u32 %v3218, 7
        %v3220 = vsub.s32 %v3217, %v3219
        %v3221 = vrot.slane %v3207, %v3220
        %v3222 = vcombine.low %v957, %v1070
        %v3223 = vcombine.high %v957, %v1070
        %v3225 = vunpack.c.l.s4 1983009808
        %v3226 = vunpack.c.0.s8 %v3225
        %v3227 = vlaneseq
        %v3228 = vshrl.u32 %v3227, 7
        %v3229 = vsub.s32 %v3226, %v3228
        %v3230 = vrot.slane %v3222, %v3229
        %v3232 = vunpack.c.l.s4 1983009808
        %v3233 = vunpack.c.0.s8 %v3232
        %v3234 = vlaneseq
        %v3235 = vshrl.u32 %v3234, 7
        %v3236 = vsub.s32 %v3233, %v3235
        %v3237 = vrot.slane %v3223, %v3236
        %v3238 = vcombine.low %v1181, %v1294
        %v3239 = vcombine.high %v1181, %v1294
        %v3241 = vunpack.c.l.s4 1983009808
        %v3242 = vunpack.c.0.s8 %v3241
        %v3243 = vlaneseq
        %v3244 = vshrl.u32 %v3243, 7
        %v3245 = vsub.s32 %v3242, %v3244
        %v3246 = vrot.slane %v3238, %v3245
        %v3248 = vunpack.c.l.s4 1983009808
        %v3249 = vunpack.c.0.s8 %v3248
        %v3250 = vlaneseq
        %v3251 = vshrl.u32 %v3250, 7
        %v3252 = vsub.s32 %v3249, %v3251
        %v3253 = vrot.slane %v3239, %v3252
        %v3254 = vcombine.low %v1183, %v1296
        %v3255 = vcombine.high %v1183, %v1296
        %v3257 = vunpack.c.l.s4 1983009808
        %v3258 = vunpack.c.0.s8 %v3257
        %v3259 = vlaneseq
        %v3260 = vshrl.u32 %v3259, 7
        %v3261 = vsub.s32 %v3258, %v3260
        %v3262 = vrot.slane %v3254, %v3261
        %v3264 = vunpack.c.l.s4 1983009808
        %v3265 = vunpack.c.0.s8 %v3264
        %v3266 = vlaneseq
        %v3267 = vshrl.u32 %v3266, 7
        %v3268 = vsub.s32 %v3265, %v3267
        %v3269 = vrot.slane %v3255, %v3268
        %v3270 = vcombine.low %v3214, %v3230
        %v3271 = vcombine.high %v3214, %v3230
        %v3273 = vunpack.c.l.s4 1934713408
        %v3274 = vunpack.c.0.s8 %v3273
        %v3275 = vlaneseq
        %v3276 = vshrl.u32 %v3275, 7
        %v3277 = vsub.s32 %v3274, %v3276
        %v3278 = vrot.slane %v3270, %v3277
        %v3280 = vunpack.c.l.s4 1934713408
        %v3281 = vunpack.c.0.s8 %v3280
        %v3282 = vlaneseq
        %v3283 = vshrl.u32 %v3282, 7
        %v3284 = vsub.s32 %v3281, %v3283
        %v3285 = vrot.slane %v3271, %v3284
        %v3286 = vcombine.low %v3221, %v3237
        %v3287 = vcombine.high %v3221, %v3237
        %v3289 = vunpack.c.l.s4 1934713408
        %v3290 = vunpack.c.0.s8 %v3289
        %v3291 = vlaneseq
        %v3292 = vshrl.u32 %v3291, 7
        %v3293 = vsub.s32 %v3290, %v3292
        %v3294 = vrot.slane %v3286, %v3293
        %v3296 = vunpack.c.l.s4 1934713408
        %v3297 = vunpack.c.0.s8 %v3296
        %v3298 = vlaneseq
        %v3299 = vshrl.u32 %v3298, 7
        %v3300 = vsub.s32 %v3297, %v3299
        %v3301 = vrot.slane %v3287, %v3300
        %v3302 = vcombine.low %v3246, %v3262
        %v3303 = vcombine.high %v3246, %v3262
        %v3305 = vunpack.c.l.s4 1934713408
        %v3306 = vunpack.c.0.s8 %v3305
        %v3307 = vlaneseq
        %v3308 = vshrl.u32 %v3307, 7
        %v3309 = vsub.s32 %v3306, %v3308
        %v3310 = vrot.slane %v3302, %v3309
        %v3312 = vunpack.c.l.s4 1934713408
        %v3313 = vunpack.c.0.s8 %v3312
        %v3314 = vlaneseq
        %v3315 = vshrl.u32 %v3314, 7
        %v3316 = vsub.s32 %v3313, %v3315
        %v3317 = vrot.slane %v3303, %v3316
        %v3318 = vcombine.low %v3253, %v3269
        %v3319 = vcombine.high %v3253, %v3269
        %v3321 = vunpack.c.l.s4 1934713408
        %v3322 = vunpack.c.0.s8 %v3321
        %v3323 = vlaneseq
        %v3324 = vshrl.u32 %v3323, 7
        %v3325 = vsub.s32 %v3322, %v3324
        %v3326 = vrot.slane %v3318, %v3325
        %v3328 = vunpack.c.l.s4 1934713408
        %v3329 = vunpack.c.0.s8 %v3328
        %v3330 = vlaneseq
        %v3331 = vshrl.u32 %v3330, 7
        %v3332 = vsub.s32 %v3329, %v3331
        %v3333 = vrot.slane %v3319, %v3332
        %v3334 = vcombine.low %v3278, %v3310
        %v3335 = vcombine.high %v3278, %v3310
        %v3336 = vcombine.low %v3285, %v3317
        %v3337 = vcombine.high %v3285, %v3317
        %v3338 = vcombine.low %v3294, %v3326
        %v3339 = vcombine.high %v3294, %v3326
        %v3340 = vcombine.low %v3301, %v3333
        %v3341 = vcombine.high %v3301, %v3333
        %v3342 = vcombine.low %v959, %v1072
        %v3343 = vcombine.high %v959, %v1072
        %v3345 = vunpack.c.l.s4 1983009808
        %v3346 = vunpack.c.0.s8 %v3345
        %v3347 = vlaneseq
        %v3348 = vshrl.u32 %v3347, 7
        %v3349 = vsub.s32 %v3346, %v3348
        %v3350 = vrot.slane %v3342, %v3349
        %v3352 = vunpack.c.l.s4 1983009808
        %v3353 = vunpack.c.0.s8 %v3352
        %v3354 = vlaneseq
        %v3355 = vshrl.u32 %v3354, 7
        %v3356 = vsub.s32 %v3353, %v3355
        %v3357 = vrot.slane %v3343, %v3356
        %v3358 = vcombine.low %v961, %v1074
        %v3359 = vcombine.high %v961, %v1074
        %v3361 = vunpack.c.l.s4 1983009808
        %v3362 = vunpack.c.0.s8 %v3361
        %v3363 = vlaneseq
        %v3364 = vshrl.u32 %v3363, 7
        %v3365 = vsub.s32 %v3362, %v3364
        %v3366 = vrot.slane %v3358, %v3365
        %v3368 = vunpack.c.l.s4 1983009808
        %v3369 = vunpack.c.0.s8 %v3368
        %v3370 = vlaneseq
        %v3371 = vshrl.u32 %v3370, 7
        %v3372 = vsub.s32 %v3369, %v3371
        %v3373 = vrot.slane %v3359, %v3372
        %v3374 = vcombine.low %v1185, %v1298
        %v3375 = vcombine.high %v1185, %v1298
        %v3377 = vunpack.c.l.s4 1983009808
        %v3378 = vunpack.c.0.s8 %v3377
        %v3379 = vlaneseq
        %v3380 = vshrl.u32 %v3379, 7
        %v3381 = vsub.s32 %v3378, %v3380
        %v3382 = vrot.slane %v3374, %v3381
        %v3384 = vunpack.c.l.s4 1983009808
        %v3385 = vunpack.c.0.s8 %v3384
        %v3386 = vlaneseq
        %v3387 = vshrl.u32 %v3386, 7
        %v3388 = vsub.s32 %v3385, %v3387
        %v3389 = vrot.slane %v3375, %v3388
        %v3390 = vcombine.low %v1187, %v1300
        %v3391 = vcombine.high %v1187, %v1300
        %v3393 = vunpack.c.l.s4 1983009808
        %v3394 = vunpack.c.0.s8 %v3393
        %v3395 = vlaneseq
        %v3396 = vshrl.u32 %v3395, 7
        %v3397 = vsub.s32 %v3394, %v3396
        %v3398 = vrot.slane %v3390, %v3397
        %v3400 = vunpack.c.l.s4 1983009808
        %v3401 = vunpack.c.0.s8 %v3400
        %v3402 = vlaneseq
        %v3403 = vshrl.u32 %v3402, 7
        %v3404 = vsub.s32 %v3401, %v3403
        %v3405 = vrot.slane %v3391, %v3404
        %v3406 = vcombine.low %v3350, %v3366
        %v3407 = vcombine.high %v3350, %v3366
        %v3409 = vunpack.c.l.s4 1934713408
        %v3410 = vunpack.c.0.s8 %v3409
        %v3411 = vlaneseq
        %v3412 = vshrl.u32 %v3411, 7
        %v3413 = vsub.s32 %v3410, %v3412
        %v3414 = vrot.slane %v3406, %v3413
        %v3416 = vunpack.c.l.s4 1934713408
        %v3417 = vunpack.c.0.s8 %v3416
        %v3418 = vlaneseq
        %v3419 = vshrl.u32 %v3418, 7
        %v3420 = vsub.s32 %v3417, %v3419
        %v3421 = vrot.slane %v3407, %v3420
        %v3422 = vcombine.low %v3357, %v3373
        %v3423 = vcombine.high %v3357, %v3373
        %v3425 = vunpack.c.l.s4 1934713408
        %v3426 = vunpack.c.0.s8 %v3425
        %v3427 = vlaneseq
        %v3428 = vshrl.u32 %v3427, 7
        %v3429 = vsub.s32 %v3426, %v3428
        %v3430 = vrot.slane %v3422, %v3429
        %v3432 = vunpack.c.l.s4 1934713408
        %v3433 = vunpack.c.0.s8 %v3432
        %v3434 = vlaneseq
        %v3435 = vshrl.u32 %v3434, 7
        %v3436 = vsub.s32 %v3433, %v3435
        %v3437 = vrot.slane %v3423, %v3436
        %v3438 = vcombine.low %v3382, %v3398
        %v3439 = vcombine.high %v3382, %v3398
        %v3441 = vunpack.c.l.s4 1934713408
        %v3442 = vunpack.c.0.s8 %v3441
        %v3443 = vlaneseq
        %v3444 = vshrl.u32 %v3443, 7
        %v3445 = vsub.s32 %v3442, %v3444
        %v3446 = vrot.slane %v3438, %v3445
        %v3448 = vunpack.c.l.s4 1934713408
        %v3449 = vunpack.c.0.s8 %v3448
        %v3450 = vlaneseq
        %v3451 = vshrl.u32 %v3450, 7
        %v3452 = vsub.s32 %v3449, %v3451
        %v3453 = vrot.slane %v3439, %v3452
        %v3454 = vcombine.low %v3389, %v3405
        %v3455 = vcombine.high %v3389, %v3405
        %v3457 = vunpack.c.l.s4 1934713408
        %v3458 = vunpack.c.0.s8 %v3457
        %v3459 = vlaneseq
        %v3460 = vshrl.u32 %v3459, 7
        %v3461 = vsub.s32 %v3458, %v3460
        %v3462 = vrot.slane %v3454, %v3461
        %v3464 = vunpack.c.l.s4 1934713408
        %v3465 = vunpack.c.0.s8 %v3464
        %v3466 = vlaneseq
        %v3467 = vshrl.u32 %v3466, 7
        %v3468 = vsub.s32 %v3465, %v3467
        %v3469 = vrot.slane %v3455, %v3468
        %v3470 = vcombine.low %v3414, %v3446
        %v3471 = vcombine.high %v3414, %v3446
        %v3472 = vcombine.low %v3421, %v3453
        %v3473 = vcombine.high %v3421, %v3453
        %v3474 = vcombine.low %v3430, %v3462
        %v3475 = vcombine.high %v3430, %v3462
        %v3476 = vcombine.low %v3437, %v3469
        %v3477 = vcombine.high %v3437, %v3469
        %3478 = vmax.xlane.f32.xlu0 %v1430
        %v3479 = vpop.xlane.xlu0 %3478
        %3480 = vmax.xlane.f32.xlu0 %v1431
        %v3481 = vpop.xlane.xlu0 %3480
        %3482 = vmax.xlane.f32.xlu0 %v1432
        %v3483 = vpop.xlane.xlu0 %3482
        %3484 = vmax.xlane.f32.xlu0 %v1433
        %v3485 = vpop.xlane.xlu0 %3484
        %3486 = vmax.xlane.f32.xlu0 %v1434
        %v3487 = vpop.xlane.xlu0 %3486
        %3488 = vmax.xlane.f32.xlu0 %v1435
        %v3489 = vpop.xlane.xlu0 %3488
        %3490 = vmax.xlane.f32.xlu0 %v1436
        %v3491 = vpop.xlane.xlu0 %3490
        %3492 = vmax.xlane.f32.xlu0 %v1437
        %v3493 = vpop.xlane.xlu0 %3492
        %3494 = vmax.xlane.f32.xlu0 %v1566
        %v3495 = vpop.xlane.xlu0 %3494
        %3496 = vmax.xlane.f32.xlu0 %v1567
        %v3497 = vpop.xlane.xlu0 %3496
        %3498 = vmax.xlane.f32.xlu0 %v1568
        %v3499 = vpop.xlane.xlu0 %3498
        %3500 = vmax.xlane.f32.xlu0 %v1569
        %v3501 = vpop.xlane.xlu0 %3500
        %3502 = vmax.xlane.f32.xlu0 %v1570
        %v3503 = vpop.xlane.xlu0 %3502
        %3504 = vmax.xlane.f32.xlu0 %v1571
        %v3505 = vpop.xlane.xlu0 %3504
        %3506 = vmax.xlane.f32.xlu0 %v1572
        %v3507 = vpop.xlane.xlu0 %3506
        %3508 = vmax.xlane.f32.xlu0 %v1573
        %v3509 = vpop.xlane.xlu0 %3508
        %3510 = vmax.xlane.f32.xlu0 %v1702
        %v3511 = vpop.xlane.xlu0 %3510
        %3512 = vmax.xlane.f32.xlu0 %v1703
        %v3513 = vpop.xlane.xlu0 %3512
        %3514 = vmax.xlane.f32.xlu0 %v1704
        %v3515 = vpop.xlane.xlu0 %3514
        %3516 = vmax.xlane.f32.xlu0 %v1705
        %v3517 = vpop.xlane.xlu0 %3516
        %3518 = vmax.xlane.f32.xlu0 %v1706
        %v3519 = vpop.xlane.xlu0 %3518
        %3520 = vmax.xlane.f32.xlu0 %v1707
        %v3521 = vpop.xlane.xlu0 %3520
        %3522 = vmax.xlane.f32.xlu0 %v1708
        %v3523 = vpop.xlane.xlu0 %3522
        %3524 = vmax.xlane.f32.xlu0 %v1709
        %v3525 = vpop.xlane.xlu0 %3524
        %3526 = vmax.xlane.f32.xlu0 %v1838
        %v3527 = vpop.xlane.xlu0 %3526
        %3528 = vmax.xlane.f32.xlu0 %v1839
        %v3529 = vpop.xlane.xlu0 %3528
        %3530 = vmax.xlane.f32.xlu0 %v1840
        %v3531 = vpop.xlane.xlu0 %3530
        %3532 = vmax.xlane.f32.xlu0 %v1841
        %v3533 = vpop.xlane.xlu0 %3532
        %3534 = vmax.xlane.f32.xlu0 %v1842
        %v3535 = vpop.xlane.xlu0 %3534
        %3536 = vmax.xlane.f32.xlu0 %v1843
        %v3537 = vpop.xlane.xlu0 %3536
        %3538 = vmax.xlane.f32.xlu0 %v1844
        %v3539 = vpop.xlane.xlu0 %3538
        %3540 = vmax.xlane.f32.xlu0 %v1845
        %v3541 = vpop.xlane.xlu0 %3540
        %3542 = vmax.xlane.f32.xlu0 %v1974
        %v3543 = vpop.xlane.xlu0 %3542
        %3544 = vmax.xlane.f32.xlu0 %v1975
        %v3545 = vpop.xlane.xlu0 %3544
        %3546 = vmax.xlane.f32.xlu0 %v1976
        %v3547 = vpop.xlane.xlu0 %3546
        %3548 = vmax.xlane.f32.xlu0 %v1977
        %v3549 = vpop.xlane.xlu0 %3548
        %3550 = vmax.xlane.f32.xlu0 %v1978
        %v3551 = vpop.xlane.xlu0 %3550
        %3552 = vmax.xlane.f32.xlu0 %v1979
        %v3553 = vpop.xlane.xlu0 %3552
        %3554 = vmax.xlane.f32.xlu0 %v1980
        %v3555 = vpop.xlane.xlu0 %3554
        %3556 = vmax.xlane.f32.xlu0 %v1981
        %v3557 = vpop.xlane.xlu0 %3556
        %3558 = vmax.xlane.f32.xlu0 %v2110
        %v3559 = vpop.xlane.xlu0 %3558
        %3560 = vmax.xlane.f32.xlu0 %v2111
        %v3561 = vpop.xlane.xlu0 %3560
        %3562 = vmax.xlane.f32.xlu0 %v2112
        %v3563 = vpop.xlane.xlu0 %3562
        %3564 = vmax.xlane.f32.xlu0 %v2113
        %v3565 = vpop.xlane.xlu0 %3564
        %3566 = vmax.xlane.f32.xlu0 %v2114
        %v3567 = vpop.xlane.xlu0 %3566
        %3568 = vmax.xlane.f32.xlu0 %v2115
        %v3569 = vpop.xlane.xlu0 %3568
        %3570 = vmax.xlane.f32.xlu0 %v2116
        %v3571 = vpop.xlane.xlu0 %3570
        %3572 = vmax.xlane.f32.xlu0 %v2117
        %v3573 = vpop.xlane.xlu0 %3572
        %3574 = vmax.xlane.f32.xlu0 %v2246
        %v3575 = vpop.xlane.xlu0 %3574
        %3576 = vmax.xlane.f32.xlu0 %v2247
        %v3577 = vpop.xlane.xlu0 %3576
        %3578 = vmax.xlane.f32.xlu0 %v2248
        %v3579 = vpop.xlane.xlu0 %3578
        %3580 = vmax.xlane.f32.xlu0 %v2249
        %v3581 = vpop.xlane.xlu0 %3580
        %3582 = vmax.xlane.f32.xlu0 %v2250
        %v3583 = vpop.xlane.xlu0 %3582
        %3584 = vmax.xlane.f32.xlu0 %v2251
        %v3585 = vpop.xlane.xlu0 %3584
        %3586 = vmax.xlane.f32.xlu0 %v2252
        %v3587 = vpop.xlane.xlu0 %3586
        %3588 = vmax.xlane.f32.xlu0 %v2253
        %v3589 = vpop.xlane.xlu0 %3588
        %3590 = vmax.xlane.f32.xlu0 %v2382
        %v3591 = vpop.xlane.xlu0 %3590
        %3592 = vmax.xlane.f32.xlu0 %v2383
        %v3593 = vpop.xlane.xlu0 %3592
        %3594 = vmax.xlane.f32.xlu0 %v2384
        %v3595 = vpop.xlane.xlu0 %3594
        %3596 = vmax.xlane.f32.xlu0 %v2385
        %v3597 = vpop.xlane.xlu0 %3596
        %3598 = vmax.xlane.f32.xlu0 %v2386
        %v3599 = vpop.xlane.xlu0 %3598
        %3600 = vmax.xlane.f32.xlu0 %v2387
        %v3601 = vpop.xlane.xlu0 %3600
        %3602 = vmax.xlane.f32.xlu0 %v2388
        %v3603 = vpop.xlane.xlu0 %3602
        %3604 = vmax.xlane.f32.xlu0 %v2389
        %v3605 = vpop.xlane.xlu0 %3604
        %3606 = vmax.xlane.f32.xlu0 %v2518
        %v3607 = vpop.xlane.xlu0 %3606
        %3608 = vmax.xlane.f32.xlu0 %v2519
        %v3609 = vpop.xlane.xlu0 %3608
        %3610 = vmax.xlane.f32.xlu0 %v2520
        %v3611 = vpop.xlane.xlu0 %3610
        %3612 = vmax.xlane.f32.xlu0 %v2521
        %v3613 = vpop.xlane.xlu0 %3612
        %3614 = vmax.xlane.f32.xlu0 %v2522
        %v3615 = vpop.xlane.xlu0 %3614
        %3616 = vmax.xlane.f32.xlu0 %v2523
        %v3617 = vpop.xlane.xlu0 %3616
        %3618 = vmax.xlane.f32.xlu0 %v2524
        %v3619 = vpop.xlane.xlu0 %3618
        %3620 = vmax.xlane.f32.xlu0 %v2525
        %v3621 = vpop.xlane.xlu0 %3620
        %3622 = vmax.xlane.f32.xlu0 %v2654
        %v3623 = vpop.xlane.xlu0 %3622
        %3624 = vmax.xlane.f32.xlu0 %v2655
        %v3625 = vpop.xlane.xlu0 %3624
        %3626 = vmax.xlane.f32.xlu0 %v2656
        %v3627 = vpop.xlane.xlu0 %3626
        %3628 = vmax.xlane.f32.xlu0 %v2657
        %v3629 = vpop.xlane.xlu0 %3628
        %3630 = vmax.xlane.f32.xlu0 %v2658
        %v3631 = vpop.xlane.xlu0 %3630
        %3632 = vmax.xlane.f32.xlu0 %v2659
        %v3633 = vpop.xlane.xlu0 %3632
        %3634 = vmax.xlane.f32.xlu0 %v2660
        %v3635 = vpop.xlane.xlu0 %3634
        %3636 = vmax.xlane.f32.xlu0 %v2661
        %v3637 = vpop.xlane.xlu0 %3636
        %3638 = vmax.xlane.f32.xlu0 %v2790
        %v3639 = vpop.xlane.xlu0 %3638
        %3640 = vmax.xlane.f32.xlu0 %v2791
        %v3641 = vpop.xlane.xlu0 %3640
        %3642 = vmax.xlane.f32.xlu0 %v2792
        %v3643 = vpop.xlane.xlu0 %3642
        %3644 = vmax.xlane.f32.xlu0 %v2793
        %v3645 = vpop.xlane.xlu0 %3644
        %3646 = vmax.xlane.f32.xlu0 %v2794
        %v3647 = vpop.xlane.xlu0 %3646
        %3648 = vmax.xlane.f32.xlu0 %v2795
        %v3649 = vpop.xlane.xlu0 %3648
        %3650 = vmax.xlane.f32.xlu0 %v2796
        %v3651 = vpop.xlane.xlu0 %3650
        %3652 = vmax.xlane.f32.xlu0 %v2797
        %v3653 = vpop.xlane.xlu0 %3652
        %3654 = vmax.xlane.f32.xlu0 %v2926
        %v3655 = vpop.xlane.xlu0 %3654
        %3656 = vmax.xlane.f32.xlu0 %v2927
        %v3657 = vpop.xlane.xlu0 %3656
        %3658 = vmax.xlane.f32.xlu0 %v2928
        %v3659 = vpop.xlane.xlu0 %3658
        %3660 = vmax.xlane.f32.xlu0 %v2929
        %v3661 = vpop.xlane.xlu0 %3660
        %3662 = vmax.xlane.f32.xlu0 %v2930
        %v3663 = vpop.xlane.xlu0 %3662
        %3664 = vmax.xlane.f32.xlu0 %v2931
        %v3665 = vpop.xlane.xlu0 %3664
        %3666 = vmax.xlane.f32.xlu0 %v2932
        %v3667 = vpop.xlane.xlu0 %3666
        %3668 = vmax.xlane.f32.xlu0 %v2933
        %v3669 = vpop.xlane.xlu0 %3668
        %3670 = vmax.xlane.f32.xlu0 %v3062
        %v3671 = vpop.xlane.xlu0 %3670
        %3672 = vmax.xlane.f32.xlu0 %v3063
        %v3673 = vpop.xlane.xlu0 %3672
        %3674 = vmax.xlane.f32.xlu0 %v3064
        %v3675 = vpop.xlane.xlu0 %3674
        %3676 = vmax.xlane.f32.xlu0 %v3065
        %v3677 = vpop.xlane.xlu0 %3676
        %3678 = vmax.xlane.f32.xlu0 %v3066
        %v3679 = vpop.xlane.xlu0 %3678
        %3680 = vmax.xlane.f32.xlu0 %v3067
        %v3681 = vpop.xlane.xlu0 %3680
        %3682 = vmax.xlane.f32.xlu0 %v3068
        %v3683 = vpop.xlane.xlu0 %3682
        %3684 = vmax.xlane.f32.xlu0 %v3069
        %v3685 = vpop.xlane.xlu0 %3684
        %3686 = vmax.xlane.f32.xlu0 %v3198
        %v3687 = vpop.xlane.xlu0 %3686
        %3688 = vmax.xlane.f32.xlu0 %v3199
        %v3689 = vpop.xlane.xlu0 %3688
        %3690 = vmax.xlane.f32.xlu0 %v3200
        %v3691 = vpop.xlane.xlu0 %3690
        %3692 = vmax.xlane.f32.xlu0 %v3201
        %v3693 = vpop.xlane.xlu0 %3692
        %3694 = vmax.xlane.f32.xlu0 %v3202
        %v3695 = vpop.xlane.xlu0 %3694
        %3696 = vmax.xlane.f32.xlu0 %v3203
        %v3697 = vpop.xlane.xlu0 %3696
        %3698 = vmax.xlane.f32.xlu0 %v3204
        %v3699 = vpop.xlane.xlu0 %3698
        %3700 = vmax.xlane.f32.xlu0 %v3205
        %v3701 = vpop.xlane.xlu0 %3700
        %3702 = vmax.xlane.f32.xlu0 %v3334
        %v3703 = vpop.xlane.xlu0 %3702
        %3704 = vmax.xlane.f32.xlu0 %v3335
        %v3705 = vpop.xlane.xlu0 %3704
        %3706 = vmax.xlane.f32.xlu0 %v3336
        %v3707 = vpop.xlane.xlu0 %3706
        %3708 = vmax.xlane.f32.xlu0 %v3337
        %v3709 = vpop.xlane.xlu0 %3708
        %3710 = vmax.xlane.f32.xlu0 %v3338
        %v3711 = vpop.xlane.xlu0 %3710
        %3712 = vmax.xlane.f32.xlu0 %v3339
        %v3713 = vpop.xlane.xlu0 %3712
        %3714 = vmax.xlane.f32.xlu0 %v3340
        %v3715 = vpop.xlane.xlu0 %3714
        %3716 = vmax.xlane.f32.xlu0 %v3341
        %v3717 = vpop.xlane.xlu0 %3716
        %3718 = vmax.xlane.f32.xlu0 %v3470
        %v3719 = vpop.xlane.xlu0 %3718
        %3720 = vmax.xlane.f32.xlu0 %v3471
        %v3721 = vpop.xlane.xlu0 %3720
        %3722 = vmax.xlane.f32.xlu0 %v3472
        %v3723 = vpop.xlane.xlu0 %3722
        %3724 = vmax.xlane.f32.xlu0 %v3473
        %v3725 = vpop.xlane.xlu0 %3724
        %3726 = vmax.xlane.f32.xlu0 %v3474
        %v3727 = vpop.xlane.xlu0 %3726
        %3728 = vmax.xlane.f32.xlu0 %v3475
        %v3729 = vpop.xlane.xlu0 %3728
        %3730 = vmax.xlane.f32.xlu0 %v3476
        %v3731 = vpop.xlane.xlu0 %3730
        %3732 = vmax.xlane.f32.xlu0 %v3477
        %v3733 = vpop.xlane.xlu0 %3732
        %v3734 = vsub.f32 %v1430, %v3479
        %v3735 = vsub.f32 %v1431, %v3481
        %v3736 = vsub.f32 %v1432, %v3483
        %v3737 = vsub.f32 %v1433, %v3485
        %v3738 = vsub.f32 %v1434, %v3487
        %v3739 = vsub.f32 %v1435, %v3489
        %v3740 = vsub.f32 %v1436, %v3491
        %v3741 = vsub.f32 %v1437, %v3493
        %v3742 = vsub.f32 %v1566, %v3495
        %v3743 = vsub.f32 %v1567, %v3497
        %v3744 = vsub.f32 %v1568, %v3499
        %v3745 = vsub.f32 %v1569, %v3501
        %v3746 = vsub.f32 %v1570, %v3503
        %v3747 = vsub.f32 %v1571, %v3505
        %v3748 = vsub.f32 %v1572, %v3507
        %v3749 = vsub.f32 %v1573, %v3509
        %v3750 = vsub.f32 %v1702, %v3511
        %v3751 = vsub.f32 %v1703, %v3513
        %v3752 = vsub.f32 %v1704, %v3515
        %v3753 = vsub.f32 %v1705, %v3517
        %v3754 = vsub.f32 %v1706, %v3519
        %v3755 = vsub.f32 %v1707, %v3521
        %v3756 = vsub.f32 %v1708, %v3523
        %v3757 = vsub.f32 %v1709, %v3525
        %v3758 = vsub.f32 %v1838, %v3527
        %v3759 = vsub.f32 %v1839, %v3529
        %v3760 = vsub.f32 %v1840, %v3531
        %v3761 = vsub.f32 %v1841, %v3533
        %v3762 = vsub.f32 %v1842, %v3535
        %v3763 = vsub.f32 %v1843, %v3537
        %v3764 = vsub.f32 %v1844, %v3539
        %v3765 = vsub.f32 %v1845, %v3541
        %v3766 = vsub.f32 %v1974, %v3543
        %v3767 = vsub.f32 %v1975, %v3545
        %v3768 = vsub.f32 %v1976, %v3547
        %v3769 = vsub.f32 %v1977, %v3549
        %v3770 = vsub.f32 %v1978, %v3551
        %v3771 = vsub.f32 %v1979, %v3553
        %v3772 = vsub.f32 %v1980, %v3555
        %v3773 = vsub.f32 %v1981, %v3557
        %v3774 = vsub.f32 %v2110, %v3559
        %v3775 = vsub.f32 %v2111, %v3561
        %v3776 = vsub.f32 %v2112, %v3563
        %v3777 = vsub.f32 %v2113, %v3565
        %v3778 = vsub.f32 %v2114, %v3567
        %v3779 = vsub.f32 %v2115, %v3569
        %v3780 = vsub.f32 %v2116, %v3571
        %v3781 = vsub.f32 %v2117, %v3573
        %v3782 = vsub.f32 %v2246, %v3575
        %v3783 = vsub.f32 %v2247, %v3577
        %v3784 = vsub.f32 %v2248, %v3579
        %v3785 = vsub.f32 %v2249, %v3581
        %v3786 = vsub.f32 %v2250, %v3583
        %v3787 = vsub.f32 %v2251, %v3585
        %v3788 = vsub.f32 %v2252, %v3587
        %v3789 = vsub.f32 %v2253, %v3589
        %v3790 = vsub.f32 %v2382, %v3591
        %v3791 = vsub.f32 %v2383, %v3593
        %v3792 = vsub.f32 %v2384, %v3595
        %v3793 = vsub.f32 %v2385, %v3597
        %v3794 = vsub.f32 %v2386, %v3599
        %v3795 = vsub.f32 %v2387, %v3601
        %v3796 = vsub.f32 %v2388, %v3603
        %v3797 = vsub.f32 %v2389, %v3605
        %v3798 = vsub.f32 %v2518, %v3607
        %v3799 = vsub.f32 %v2519, %v3609
        %v3800 = vsub.f32 %v2520, %v3611
        %v3801 = vsub.f32 %v2521, %v3613
        %v3802 = vsub.f32 %v2522, %v3615
        %v3803 = vsub.f32 %v2523, %v3617
        %v3804 = vsub.f32 %v2524, %v3619
        %v3805 = vsub.f32 %v2525, %v3621
        %v3806 = vsub.f32 %v2654, %v3623
        %v3807 = vsub.f32 %v2655, %v3625
        %v3808 = vsub.f32 %v2656, %v3627
        %v3809 = vsub.f32 %v2657, %v3629
        %v3810 = vsub.f32 %v2658, %v3631
        %v3811 = vsub.f32 %v2659, %v3633
        %v3812 = vsub.f32 %v2660, %v3635
        %v3813 = vsub.f32 %v2661, %v3637
        %v3814 = vsub.f32 %v2790, %v3639
        %v3815 = vsub.f32 %v2791, %v3641
        %v3816 = vsub.f32 %v2792, %v3643
        %v3817 = vsub.f32 %v2793, %v3645
        %v3818 = vsub.f32 %v2794, %v3647
        %v3819 = vsub.f32 %v2795, %v3649
        %v3820 = vsub.f32 %v2796, %v3651
        %v3821 = vsub.f32 %v2797, %v3653
        %v3822 = vsub.f32 %v2926, %v3655
        %v3823 = vsub.f32 %v2927, %v3657
        %v3824 = vsub.f32 %v2928, %v3659
        %v3825 = vsub.f32 %v2929, %v3661
        %v3826 = vsub.f32 %v2930, %v3663
        %v3827 = vsub.f32 %v2931, %v3665
        %v3828 = vsub.f32 %v2932, %v3667
        %v3829 = vsub.f32 %v2933, %v3669
        %v3830 = vsub.f32 %v3062, %v3671
        %v3831 = vsub.f32 %v3063, %v3673
        %v3832 = vsub.f32 %v3064, %v3675
        %v3833 = vsub.f32 %v3065, %v3677
        %v3834 = vsub.f32 %v3066, %v3679
        %v3835 = vsub.f32 %v3067, %v3681
        %v3836 = vsub.f32 %v3068, %v3683
        %v3837 = vsub.f32 %v3069, %v3685
        %v3838 = vsub.f32 %v3198, %v3687
        %v3839 = vsub.f32 %v3199, %v3689
        %v3840 = vsub.f32 %v3200, %v3691
        %v3841 = vsub.f32 %v3201, %v3693
        %v3842 = vsub.f32 %v3202, %v3695
        %v3843 = vsub.f32 %v3203, %v3697
        %v3844 = vsub.f32 %v3204, %v3699
        %v3845 = vsub.f32 %v3205, %v3701
        %v3846 = vsub.f32 %v3334, %v3703
        %v3847 = vsub.f32 %v3335, %v3705
        %v3848 = vsub.f32 %v3336, %v3707
        %v3849 = vsub.f32 %v3337, %v3709
        %v3850 = vsub.f32 %v3338, %v3711
        %v3851 = vsub.f32 %v3339, %v3713
        %v3852 = vsub.f32 %v3340, %v3715
        %v3853 = vsub.f32 %v3341, %v3717
        %v3854 = vsub.f32 %v3470, %v3719
        %v3855 = vsub.f32 %v3471, %v3721
        %v3856 = vsub.f32 %v3472, %v3723
        %v3857 = vsub.f32 %v3473, %v3725
        %v3858 = vsub.f32 %v3474, %v3727
        %v3859 = vsub.f32 %v3475, %v3729
        %v3860 = vsub.f32 %v3476, %v3731
        %v3861 = vsub.f32 %v3477, %v3733
        %v3862 = vmul.f32 %v3734, 1.442695
        %v3863 = vpow.pop %v3862
        %v3864 = vmul.f32 %v3735, 1.442695
        %v3865 = vpow.pop %v3864
        %v3866 = vmul.f32 %v3736, 1.442695
        %v3867 = vpow.pop %v3866
        %v3868 = vmul.f32 %v3737, 1.442695
        %v3869 = vpow.pop %v3868
        %v3870 = vmul.f32 %v3738, 1.442695
        %v3871 = vpow.pop %v3870
        %v3872 = vmul.f32 %v3739, 1.442695
        %v3873 = vpow.pop %v3872
        %v3874 = vmul.f32 %v3740, 1.442695
        %v3875 = vpow.pop %v3874
        %v3876 = vmul.f32 %v3741, 1.442695
        %v3877 = vpow.pop %v3876
        %v3878 = vmul.f32 %v3742, 1.442695
        %v3879 = vpow.pop %v3878
        %v3880 = vmul.f32 %v3743, 1.442695
        %v3881 = vpow.pop %v3880
        %v3882 = vmul.f32 %v3744, 1.442695
        %v3883 = vpow.pop %v3882
        %v3884 = vmul.f32 %v3745, 1.442695
        %v3885 = vpow.pop %v3884
        %v3886 = vmul.f32 %v3746, 1.442695
        %v3887 = vpow.pop %v3886
        %v3888 = vmul.f32 %v3747, 1.442695
        %v3889 = vpow.pop %v3888
        %v3890 = vmul.f32 %v3748, 1.442695
        %v3891 = vpow.pop %v3890
        %v3892 = vmul.f32 %v3749, 1.442695
        %v3893 = vpow.pop %v3892
        %v3894 = vmul.f32 %v3750, 1.442695
        %v3895 = vpow.pop %v3894
        %v3896 = vmul.f32 %v3751, 1.442695
        %v3897 = vpow.pop %v3896
        %v3898 = vmul.f32 %v3752, 1.442695
        %v3899 = vpow.pop %v3898
        %v3900 = vmul.f32 %v3753, 1.442695
        %v3901 = vpow.pop %v3900
        %v3902 = vmul.f32 %v3754, 1.442695
        %v3903 = vpow.pop %v3902
        %v3904 = vmul.f32 %v3755, 1.442695
        %v3905 = vpow.pop %v3904
        %v3906 = vmul.f32 %v3756, 1.442695
        %v3907 = vpow.pop %v3906
        %v3908 = vmul.f32 %v3757, 1.442695
        %v3909 = vpow.pop %v3908
        %v3910 = vmul.f32 %v3758, 1.442695
        %v3911 = vpow.pop %v3910
        %v3912 = vmul.f32 %v3759, 1.442695
        %v3913 = vpow.pop %v3912
        %v3914 = vmul.f32 %v3760, 1.442695
        %v3915 = vpow.pop %v3914
        %v3916 = vmul.f32 %v3761, 1.442695
        %v3917 = vpow.pop %v3916
        %v3918 = vmul.f32 %v3762, 1.442695
        %v3919 = vpow.pop %v3918
        %v3920 = vmul.f32 %v3763, 1.442695
        %v3921 = vpow.pop %v3920
        %v3922 = vmul.f32 %v3764, 1.442695
        %v3923 = vpow.pop %v3922
        %v3924 = vmul.f32 %v3765, 1.442695
        %v3925 = vpow.pop %v3924
        %v3926 = vmul.f32 %v3766, 1.442695
        %v3927 = vpow.pop %v3926
        %v3928 = vmul.f32 %v3767, 1.442695
        %v3929 = vpow.pop %v3928
        %v3930 = vmul.f32 %v3768, 1.442695
        %v3931 = vpow.pop %v3930
        %v3932 = vmul.f32 %v3769, 1.442695
        %v3933 = vpow.pop %v3932
        %v3934 = vmul.f32 %v3770, 1.442695
        %v3935 = vpow.pop %v3934
        %v3936 = vmul.f32 %v3771, 1.442695
        %v3937 = vpow.pop %v3936
        %v3938 = vmul.f32 %v3772, 1.442695
        %v3939 = vpow.pop %v3938
        %v3940 = vmul.f32 %v3773, 1.442695
        %v3941 = vpow.pop %v3940
        %v3942 = vmul.f32 %v3774, 1.442695
        %v3943 = vpow.pop %v3942
        %v3944 = vmul.f32 %v3775, 1.442695
        %v3945 = vpow.pop %v3944
        %v3946 = vmul.f32 %v3776, 1.442695
        %v3947 = vpow.pop %v3946
        %v3948 = vmul.f32 %v3777, 1.442695
        %v3949 = vpow.pop %v3948
        %v3950 = vmul.f32 %v3778, 1.442695
        %v3951 = vpow.pop %v3950
        %v3952 = vmul.f32 %v3779, 1.442695
        %v3953 = vpow.pop %v3952
        %v3954 = vmul.f32 %v3780, 1.442695
        %v3955 = vpow.pop %v3954
        %v3956 = vmul.f32 %v3781, 1.442695
        %v3957 = vpow.pop %v3956
        %v3958 = vmul.f32 %v3782, 1.442695
        %v3959 = vpow.pop %v3958
        %v3960 = vmul.f32 %v3783, 1.442695
        %v3961 = vpow.pop %v3960
        %v3962 = vmul.f32 %v3784, 1.442695
        %v3963 = vpow.pop %v3962
        %v3964 = vmul.f32 %v3785, 1.442695
        %v3965 = vpow.pop %v3964
        %v3966 = vmul.f32 %v3786, 1.442695
        %v3967 = vpow.pop %v3966
        %v3968 = vmul.f32 %v3787, 1.442695
        %v3969 = vpow.pop %v3968
        %v3970 = vmul.f32 %v3788, 1.442695
        %v3971 = vpow.pop %v3970
        %v3972 = vmul.f32 %v3789, 1.442695
        %v3973 = vpow.pop %v3972
        %v3974 = vmul.f32 %v3790, 1.442695
        %v3975 = vpow.pop %v3974
        %v3976 = vmul.f32 %v3791, 1.442695
        %v3977 = vpow.pop %v3976
        %v3978 = vmul.f32 %v3792, 1.442695
        %v3979 = vpow.pop %v3978
        %v3980 = vmul.f32 %v3793, 1.442695
        %v3981 = vpow.pop %v3980
        %v3982 = vmul.f32 %v3794, 1.442695
        %v3983 = vpow.pop %v3982
        %v3984 = vmul.f32 %v3795, 1.442695
        %v3985 = vpow.pop %v3984
        %v3986 = vmul.f32 %v3796, 1.442695
        %v3987 = vpow.pop %v3986
        %v3988 = vmul.f32 %v3797, 1.442695
        %v3989 = vpow.pop %v3988
        %v3990 = vmul.f32 %v3798, 1.442695
        %v3991 = vpow.pop %v3990
        %v3992 = vmul.f32 %v3799, 1.442695
        %v3993 = vpow.pop %v3992
        %v3994 = vmul.f32 %v3800, 1.442695
        %v3995 = vpow.pop %v3994
        %v3996 = vmul.f32 %v3801, 1.442695
        %v3997 = vpow.pop %v3996
        %v3998 = vmul.f32 %v3802, 1.442695
        %v3999 = vpow.pop %v3998
        %v4000 = vmul.f32 %v3803, 1.442695
        %v4001 = vpow.pop %v4000
        %v4002 = vmul.f32 %v3804, 1.442695
        %v4003 = vpow.pop %v4002
        %v4004 = vmul.f32 %v3805, 1.442695
        %v4005 = vpow.pop %v4004
        %v4006 = vmul.f32 %v3806, 1.442695
        %v4007 = vpow.pop %v4006
        %v4008 = vmul.f32 %v3807, 1.442695
        %v4009 = vpow.pop %v4008
        %v4010 = vmul.f32 %v3808, 1.442695
        %v4011 = vpow.pop %v4010
        %v4012 = vmul.f32 %v3809, 1.442695
        %v4013 = vpow.pop %v4012
        %v4014 = vmul.f32 %v3810, 1.442695
        %v4015 = vpow.pop %v4014
        %v4016 = vmul.f32 %v3811, 1.442695
        %v4017 = vpow.pop %v4016
        %v4018 = vmul.f32 %v3812, 1.442695
        %v4019 = vpow.pop %v4018
        %v4020 = vmul.f32 %v3813, 1.442695
        %v4021 = vpow.pop %v4020
        %v4022 = vmul.f32 %v3814, 1.442695
        %v4023 = vpow.pop %v4022
        %v4024 = vmul.f32 %v3815, 1.442695
        %v4025 = vpow.pop %v4024
        %v4026 = vmul.f32 %v3816, 1.442695
        %v4027 = vpow.pop %v4026
        %v4028 = vmul.f32 %v3817, 1.442695
        %v4029 = vpow.pop %v4028
        %v4030 = vmul.f32 %v3818, 1.442695
        %v4031 = vpow.pop %v4030
        %v4032 = vmul.f32 %v3819, 1.442695
        %v4033 = vpow.pop %v4032
        %v4034 = vmul.f32 %v3820, 1.442695
        %v4035 = vpow.pop %v4034
        %v4036 = vmul.f32 %v3821, 1.442695
        %v4037 = vpow.pop %v4036
        %v4038 = vmul.f32 %v3822, 1.442695
        %v4039 = vpow.pop %v4038
        %v4040 = vmul.f32 %v3823, 1.442695
        %v4041 = vpow.pop %v4040
        %v4042 = vmul.f32 %v3824, 1.442695
        %v4043 = vpow.pop %v4042
        %v4044 = vmul.f32 %v3825, 1.442695
        %v4045 = vpow.pop %v4044
        %v4046 = vmul.f32 %v3826, 1.442695
        %v4047 = vpow.pop %v4046
        %v4048 = vmul.f32 %v3827, 1.442695
        %v4049 = vpow.pop %v4048
        %v4050 = vmul.f32 %v3828, 1.442695
        %v4051 = vpow.pop %v4050
        %v4052 = vmul.f32 %v3829, 1.442695
        %v4053 = vpow.pop %v4052
        %v4054 = vmul.f32 %v3830, 1.442695
        %v4055 = vpow.pop %v4054
        %v4056 = vmul.f32 %v3831, 1.442695
        %v4057 = vpow.pop %v4056
        %v4058 = vmul.f32 %v3832, 1.442695
        %v4059 = vpow.pop %v4058
        %v4060 = vmul.f32 %v3833, 1.442695
        %v4061 = vpow.pop %v4060
        %v4062 = vmul.f32 %v3834, 1.442695
        %v4063 = vpow.pop %v4062
        %v4064 = vmul.f32 %v3835, 1.442695
        %v4065 = vpow.pop %v4064
        %v4066 = vmul.f32 %v3836, 1.442695
        %v4067 = vpow.pop %v4066
        %v4068 = vmul.f32 %v3837, 1.442695
        %v4069 = vpow.pop %v4068
        %v4070 = vmul.f32 %v3838, 1.442695
        %v4071 = vpow.pop %v4070
        %v4072 = vmul.f32 %v3839, 1.442695
        %v4073 = vpow.pop %v4072
        %v4074 = vmul.f32 %v3840, 1.442695
        %v4075 = vpow.pop %v4074
        %v4076 = vmul.f32 %v3841, 1.442695
        %v4077 = vpow.pop %v4076
        %v4078 = vmul.f32 %v3842, 1.442695
        %v4079 = vpow.pop %v4078
        %v4080 = vmul.f32 %v3843, 1.442695
        %v4081 = vpow.pop %v4080
        %v4082 = vmul.f32 %v3844, 1.442695
        %v4083 = vpow.pop %v4082
        %v4084 = vmul.f32 %v3845, 1.442695
        %v4085 = vpow.pop %v4084
        %v4086 = vmul.f32 %v3846, 1.442695
        %v4087 = vpow.pop %v4086
        %v4088 = vmul.f32 %v3847, 1.442695
        %v4089 = vpow.pop %v4088
        %v4090 = vmul.f32 %v3848, 1.442695
        %v4091 = vpow.pop %v4090
        %v4092 = vmul.f32 %v3849, 1.442695
        %v4093 = vpow.pop %v4092
        %v4094 = vmul.f32 %v3850, 1.442695
        %v4095 = vpow.pop %v4094
        %v4096 = vmul.f32 %v3851, 1.442695
        %v4097 = vpow.pop %v4096
        %v4098 = vmul.f32 %v3852, 1.442695
        %v4099 = vpow.pop %v4098
        %v4100 = vmul.f32 %v3853, 1.442695
        %v4101 = vpow.pop %v4100
        %v4102 = vmul.f32 %v3854, 1.442695
        %v4103 = vpow.pop %v4102
        %v4104 = vmul.f32 %v3855, 1.442695
        %v4105 = vpow.pop %v4104
        %v4106 = vmul.f32 %v3856, 1.442695
        %v4107 = vpow.pop %v4106
        %v4108 = vmul.f32 %v3857, 1.442695
        %v4109 = vpow.pop %v4108
        %v4110 = vmul.f32 %v3858, 1.442695
        %v4111 = vpow.pop %v4110
        %v4112 = vmul.f32 %v3859, 1.442695
        %v4113 = vpow.pop %v4112
        %v4114 = vmul.f32 %v3860, 1.442695
        %v4115 = vpow.pop %v4114
        %v4116 = vmul.f32 %v3861, 1.442695
        %v4117 = vpow.pop %v4116
        %4118 = vadd.xlane.f32.xlu0 %v3863
        %v4119 = vpop.xlane.xlu0 %4118
        %4120 = vadd.xlane.f32.xlu0 %v3865
        %v4121 = vpop.xlane.xlu0 %4120
        %4122 = vadd.xlane.f32.xlu0 %v3867
        %v4123 = vpop.xlane.xlu0 %4122
        %4124 = vadd.xlane.f32.xlu0 %v3869
        %v4125 = vpop.xlane.xlu0 %4124
        %4126 = vadd.xlane.f32.xlu0 %v3871
        %v4127 = vpop.xlane.xlu0 %4126
        %4128 = vadd.xlane.f32.xlu0 %v3873
        %v4129 = vpop.xlane.xlu0 %4128
        %4130 = vadd.xlane.f32.xlu0 %v3875
        %v4131 = vpop.xlane.xlu0 %4130
        %4132 = vadd.xlane.f32.xlu0 %v3877
        %v4133 = vpop.xlane.xlu0 %4132
        %4134 = vadd.xlane.f32.xlu0 %v3879
        %v4135 = vpop.xlane.xlu0 %4134
        %4136 = vadd.xlane.f32.xlu0 %v3881
        %v4137 = vpop.xlane.xlu0 %4136
        %4138 = vadd.xlane.f32.xlu0 %v3883
        %v4139 = vpop.xlane.xlu0 %4138
        %4140 = vadd.xlane.f32.xlu0 %v3885
        %v4141 = vpop.xlane.xlu0 %4140
        %4142 = vadd.xlane.f32.xlu0 %v3887
        %v4143 = vpop.xlane.xlu0 %4142
        %4144 = vadd.xlane.f32.xlu0 %v3889
        %v4145 = vpop.xlane.xlu0 %4144
        %4146 = vadd.xlane.f32.xlu0 %v3891
        %v4147 = vpop.xlane.xlu0 %4146
        %4148 = vadd.xlane.f32.xlu0 %v3893
        %v4149 = vpop.xlane.xlu0 %4148
        %4150 = vadd.xlane.f32.xlu0 %v3895
        %v4151 = vpop.xlane.xlu0 %4150
        %4152 = vadd.xlane.f32.xlu0 %v3897
        %v4153 = vpop.xlane.xlu0 %4152
        %4154 = vadd.xlane.f32.xlu0 %v3899
        %v4155 = vpop.xlane.xlu0 %4154
        %4156 = vadd.xlane.f32.xlu0 %v3901
        %v4157 = vpop.xlane.xlu0 %4156
        %4158 = vadd.xlane.f32.xlu0 %v3903
        %v4159 = vpop.xlane.xlu0 %4158
        %4160 = vadd.xlane.f32.xlu0 %v3905
        %v4161 = vpop.xlane.xlu0 %4160
        %4162 = vadd.xlane.f32.xlu0 %v3907
        %v4163 = vpop.xlane.xlu0 %4162
        %4164 = vadd.xlane.f32.xlu0 %v3909
        %v4165 = vpop.xlane.xlu0 %4164
        %4166 = vadd.xlane.f32.xlu0 %v3911
        %v4167 = vpop.xlane.xlu0 %4166
        %4168 = vadd.xlane.f32.xlu0 %v3913
        %v4169 = vpop.xlane.xlu0 %4168
        %4170 = vadd.xlane.f32.xlu0 %v3915
        %v4171 = vpop.xlane.xlu0 %4170
        %4172 = vadd.xlane.f32.xlu0 %v3917
        %v4173 = vpop.xlane.xlu0 %4172
        %4174 = vadd.xlane.f32.xlu0 %v3919
        %v4175 = vpop.xlane.xlu0 %4174
        %4176 = vadd.xlane.f32.xlu0 %v3921
        %v4177 = vpop.xlane.xlu0 %4176
        %4178 = vadd.xlane.f32.xlu0 %v3923
        %v4179 = vpop.xlane.xlu0 %4178
        %4180 = vadd.xlane.f32.xlu0 %v3925
        %v4181 = vpop.xlane.xlu0 %4180
        %4182 = vadd.xlane.f32.xlu0 %v3927
        %v4183 = vpop.xlane.xlu0 %4182
        %4184 = vadd.xlane.f32.xlu0 %v3929
        %v4185 = vpop.xlane.xlu0 %4184
        %4186 = vadd.xlane.f32.xlu0 %v3931
        %v4187 = vpop.xlane.xlu0 %4186
        %4188 = vadd.xlane.f32.xlu0 %v3933
        %v4189 = vpop.xlane.xlu0 %4188
        %4190 = vadd.xlane.f32.xlu0 %v3935
        %v4191 = vpop.xlane.xlu0 %4190
        %4192 = vadd.xlane.f32.xlu0 %v3937
        %v4193 = vpop.xlane.xlu0 %4192
        %4194 = vadd.xlane.f32.xlu0 %v3939
        %v4195 = vpop.xlane.xlu0 %4194
        %4196 = vadd.xlane.f32.xlu0 %v3941
        %v4197 = vpop.xlane.xlu0 %4196
        %4198 = vadd.xlane.f32.xlu0 %v3943
        %v4199 = vpop.xlane.xlu0 %4198
        %4200 = vadd.xlane.f32.xlu0 %v3945
        %v4201 = vpop.xlane.xlu0 %4200
        %4202 = vadd.xlane.f32.xlu0 %v3947
        %v4203 = vpop.xlane.xlu0 %4202
        %4204 = vadd.xlane.f32.xlu0 %v3949
        %v4205 = vpop.xlane.xlu0 %4204
        %4206 = vadd.xlane.f32.xlu0 %v3951
        %v4207 = vpop.xlane.xlu0 %4206
        %4208 = vadd.xlane.f32.xlu0 %v3953
        %v4209 = vpop.xlane.xlu0 %4208
        %4210 = vadd.xlane.f32.xlu0 %v3955
        %v4211 = vpop.xlane.xlu0 %4210
        %4212 = vadd.xlane.f32.xlu0 %v3957
        %v4213 = vpop.xlane.xlu0 %4212
        %4214 = vadd.xlane.f32.xlu0 %v3959
        %v4215 = vpop.xlane.xlu0 %4214
        %4216 = vadd.xlane.f32.xlu0 %v3961
        %v4217 = vpop.xlane.xlu0 %4216
        %4218 = vadd.xlane.f32.xlu0 %v3963
        %v4219 = vpop.xlane.xlu0 %4218
        %4220 = vadd.xlane.f32.xlu0 %v3965
        %v4221 = vpop.xlane.xlu0 %4220
        %4222 = vadd.xlane.f32.xlu0 %v3967
        %v4223 = vpop.xlane.xlu0 %4222
        %4224 = vadd.xlane.f32.xlu0 %v3969
        %v4225 = vpop.xlane.xlu0 %4224
        %4226 = vadd.xlane.f32.xlu0 %v3971
        %v4227 = vpop.xlane.xlu0 %4226
        %4228 = vadd.xlane.f32.xlu0 %v3973
        %v4229 = vpop.xlane.xlu0 %4228
        %4230 = vadd.xlane.f32.xlu0 %v3975
        %v4231 = vpop.xlane.xlu0 %4230
        %4232 = vadd.xlane.f32.xlu0 %v3977
        %v4233 = vpop.xlane.xlu0 %4232
        %4234 = vadd.xlane.f32.xlu0 %v3979
        %v4235 = vpop.xlane.xlu0 %4234
        %4236 = vadd.xlane.f32.xlu0 %v3981
        %v4237 = vpop.xlane.xlu0 %4236
        %4238 = vadd.xlane.f32.xlu0 %v3983
        %v4239 = vpop.xlane.xlu0 %4238
        %4240 = vadd.xlane.f32.xlu0 %v3985
        %v4241 = vpop.xlane.xlu0 %4240
        %4242 = vadd.xlane.f32.xlu0 %v3987
        %v4243 = vpop.xlane.xlu0 %4242
        %4244 = vadd.xlane.f32.xlu0 %v3989
        %v4245 = vpop.xlane.xlu0 %4244
        %4246 = vadd.xlane.f32.xlu0 %v3991
        %v4247 = vpop.xlane.xlu0 %4246
        %4248 = vadd.xlane.f32.xlu0 %v3993
        %v4249 = vpop.xlane.xlu0 %4248
        %4250 = vadd.xlane.f32.xlu0 %v3995
        %v4251 = vpop.xlane.xlu0 %4250
        %4252 = vadd.xlane.f32.xlu0 %v3997
        %v4253 = vpop.xlane.xlu0 %4252
        %4254 = vadd.xlane.f32.xlu0 %v3999
        %v4255 = vpop.xlane.xlu0 %4254
        %4256 = vadd.xlane.f32.xlu0 %v4001
        %v4257 = vpop.xlane.xlu0 %4256
        %4258 = vadd.xlane.f32.xlu0 %v4003
        %v4259 = vpop.xlane.xlu0 %4258
        %4260 = vadd.xlane.f32.xlu0 %v4005
        %v4261 = vpop.xlane.xlu0 %4260
        %4262 = vadd.xlane.f32.xlu0 %v4007
        %v4263 = vpop.xlane.xlu0 %4262
        %4264 = vadd.xlane.f32.xlu0 %v4009
        %v4265 = vpop.xlane.xlu0 %4264
        %4266 = vadd.xlane.f32.xlu0 %v4011
        %v4267 = vpop.xlane.xlu0 %4266
        %4268 = vadd.xlane.f32.xlu0 %v4013
        %v4269 = vpop.xlane.xlu0 %4268
        %4270 = vadd.xlane.f32.xlu0 %v4015
        %v4271 = vpop.xlane.xlu0 %4270
        %4272 = vadd.xlane.f32.xlu0 %v4017
        %v4273 = vpop.xlane.xlu0 %4272
        %4274 = vadd.xlane.f32.xlu0 %v4019
        %v4275 = vpop.xlane.xlu0 %4274
        %4276 = vadd.xlane.f32.xlu0 %v4021
        %v4277 = vpop.xlane.xlu0 %4276
        %4278 = vadd.xlane.f32.xlu0 %v4023
        %v4279 = vpop.xlane.xlu0 %4278
        %4280 = vadd.xlane.f32.xlu0 %v4025
        %v4281 = vpop.xlane.xlu0 %4280
        %4282 = vadd.xlane.f32.xlu0 %v4027
        %v4283 = vpop.xlane.xlu0 %4282
        %4284 = vadd.xlane.f32.xlu0 %v4029
        %v4285 = vpop.xlane.xlu0 %4284
        %4286 = vadd.xlane.f32.xlu0 %v4031
        %v4287 = vpop.xlane.xlu0 %4286
        %4288 = vadd.xlane.f32.xlu0 %v4033
        %v4289 = vpop.xlane.xlu0 %4288
        %4290 = vadd.xlane.f32.xlu0 %v4035
        %v4291 = vpop.xlane.xlu0 %4290
        %4292 = vadd.xlane.f32.xlu0 %v4037
        %v4293 = vpop.xlane.xlu0 %4292
        %4294 = vadd.xlane.f32.xlu0 %v4039
        %v4295 = vpop.xlane.xlu0 %4294
        %4296 = vadd.xlane.f32.xlu0 %v4041
        %v4297 = vpop.xlane.xlu0 %4296
        %4298 = vadd.xlane.f32.xlu0 %v4043
        %v4299 = vpop.xlane.xlu0 %4298
        %4300 = vadd.xlane.f32.xlu0 %v4045
        %v4301 = vpop.xlane.xlu0 %4300
        %4302 = vadd.xlane.f32.xlu0 %v4047
        %v4303 = vpop.xlane.xlu0 %4302
        %4304 = vadd.xlane.f32.xlu0 %v4049
        %v4305 = vpop.xlane.xlu0 %4304
        %4306 = vadd.xlane.f32.xlu0 %v4051
        %v4307 = vpop.xlane.xlu0 %4306
        %4308 = vadd.xlane.f32.xlu0 %v4053
        %v4309 = vpop.xlane.xlu0 %4308
        %4310 = vadd.xlane.f32.xlu0 %v4055
        %v4311 = vpop.xlane.xlu0 %4310
        %4312 = vadd.xlane.f32.xlu0 %v4057
        %v4313 = vpop.xlane.xlu0 %4312
        %4314 = vadd.xlane.f32.xlu0 %v4059
        %v4315 = vpop.xlane.xlu0 %4314
        %4316 = vadd.xlane.f32.xlu0 %v4061
        %v4317 = vpop.xlane.xlu0 %4316
        %4318 = vadd.xlane.f32.xlu0 %v4063
        %v4319 = vpop.xlane.xlu0 %4318
        %4320 = vadd.xlane.f32.xlu0 %v4065
        %v4321 = vpop.xlane.xlu0 %4320
        %4322 = vadd.xlane.f32.xlu0 %v4067
        %v4323 = vpop.xlane.xlu0 %4322
        %4324 = vadd.xlane.f32.xlu0 %v4069
        %v4325 = vpop.xlane.xlu0 %4324
        %4326 = vadd.xlane.f32.xlu0 %v4071
        %v4327 = vpop.xlane.xlu0 %4326
        %4328 = vadd.xlane.f32.xlu0 %v4073
        %v4329 = vpop.xlane.xlu0 %4328
        %4330 = vadd.xlane.f32.xlu0 %v4075
        %v4331 = vpop.xlane.xlu0 %4330
        %4332 = vadd.xlane.f32.xlu0 %v4077
        %v4333 = vpop.xlane.xlu0 %4332
        %4334 = vadd.xlane.f32.xlu0 %v4079
        %v4335 = vpop.xlane.xlu0 %4334
        %4336 = vadd.xlane.f32.xlu0 %v4081
        %v4337 = vpop.xlane.xlu0 %4336
        %4338 = vadd.xlane.f32.xlu0 %v4083
        %v4339 = vpop.xlane.xlu0 %4338
        %4340 = vadd.xlane.f32.xlu0 %v4085
        %v4341 = vpop.xlane.xlu0 %4340
        %4342 = vadd.xlane.f32.xlu0 %v4087
        %v4343 = vpop.xlane.xlu0 %4342
        %4344 = vadd.xlane.f32.xlu0 %v4089
        %v4345 = vpop.xlane.xlu0 %4344
        %4346 = vadd.xlane.f32.xlu0 %v4091
        %v4347 = vpop.xlane.xlu0 %4346
        %4348 = vadd.xlane.f32.xlu0 %v4093
        %v4349 = vpop.xlane.xlu0 %4348
        %4350 = vadd.xlane.f32.xlu0 %v4095
        %v4351 = vpop.xlane.xlu0 %4350
        %4352 = vadd.xlane.f32.xlu0 %v4097
        %v4353 = vpop.xlane.xlu0 %4352
        %4354 = vadd.xlane.f32.xlu0 %v4099
        %v4355 = vpop.xlane.xlu0 %4354
        %4356 = vadd.xlane.f32.xlu0 %v4101
        %v4357 = vpop.xlane.xlu0 %4356
        %4358 = vadd.xlane.f32.xlu0 %v4103
        %v4359 = vpop.xlane.xlu0 %4358
        %4360 = vadd.xlane.f32.xlu0 %v4105
        %v4361 = vpop.xlane.xlu0 %4360
        %4362 = vadd.xlane.f32.xlu0 %v4107
        %v4363 = vpop.xlane.xlu0 %4362
        %4364 = vadd.xlane.f32.xlu0 %v4109
        %v4365 = vpop.xlane.xlu0 %4364
        %4366 = vadd.xlane.f32.xlu0 %v4111
        %v4367 = vpop.xlane.xlu0 %4366
        %4368 = vadd.xlane.f32.xlu0 %v4113
        %v4369 = vpop.xlane.xlu0 %4368
        %4370 = vadd.xlane.f32.xlu0 %v4115
        %v4371 = vpop.xlane.xlu0 %4370
        %4372 = vadd.xlane.f32.xlu0 %v4117
        %v4373 = vpop.xlane.xlu0 %4372
        %v4374 = vrcp.pop %v4119
        %v4375 = vmul.f32 %v3863, %v4374
        %v4376 = vrcp.pop %v4121
        %v4377 = vmul.f32 %v3865, %v4376
        %v4378 = vrcp.pop %v4123
        %v4379 = vmul.f32 %v3867, %v4378
        %v4380 = vrcp.pop %v4125
        %v4381 = vmul.f32 %v3869, %v4380
        %v4382 = vrcp.pop %v4127
        %v4383 = vmul.f32 %v3871, %v4382
        %v4384 = vrcp.pop %v4129
        %v4385 = vmul.f32 %v3873, %v4384
        %v4386 = vrcp.pop %v4131
        %v4387 = vmul.f32 %v3875, %v4386
        %v4388 = vrcp.pop %v4133
        %v4389 = vmul.f32 %v3877, %v4388
        %v4390 = vrcp.pop %v4135
        %v4391 = vmul.f32 %v3879, %v4390
        %v4392 = vrcp.pop %v4137
        %v4393 = vmul.f32 %v3881, %v4392
        %v4394 = vrcp.pop %v4139
        %v4395 = vmul.f32 %v3883, %v4394
        %v4396 = vrcp.pop %v4141
        %v4397 = vmul.f32 %v3885, %v4396
        %v4398 = vrcp.pop %v4143
        %v4399 = vmul.f32 %v3887, %v4398
        %v4400 = vrcp.pop %v4145
        %v4401 = vmul.f32 %v3889, %v4400
        %v4402 = vrcp.pop %v4147
        %v4403 = vmul.f32 %v3891, %v4402
        %v4404 = vrcp.pop %v4149
        %v4405 = vmul.f32 %v3893, %v4404
        %v4406 = vrcp.pop %v4151
        %v4407 = vmul.f32 %v3895, %v4406
        %v4408 = vrcp.pop %v4153
        %v4409 = vmul.f32 %v3897, %v4408
        %v4410 = vrcp.pop %v4155
        %v4411 = vmul.f32 %v3899, %v4410
        %v4412 = vrcp.pop %v4157
        %v4413 = vmul.f32 %v3901, %v4412
        %v4414 = vrcp.pop %v4159
        %v4415 = vmul.f32 %v3903, %v4414
        %v4416 = vrcp.pop %v4161
        %v4417 = vmul.f32 %v3905, %v4416
        %v4418 = vrcp.pop %v4163
        %v4419 = vmul.f32 %v3907, %v4418
        %v4420 = vrcp.pop %v4165
        %v4421 = vmul.f32 %v3909, %v4420
        %v4422 = vrcp.pop %v4167
        %v4423 = vmul.f32 %v3911, %v4422
        %v4424 = vrcp.pop %v4169
        %v4425 = vmul.f32 %v3913, %v4424
        %v4426 = vrcp.pop %v4171
        %v4427 = vmul.f32 %v3915, %v4426
        %v4428 = vrcp.pop %v4173
        %v4429 = vmul.f32 %v3917, %v4428
        %v4430 = vrcp.pop %v4175
        %v4431 = vmul.f32 %v3919, %v4430
        %v4432 = vrcp.pop %v4177
        %v4433 = vmul.f32 %v3921, %v4432
        %v4434 = vrcp.pop %v4179
        %v4435 = vmul.f32 %v3923, %v4434
        %v4436 = vrcp.pop %v4181
        %v4437 = vmul.f32 %v3925, %v4436
        %v4438 = vrcp.pop %v4183
        %v4439 = vmul.f32 %v3927, %v4438
        %v4440 = vrcp.pop %v4185
        %v4441 = vmul.f32 %v3929, %v4440
        %v4442 = vrcp.pop %v4187
        %v4443 = vmul.f32 %v3931, %v4442
        %v4444 = vrcp.pop %v4189
        %v4445 = vmul.f32 %v3933, %v4444
        %v4446 = vrcp.pop %v4191
        %v4447 = vmul.f32 %v3935, %v4446
        %v4448 = vrcp.pop %v4193
        %v4449 = vmul.f32 %v3937, %v4448
        %v4450 = vrcp.pop %v4195
        %v4451 = vmul.f32 %v3939, %v4450
        %v4452 = vrcp.pop %v4197
        %v4453 = vmul.f32 %v3941, %v4452
        %v4454 = vrcp.pop %v4199
        %v4455 = vmul.f32 %v3943, %v4454
        %v4456 = vrcp.pop %v4201
        %v4457 = vmul.f32 %v3945, %v4456
        %v4458 = vrcp.pop %v4203
        %v4459 = vmul.f32 %v3947, %v4458
        %v4460 = vrcp.pop %v4205
        %v4461 = vmul.f32 %v3949, %v4460
        %v4462 = vrcp.pop %v4207
        %v4463 = vmul.f32 %v3951, %v4462
        %v4464 = vrcp.pop %v4209
        %v4465 = vmul.f32 %v3953, %v4464
        %v4466 = vrcp.pop %v4211
        %v4467 = vmul.f32 %v3955, %v4466
        %v4468 = vrcp.pop %v4213
        %v4469 = vmul.f32 %v3957, %v4468
        %v4470 = vrcp.pop %v4215
        %v4471 = vmul.f32 %v3959, %v4470
        %v4472 = vrcp.pop %v4217
        %v4473 = vmul.f32 %v3961, %v4472
        %v4474 = vrcp.pop %v4219
        %v4475 = vmul.f32 %v3963, %v4474
        %v4476 = vrcp.pop %v4221
        %v4477 = vmul.f32 %v3965, %v4476
        %v4478 = vrcp.pop %v4223
        %v4479 = vmul.f32 %v3967, %v4478
        %v4480 = vrcp.pop %v4225
        %v4481 = vmul.f32 %v3969, %v4480
        %v4482 = vrcp.pop %v4227
        %v4483 = vmul.f32 %v3971, %v4482
        %v4484 = vrcp.pop %v4229
        %v4485 = vmul.f32 %v3973, %v4484
        %v4486 = vrcp.pop %v4231
        %v4487 = vmul.f32 %v3975, %v4486
        %v4488 = vrcp.pop %v4233
        %v4489 = vmul.f32 %v3977, %v4488
        %v4490 = vrcp.pop %v4235
        %v4491 = vmul.f32 %v3979, %v4490
        %v4492 = vrcp.pop %v4237
        %v4493 = vmul.f32 %v3981, %v4492
        %v4494 = vrcp.pop %v4239
        %v4495 = vmul.f32 %v3983, %v4494
        %v4496 = vrcp.pop %v4241
        %v4497 = vmul.f32 %v3985, %v4496
        %v4498 = vrcp.pop %v4243
        %v4499 = vmul.f32 %v3987, %v4498
        %v4500 = vrcp.pop %v4245
        %v4501 = vmul.f32 %v3989, %v4500
        %v4502 = vrcp.pop %v4247
        %v4503 = vmul.f32 %v3991, %v4502
        %v4504 = vrcp.pop %v4249
        %v4505 = vmul.f32 %v3993, %v4504
        %v4506 = vrcp.pop %v4251
        %v4507 = vmul.f32 %v3995, %v4506
        %v4508 = vrcp.pop %v4253
        %v4509 = vmul.f32 %v3997, %v4508
        %v4510 = vrcp.pop %v4255
        %v4511 = vmul.f32 %v3999, %v4510
        %v4512 = vrcp.pop %v4257
        %v4513 = vmul.f32 %v4001, %v4512
        %v4514 = vrcp.pop %v4259
        %v4515 = vmul.f32 %v4003, %v4514
        %v4516 = vrcp.pop %v4261
        %v4517 = vmul.f32 %v4005, %v4516
        %v4518 = vrcp.pop %v4263
        %v4519 = vmul.f32 %v4007, %v4518
        %v4520 = vrcp.pop %v4265
        %v4521 = vmul.f32 %v4009, %v4520
        %v4522 = vrcp.pop %v4267
        %v4523 = vmul.f32 %v4011, %v4522
        %v4524 = vrcp.pop %v4269
        %v4525 = vmul.f32 %v4013, %v4524
        %v4526 = vrcp.pop %v4271
        %v4527 = vmul.f32 %v4015, %v4526
        %v4528 = vrcp.pop %v4273
        %v4529 = vmul.f32 %v4017, %v4528
        %v4530 = vrcp.pop %v4275
        %v4531 = vmul.f32 %v4019, %v4530
        %v4532 = vrcp.pop %v4277
        %v4533 = vmul.f32 %v4021, %v4532
        %v4534 = vrcp.pop %v4279
        %v4535 = vmul.f32 %v4023, %v4534
        %v4536 = vrcp.pop %v4281
        %v4537 = vmul.f32 %v4025, %v4536
        %v4538 = vrcp.pop %v4283
        %v4539 = vmul.f32 %v4027, %v4538
        %v4540 = vrcp.pop %v4285
        %v4541 = vmul.f32 %v4029, %v4540
        %v4542 = vrcp.pop %v4287
        %v4543 = vmul.f32 %v4031, %v4542
        %v4544 = vrcp.pop %v4289
        %v4545 = vmul.f32 %v4033, %v4544
        %v4546 = vrcp.pop %v4291
        %v4547 = vmul.f32 %v4035, %v4546
        %v4548 = vrcp.pop %v4293
        %v4549 = vmul.f32 %v4037, %v4548
        %v4550 = vrcp.pop %v4295
        %v4551 = vmul.f32 %v4039, %v4550
        %v4552 = vrcp.pop %v4297
        %v4553 = vmul.f32 %v4041, %v4552
        %v4554 = vrcp.pop %v4299
        %v4555 = vmul.f32 %v4043, %v4554
        %v4556 = vrcp.pop %v4301
        %v4557 = vmul.f32 %v4045, %v4556
        %v4558 = vrcp.pop %v4303
        %v4559 = vmul.f32 %v4047, %v4558
        %v4560 = vrcp.pop %v4305
        %v4561 = vmul.f32 %v4049, %v4560
        %v4562 = vrcp.pop %v4307
        %v4563 = vmul.f32 %v4051, %v4562
        %v4564 = vrcp.pop %v4309
        %v4565 = vmul.f32 %v4053, %v4564
        %v4566 = vrcp.pop %v4311
        %v4567 = vmul.f32 %v4055, %v4566
        %v4568 = vrcp.pop %v4313
        %v4569 = vmul.f32 %v4057, %v4568
        %v4570 = vrcp.pop %v4315
        %v4571 = vmul.f32 %v4059, %v4570
        %v4572 = vrcp.pop %v4317
        %v4573 = vmul.f32 %v4061, %v4572
        %v4574 = vrcp.pop %v4319
        %v4575 = vmul.f32 %v4063, %v4574
        %v4576 = vrcp.pop %v4321
        %v4577 = vmul.f32 %v4065, %v4576
        %v4578 = vrcp.pop %v4323
        %v4579 = vmul.f32 %v4067, %v4578
        %v4580 = vrcp.pop %v4325
        %v4581 = vmul.f32 %v4069, %v4580
        %v4582 = vrcp.pop %v4327
        %v4583 = vmul.f32 %v4071, %v4582
        %v4584 = vrcp.pop %v4329
        %v4585 = vmul.f32 %v4073, %v4584
        %v4586 = vrcp.pop %v4331
        %v4587 = vmul.f32 %v4075, %v4586
        %v4588 = vrcp.pop %v4333
        %v4589 = vmul.f32 %v4077, %v4588
        %v4590 = vrcp.pop %v4335
        %v4591 = vmul.f32 %v4079, %v4590
        %v4592 = vrcp.pop %v4337
        %v4593 = vmul.f32 %v4081, %v4592
        %v4594 = vrcp.pop %v4339
        %v4595 = vmul.f32 %v4083, %v4594
        %v4596 = vrcp.pop %v4341
        %v4597 = vmul.f32 %v4085, %v4596
        %v4598 = vrcp.pop %v4343
        %v4599 = vmul.f32 %v4087, %v4598
        %v4600 = vrcp.pop %v4345
        %v4601 = vmul.f32 %v4089, %v4600
        %v4602 = vrcp.pop %v4347
        %v4603 = vmul.f32 %v4091, %v4602
        %v4604 = vrcp.pop %v4349
        %v4605 = vmul.f32 %v4093, %v4604
        %v4606 = vrcp.pop %v4351
        %v4607 = vmul.f32 %v4095, %v4606
        %v4608 = vrcp.pop %v4353
        %v4609 = vmul.f32 %v4097, %v4608
        %v4610 = vrcp.pop %v4355
        %v4611 = vmul.f32 %v4099, %v4610
        %v4612 = vrcp.pop %v4357
        %v4613 = vmul.f32 %v4101, %v4612
        %v4614 = vrcp.pop %v4359
        %v4615 = vmul.f32 %v4103, %v4614
        %v4616 = vrcp.pop %v4361
        %v4617 = vmul.f32 %v4105, %v4616
        %v4618 = vrcp.pop %v4363
        %v4619 = vmul.f32 %v4107, %v4618
        %v4620 = vrcp.pop %v4365
        %v4621 = vmul.f32 %v4109, %v4620
        %v4622 = vrcp.pop %v4367
        %v4623 = vmul.f32 %v4111, %v4622
        %v4624 = vrcp.pop %v4369
        %v4625 = vmul.f32 %v4113, %v4624
        %v4626 = vrcp.pop %v4371
        %v4627 = vmul.f32 %v4115, %v4626
        %v4628 = vrcp.pop %v4373
        %v4629 = vmul.f32 %v4117, %v4628
        %v4630 = vld [vmem:[%s329] sm:$0xf]
        %v4631 = vld [vmem:[%s329 + $0x4] sm:$0xf]
        %v4632 = vld [vmem:[%s329 + $0x8] sm:$0xf]
        %v4633 = vld [vmem:[%s329 + $0xc] sm:$0xf]
        %v4634 = vld [vmem:[%s329 + $0x10] sm:$0xf]
        %v4635 = vld [vmem:[%s329 + $0x14] sm:$0xf]
        %v4636 = vld [vmem:[%s329 + $0x18] sm:$0xf]
        %v4637 = vld [vmem:[%s329 + $0x1c] sm:$0xf]
        %v4638 = vld [vmem:[%s329 + $0x20] sm:$0xf]
        %v4639 = vld [vmem:[%s329 + $0x24] sm:$0xf]
        %v4640 = vld [vmem:[%s329 + $0x28] sm:$0xf]
        %v4641 = vld [vmem:[%s329 + $0x2c] sm:$0xf]
        %v4642 = vld [vmem:[%s329 + $0x30] sm:$0xf]
        %v4643 = vld [vmem:[%s329 + $0x34] sm:$0xf]
        %v4644 = vld [vmem:[%s329 + $0x38] sm:$0xf]
        %v4645 = vld [vmem:[%s329 + $0x3c] sm:$0xf]
        %v4646 = vld [vmem:[%s329 + $0x40] sm:$0xf]
        %v4647 = vld [vmem:[%s329 + $0x44] sm:$0xf]
        %v4648 = vld [vmem:[%s329 + $0x48] sm:$0xf]
        %v4649 = vld [vmem:[%s329 + $0x4c] sm:$0xf]
        %v4650 = vld [vmem:[%s329 + $0x50] sm:$0xf]
        %v4651 = vld [vmem:[%s329 + $0x54] sm:$0xf]
        %v4652 = vld [vmem:[%s329 + $0x58] sm:$0xf]
        %v4653 = vld [vmem:[%s329 + $0x5c] sm:$0xf]
        %v4654 = vld [vmem:[%s329 + $0x60] sm:$0xf]
        %v4655 = vld [vmem:[%s329 + $0x64] sm:$0xf]
        %v4656 = vld [vmem:[%s329 + $0x68] sm:$0xf]
        %v4657 = vld [vmem:[%s329 + $0x6c] sm:$0xf]
        %v4658 = vld [vmem:[%s329 + $0x70] sm:$0xf]
        %v4659 = vld [vmem:[%s329 + $0x74] sm:$0xf]
        %v4660 = vld [vmem:[%s329 + $0x78] sm:$0xf]
        %v4661 = vld [vmem:[%s329 + $0x7c] sm:$0xf]
        %v4662 = vld [vmem:[%s329 + $0x80] sm:$0xf]
        %v4663 = vld [vmem:[%s329 + $0x84] sm:$0xf]
        %v4664 = vld [vmem:[%s329 + $0x88] sm:$0xf]
        %v4665 = vld [vmem:[%s329 + $0x8c] sm:$0xf]
        %v4666 = vld [vmem:[%s329 + $0x90] sm:$0xf]
        %v4667 = vld [vmem:[%s329 + $0x94] sm:$0xf]
        %v4668 = vld [vmem:[%s329 + $0x98] sm:$0xf]
        %v4669 = vld [vmem:[%s329 + $0x9c] sm:$0xf]
        %v4670 = vld [vmem:[%s329 + $0xa0] sm:$0xf]
        %v4671 = vld [vmem:[%s329 + $0xa4] sm:$0xf]
        %v4672 = vld [vmem:[%s329 + $0xa8] sm:$0xf]
        %v4673 = vld [vmem:[%s329 + $0xac] sm:$0xf]
        %v4674 = vld [vmem:[%s329 + $0xb0] sm:$0xf]
        %v4675 = vld [vmem:[%s329 + $0xb4] sm:$0xf]
        %v4676 = vld [vmem:[%s329 + $0xb8] sm:$0xf]
        %v4677 = vld [vmem:[%s329 + $0xbc] sm:$0xf]
        %v4678 = vld [vmem:[%s329 + $0xc0] sm:$0xf]
        %v4679 = vld [vmem:[%s329 + $0xc4] sm:$0xf]
        %v4680 = vld [vmem:[%s329 + $0xc8] sm:$0xf]
        %v4681 = vld [vmem:[%s329 + $0xcc] sm:$0xf]
        %v4682 = vld [vmem:[%s329 + $0xd0] sm:$0xf]
        %v4683 = vld [vmem:[%s329 + $0xd4] sm:$0xf]
        %v4684 = vld [vmem:[%s329 + $0xd8] sm:$0xf]
        %v4685 = vld [vmem:[%s329 + $0xdc] sm:$0xf]
        %v4686 = vld [vmem:[%s329 + $0xe0] sm:$0xf]
        %v4687 = vld [vmem:[%s329 + $0xe4] sm:$0xf]
        %v4688 = vld [vmem:[%s329 + $0xe8] sm:$0xf]
        %v4689 = vld [vmem:[%s329 + $0xec] sm:$0xf]
        %v4690 = vld [vmem:[%s329 + $0xf0] sm:$0xf]
        %v4691 = vld [vmem:[%s329 + $0xf4] sm:$0xf]
        %v4692 = vld [vmem:[%s329 + $0xf8] sm:$0xf]
        %v4693 = vld [vmem:[%s329 + $0xfc] sm:$0xf]
        %v4694 = vld [vmem:[%s329 + $0x100] sm:$0xf]
        %v4695 = vld [vmem:[%s329 + $0x104] sm:$0xf]
        %v4696 = vld [vmem:[%s329 + $0x108] sm:$0xf]
        %v4697 = vld [vmem:[%s329 + $0x10c] sm:$0xf]
        %v4698 = vld [vmem:[%s329 + $0x110] sm:$0xf]
        %v4699 = vld [vmem:[%s329 + $0x114] sm:$0xf]
        %v4700 = vld [vmem:[%s329 + $0x118] sm:$0xf]
        %v4701 = vld [vmem:[%s329 + $0x11c] sm:$0xf]
        %v4702 = vld [vmem:[%s329 + $0x120] sm:$0xf]
        %v4703 = vld [vmem:[%s329 + $0x124] sm:$0xf]
        %v4704 = vld [vmem:[%s329 + $0x128] sm:$0xf]
        %v4705 = vld [vmem:[%s329 + $0x12c] sm:$0xf]
        %v4706 = vld [vmem:[%s329 + $0x130] sm:$0xf]
        %v4707 = vld [vmem:[%s329 + $0x134] sm:$0xf]
        %v4708 = vld [vmem:[%s329 + $0x138] sm:$0xf]
        %v4709 = vld [vmem:[%s329 + $0x13c] sm:$0xf]
        %v4710 = vld [vmem:[%s329 + $0x140] sm:$0xf]
        %v4711 = vld [vmem:[%s329 + $0x144] sm:$0xf]
        %v4712 = vld [vmem:[%s329 + $0x148] sm:$0xf]
        %v4713 = vld [vmem:[%s329 + $0x14c] sm:$0xf]
        %v4714 = vld [vmem:[%s329 + $0x150] sm:$0xf]
        %v4715 = vld [vmem:[%s329 + $0x154] sm:$0xf]
        %v4716 = vld [vmem:[%s329 + $0x158] sm:$0xf]
        %v4717 = vld [vmem:[%s329 + $0x15c] sm:$0xf]
        %v4718 = vld [vmem:[%s329 + $0x160] sm:$0xf]
        %v4719 = vld [vmem:[%s329 + $0x164] sm:$0xf]
        %v4720 = vld [vmem:[%s329 + $0x168] sm:$0xf]
        %v4721 = vld [vmem:[%s329 + $0x16c] sm:$0xf]
        %v4722 = vld [vmem:[%s329 + $0x170] sm:$0xf]
        %v4723 = vld [vmem:[%s329 + $0x174] sm:$0xf]
        %v4724 = vld [vmem:[%s329 + $0x178] sm:$0xf]
        %v4725 = vld [vmem:[%s329 + $0x17c] sm:$0xf]
        %v4726 = vld [vmem:[%s329 + $0x180] sm:$0xf]
        %v4727 = vld [vmem:[%s329 + $0x184] sm:$0xf]
        %v4728 = vld [vmem:[%s329 + $0x188] sm:$0xf]
        %v4729 = vld [vmem:[%s329 + $0x18c] sm:$0xf]
        %v4730 = vld [vmem:[%s329 + $0x190] sm:$0xf]
        %v4731 = vld [vmem:[%s329 + $0x194] sm:$0xf]
        %v4732 = vld [vmem:[%s329 + $0x198] sm:$0xf]
        %v4733 = vld [vmem:[%s329 + $0x19c] sm:$0xf]
        %v4734 = vld [vmem:[%s329 + $0x1a0] sm:$0xf]
        %v4735 = vld [vmem:[%s329 + $0x1a4] sm:$0xf]
        %v4736 = vld [vmem:[%s329 + $0x1a8] sm:$0xf]
        %v4737 = vld [vmem:[%s329 + $0x1ac] sm:$0xf]
        %v4738 = vld [vmem:[%s329 + $0x1b0] sm:$0xf]
        %v4739 = vld [vmem:[%s329 + $0x1b4] sm:$0xf]
        %v4740 = vld [vmem:[%s329 + $0x1b8] sm:$0xf]
        %v4741 = vld [vmem:[%s329 + $0x1bc] sm:$0xf]
        %v4742 = vld [vmem:[%s329 + $0x1c0] sm:$0xf]
        %v4743 = vld [vmem:[%s329 + $0x1c4] sm:$0xf]
        %v4744 = vld [vmem:[%s329 + $0x1c8] sm:$0xf]
        %v4745 = vld [vmem:[%s329 + $0x1cc] sm:$0xf]
        %v4746 = vld [vmem:[%s329 + $0x1d0] sm:$0xf]
        %v4747 = vld [vmem:[%s329 + $0x1d4] sm:$0xf]
        %v4748 = vld [vmem:[%s329 + $0x1d8] sm:$0xf]
        %v4749 = vld [vmem:[%s329 + $0x1dc] sm:$0xf]
        %v4750 = vld [vmem:[%s329 + $0x1e0] sm:$0xf]
        %v4751 = vld [vmem:[%s329 + $0x1e4] sm:$0xf]
        %v4752 = vld [vmem:[%s329 + $0x1e8] sm:$0xf]
        %v4753 = vld [vmem:[%s329 + $0x1ec] sm:$0xf]
        %v4754 = vld [vmem:[%s329 + $0x1f0] sm:$0xf]
        %v4755 = vld [vmem:[%s329 + $0x1f4] sm:$0xf]
        %v4756 = vld [vmem:[%s329 + $0x1f8] sm:$0xf]
        %v4757 = vld [vmem:[%s329 + $0x1fc] sm:$0xf]
        %v4758 = vunpack.c.l.bf16 %v4630
        %v4759 = vunpack.c.l.bf16 %v4631
        %v4760 = vunpack.c.l.bf16 %v4632
        %v4761 = vunpack.c.l.bf16 %v4633
        %v4762 = vunpack.c.l.bf16 %v4634
        %v4763 = vunpack.c.l.bf16 %v4635
        %v4764 = vunpack.c.l.bf16 %v4636
        %v4765 = vunpack.c.l.bf16 %v4637
        %v4766 = vunpack.c.l.bf16 %v4638
        %v4767 = vunpack.c.l.bf16 %v4639
        %v4768 = vunpack.c.l.bf16 %v4640
        %v4769 = vunpack.c.l.bf16 %v4641
        %v4770 = vunpack.c.l.bf16 %v4642
        %v4771 = vunpack.c.l.bf16 %v4643
        %v4772 = vunpack.c.l.bf16 %v4644
        %v4773 = vunpack.c.l.bf16 %v4645
        %v4774 = vunpack.c.l.bf16 %v4646
        %v4775 = vunpack.c.l.bf16 %v4647
        %v4776 = vunpack.c.l.bf16 %v4648
        %v4777 = vunpack.c.l.bf16 %v4649
        %v4778 = vunpack.c.l.bf16 %v4650
        %v4779 = vunpack.c.l.bf16 %v4651
        %v4780 = vunpack.c.l.bf16 %v4652
        %v4781 = vunpack.c.l.bf16 %v4653
        %v4782 = vunpack.c.l.bf16 %v4654
        %v4783 = vunpack.c.l.bf16 %v4655
        %v4784 = vunpack.c.l.bf16 %v4656
        %v4785 = vunpack.c.l.bf16 %v4657
        %v4786 = vunpack.c.l.bf16 %v4658
        %v4787 = vunpack.c.l.bf16 %v4659
        %v4788 = vunpack.c.l.bf16 %v4660
        %v4789 = vunpack.c.l.bf16 %v4661
        %v4790 = vunpack.c.l.bf16 %v4662
        %v4791 = vunpack.c.l.bf16 %v4663
        %v4792 = vunpack.c.l.bf16 %v4664
        %v4793 = vunpack.c.l.bf16 %v4665
        %v4794 = vunpack.c.l.bf16 %v4666
        %v4795 = vunpack.c.l.bf16 %v4667
        %v4796 = vunpack.c.l.bf16 %v4668
        %v4797 = vunpack.c.l.bf16 %v4669
        %v4798 = vunpack.c.l.bf16 %v4670
        %v4799 = vunpack.c.l.bf16 %v4671
        %v4800 = vunpack.c.l.bf16 %v4672
        %v4801 = vunpack.c.l.bf16 %v4673
        %v4802 = vunpack.c.l.bf16 %v4674
        %v4803 = vunpack.c.l.bf16 %v4675
        %v4804 = vunpack.c.l.bf16 %v4676
        %v4805 = vunpack.c.l.bf16 %v4677
        %v4806 = vunpack.c.l.bf16 %v4678
        %v4807 = vunpack.c.l.bf16 %v4679
        %v4808 = vunpack.c.l.bf16 %v4680
        %v4809 = vunpack.c.l.bf16 %v4681
        %v4810 = vunpack.c.l.bf16 %v4682
        %v4811 = vunpack.c.l.bf16 %v4683
        %v4812 = vunpack.c.l.bf16 %v4684
        %v4813 = vunpack.c.l.bf16 %v4685
        %v4814 = vunpack.c.l.bf16 %v4686
        %v4815 = vunpack.c.l.bf16 %v4687
        %v4816 = vunpack.c.l.bf16 %v4688
        %v4817 = vunpack.c.l.bf16 %v4689
        %v4818 = vunpack.c.l.bf16 %v4690
        %v4819 = vunpack.c.l.bf16 %v4691
        %v4820 = vunpack.c.l.bf16 %v4692
        %v4821 = vunpack.c.l.bf16 %v4693
        %v4822 = vunpack.c.l.bf16 %v4694
        %v4823 = vunpack.c.l.bf16 %v4695
        %v4824 = vunpack.c.l.bf16 %v4696
        %v4825 = vunpack.c.l.bf16 %v4697
        %v4826 = vunpack.c.l.bf16 %v4698
        %v4827 = vunpack.c.l.bf16 %v4699
        %v4828 = vunpack.c.l.bf16 %v4700
        %v4829 = vunpack.c.l.bf16 %v4701
        %v4830 = vunpack.c.l.bf16 %v4702
        %v4831 = vunpack.c.l.bf16 %v4703
        %v4832 = vunpack.c.l.bf16 %v4704
        %v4833 = vunpack.c.l.bf16 %v4705
        %v4834 = vunpack.c.l.bf16 %v4706
        %v4835 = vunpack.c.l.bf16 %v4707
        %v4836 = vunpack.c.l.bf16 %v4708
        %v4837 = vunpack.c.l.bf16 %v4709
        %v4838 = vunpack.c.l.bf16 %v4710
        %v4839 = vunpack.c.l.bf16 %v4711
        %v4840 = vunpack.c.l.bf16 %v4712
        %v4841 = vunpack.c.l.bf16 %v4713
        %v4842 = vunpack.c.l.bf16 %v4714
        %v4843 = vunpack.c.l.bf16 %v4715
        %v4844 = vunpack.c.l.bf16 %v4716
        %v4845 = vunpack.c.l.bf16 %v4717
        %v4846 = vunpack.c.l.bf16 %v4718
        %v4847 = vunpack.c.l.bf16 %v4719
        %v4848 = vunpack.c.l.bf16 %v4720
        %v4849 = vunpack.c.l.bf16 %v4721
        %v4850 = vunpack.c.l.bf16 %v4722
        %v4851 = vunpack.c.l.bf16 %v4723
        %v4852 = vunpack.c.l.bf16 %v4724
        %v4853 = vunpack.c.l.bf16 %v4725
        %v4854 = vunpack.c.l.bf16 %v4726
        %v4855 = vunpack.c.l.bf16 %v4727
        %v4856 = vunpack.c.l.bf16 %v4728
        %v4857 = vunpack.c.l.bf16 %v4729
        %v4858 = vunpack.c.l.bf16 %v4730
        %v4859 = vunpack.c.l.bf16 %v4731
        %v4860 = vunpack.c.l.bf16 %v4732
        %v4861 = vunpack.c.l.bf16 %v4733
        %v4862 = vunpack.c.l.bf16 %v4734
        %v4863 = vunpack.c.l.bf16 %v4735
        %v4864 = vunpack.c.l.bf16 %v4736
        %v4865 = vunpack.c.l.bf16 %v4737
        %v4866 = vunpack.c.l.bf16 %v4738
        %v4867 = vunpack.c.l.bf16 %v4739
        %v4868 = vunpack.c.l.bf16 %v4740
        %v4869 = vunpack.c.l.bf16 %v4741
        %v4870 = vunpack.c.l.bf16 %v4742
        %v4871 = vunpack.c.l.bf16 %v4743
        %v4872 = vunpack.c.l.bf16 %v4744
        %v4873 = vunpack.c.l.bf16 %v4745
        %v4874 = vunpack.c.l.bf16 %v4746
        %v4875 = vunpack.c.l.bf16 %v4747
        %v4876 = vunpack.c.l.bf16 %v4748
        %v4877 = vunpack.c.l.bf16 %v4749
        %v4878 = vunpack.c.l.bf16 %v4750
        %v4879 = vunpack.c.l.bf16 %v4751
        %v4880 = vunpack.c.l.bf16 %v4752
        %v4881 = vunpack.c.l.bf16 %v4753
        %v4882 = vunpack.c.l.bf16 %v4754
        %v4883 = vunpack.c.l.bf16 %v4755
        %v4884 = vunpack.c.l.bf16 %v4756
        %v4885 = vunpack.c.l.bf16 %v4757
        %v4886 = vadd.f32 %v1430, %v4758
        %v4887 = vadd.f32 %v1431, %v4759
        %v4888 = vadd.f32 %v1432, %v4760
        %v4889 = vadd.f32 %v1433, %v4761
        %v4890 = vadd.f32 %v1434, %v4762
        %v4891 = vadd.f32 %v1435, %v4763
        %v4892 = vadd.f32 %v1436, %v4764
        %v4893 = vadd.f32 %v1437, %v4765
        %v4894 = vadd.f32 %v1566, %v4766
        %v4895 = vadd.f32 %v1567, %v4767
        %v4896 = vadd.f32 %v1568, %v4768
        %v4897 = vadd.f32 %v1569, %v4769
        %v4898 = vadd.f32 %v1570, %v4770
        %v4899 = vadd.f32 %v1571, %v4771
        %v4900 = vadd.f32 %v1572, %v4772
        %v4901 = vadd.f32 %v1573, %v4773
        %v4902 = vadd.f32 %v1702, %v4774
        %v4903 = vadd.f32 %v1703, %v4775
        %v4904 = vadd.f32 %v1704, %v4776
        %v4905 = vadd.f32 %v1705, %v4777
        %v4906 = vadd.f32 %v1706, %v4778
        %v4907 = vadd.f32 %v1707, %v4779
        %v4908 = vadd.f32 %v1708, %v4780
        %v4909 = vadd.f32 %v1709, %v4781
        %v4910 = vadd.f32 %v1838, %v4782
        %v4911 = vadd.f32 %v1839, %v4783
        %v4912 = vadd.f32 %v1840, %v4784
        %v4913 = vadd.f32 %v1841, %v4785
        %v4914 = vadd.f32 %v1842, %v4786
        %v4915 = vadd.f32 %v1843, %v4787
        %v4916 = vadd.f32 %v1844, %v4788
        %v4917 = vadd.f32 %v1845, %v4789
        %v4918 = vadd.f32 %v1974, %v4790
        %v4919 = vadd.f32 %v1975, %v4791
        %v4920 = vadd.f32 %v1976, %v4792
        %v4921 = vadd.f32 %v1977, %v4793
        %v4922 = vadd.f32 %v1978, %v4794
        %v4923 = vadd.f32 %v1979, %v4795
        %v4924 = vadd.f32 %v1980, %v4796
        %v4925 = vadd.f32 %v1981, %v4797
        %v4926 = vadd.f32 %v2110, %v4798
        %v4927 = vadd.f32 %v2111, %v4799
        %v4928 = vadd.f32 %v2112, %v4800
        %v4929 = vadd.f32 %v2113, %v4801
        %v4930 = vadd.f32 %v2114, %v4802
        %v4931 = vadd.f32 %v2115, %v4803
        %v4932 = vadd.f32 %v2116, %v4804
        %v4933 = vadd.f32 %v2117, %v4805
        %v4934 = vadd.f32 %v2246, %v4806
        %v4935 = vadd.f32 %v2247, %v4807
        %v4936 = vadd.f32 %v2248, %v4808
        %v4937 = vadd.f32 %v2249, %v4809
        %v4938 = vadd.f32 %v2250, %v4810
        %v4939 = vadd.f32 %v2251, %v4811
        %v4940 = vadd.f32 %v2252, %v4812
        %v4941 = vadd.f32 %v2253, %v4813
        %v4942 = vadd.f32 %v2382, %v4814
        %v4943 = vadd.f32 %v2383, %v4815
        %v4944 = vadd.f32 %v2384, %v4816
        %v4945 = vadd.f32 %v2385, %v4817
        %v4946 = vadd.f32 %v2386, %v4818
        %v4947 = vadd.f32 %v2387, %v4819
        %v4948 = vadd.f32 %v2388, %v4820
        %v4949 = vadd.f32 %v2389, %v4821
        %v4950 = vadd.f32 %v2518, %v4822
        %v4951 = vadd.f32 %v2519, %v4823
        %v4952 = vadd.f32 %v2520, %v4824
        %v4953 = vadd.f32 %v2521, %v4825
        %v4954 = vadd.f32 %v2522, %v4826
        %v4955 = vadd.f32 %v2523, %v4827
        %v4956 = vadd.f32 %v2524, %v4828
        %v4957 = vadd.f32 %v2525, %v4829
        %v4958 = vadd.f32 %v2654, %v4830
        %v4959 = vadd.f32 %v2655, %v4831
        %v4960 = vadd.f32 %v2656, %v4832
        %v4961 = vadd.f32 %v2657, %v4833
        %v4962 = vadd.f32 %v2658, %v4834
        %v4963 = vadd.f32 %v2659, %v4835
        %v4964 = vadd.f32 %v2660, %v4836
        %v4965 = vadd.f32 %v2661, %v4837
        %v4966 = vadd.f32 %v2790, %v4838
        %v4967 = vadd.f32 %v2791, %v4839
        %v4968 = vadd.f32 %v2792, %v4840
        %v4969 = vadd.f32 %v2793, %v4841
        %v4970 = vadd.f32 %v2794, %v4842
        %v4971 = vadd.f32 %v2795, %v4843
        %v4972 = vadd.f32 %v2796, %v4844
        %v4973 = vadd.f32 %v2797, %v4845
        %v4974 = vadd.f32 %v2926, %v4846
        %v4975 = vadd.f32 %v2927, %v4847
        %v4976 = vadd.f32 %v2928, %v4848
        %v4977 = vadd.f32 %v2929, %v4849
        %v4978 = vadd.f32 %v2930, %v4850
        %v4979 = vadd.f32 %v2931, %v4851
        %v4980 = vadd.f32 %v2932, %v4852
        %v4981 = vadd.f32 %v2933, %v4853
        %v4982 = vadd.f32 %v3062, %v4854
        %v4983 = vadd.f32 %v3063, %v4855
        %v4984 = vadd.f32 %v3064, %v4856
        %v4985 = vadd.f32 %v3065, %v4857
        %v4986 = vadd.f32 %v3066, %v4858
        %v4987 = vadd.f32 %v3067, %v4859
        %v4988 = vadd.f32 %v3068, %v4860
        %v4989 = vadd.f32 %v3069, %v4861
        %v4990 = vadd.f32 %v3198, %v4862
        %v4991 = vadd.f32 %v3199, %v4863
        %v4992 = vadd.f32 %v3200, %v4864
        %v4993 = vadd.f32 %v3201, %v4865
        %v4994 = vadd.f32 %v3202, %v4866
        %v4995 = vadd.f32 %v3203, %v4867
        %v4996 = vadd.f32 %v3204, %v4868
        %v4997 = vadd.f32 %v3205, %v4869
        %v4998 = vadd.f32 %v3334, %v4870
        %v4999 = vadd.f32 %v3335, %v4871
        %v5000 = vadd.f32 %v3336, %v4872
        %v5001 = vadd.f32 %v3337, %v4873
        %v5002 = vadd.f32 %v3338, %v4874
        %v5003 = vadd.f32 %v3339, %v4875
        %v5004 = vadd.f32 %v3340, %v4876
        %v5005 = vadd.f32 %v3341, %v4877
        %v5006 = vadd.f32 %v3470, %v4878
        %v5007 = vadd.f32 %v3471, %v4879
        %v5008 = vadd.f32 %v3472, %v4880
        %v5009 = vadd.f32 %v3473, %v4881
        %v5010 = vadd.f32 %v3474, %v4882
        %v5011 = vadd.f32 %v3475, %v4883
        %v5012 = vadd.f32 %v3476, %v4884
        %v5013 = vadd.f32 %v3477, %v4885
        %5014 = vmax.xlane.f32.xlu0 %v4886
        %v5015 = vpop.xlane.xlu0 %5014
        %5016 = vmax.xlane.f32.xlu0 %v4887
        %v5017 = vpop.xlane.xlu0 %5016
        %5018 = vmax.xlane.f32.xlu0 %v4888
        %v5019 = vpop.xlane.xlu0 %5018
        %5020 = vmax.xlane.f32.xlu0 %v4889
        %v5021 = vpop.xlane.xlu0 %5020
        %5022 = vmax.xlane.f32.xlu0 %v4890
        %v5023 = vpop.xlane.xlu0 %5022
        %5024 = vmax.xlane.f32.xlu0 %v4891
        %v5025 = vpop.xlane.xlu0 %5024
        %5026 = vmax.xlane.f32.xlu0 %v4892
        %v5027 = vpop.xlane.xlu0 %5026
        %5028 = vmax.xlane.f32.xlu0 %v4893
        %v5029 = vpop.xlane.xlu0 %5028
        %5030 = vmax.xlane.f32.xlu0 %v4894
        %v5031 = vpop.xlane.xlu0 %5030
        %5032 = vmax.xlane.f32.xlu0 %v4895
        %v5033 = vpop.xlane.xlu0 %5032
        %5034 = vmax.xlane.f32.xlu0 %v4896
        %v5035 = vpop.xlane.xlu0 %5034
        %5036 = vmax.xlane.f32.xlu0 %v4897
        %v5037 = vpop.xlane.xlu0 %5036
        %5038 = vmax.xlane.f32.xlu0 %v4898
        %v5039 = vpop.xlane.xlu0 %5038
        %5040 = vmax.xlane.f32.xlu0 %v4899
        %v5041 = vpop.xlane.xlu0 %5040
        %5042 = vmax.xlane.f32.xlu0 %v4900
        %v5043 = vpop.xlane.xlu0 %5042
        %5044 = vmax.xlane.f32.xlu0 %v4901
        %v5045 = vpop.xlane.xlu0 %5044
        %5046 = vmax.xlane.f32.xlu0 %v4902
        %v5047 = vpop.xlane.xlu0 %5046
        %5048 = vmax.xlane.f32.xlu0 %v4903
        %v5049 = vpop.xlane.xlu0 %5048
        %5050 = vmax.xlane.f32.xlu0 %v4904
        %v5051 = vpop.xlane.xlu0 %5050
        %5052 = vmax.xlane.f32.xlu0 %v4905
        %v5053 = vpop.xlane.xlu0 %5052
        %5054 = vmax.xlane.f32.xlu0 %v4906
        %v5055 = vpop.xlane.xlu0 %5054
        %5056 = vmax.xlane.f32.xlu0 %v4907
        %v5057 = vpop.xlane.xlu0 %5056
        %5058 = vmax.xlane.f32.xlu0 %v4908
        %v5059 = vpop.xlane.xlu0 %5058
        %5060 = vmax.xlane.f32.xlu0 %v4909
        %v5061 = vpop.xlane.xlu0 %5060
        %5062 = vmax.xlane.f32.xlu0 %v4910
        %v5063 = vpop.xlane.xlu0 %5062
        %5064 = vmax.xlane.f32.xlu0 %v4911
        %v5065 = vpop.xlane.xlu0 %5064
        %5066 = vmax.xlane.f32.xlu0 %v4912
        %v5067 = vpop.xlane.xlu0 %5066
        %5068 = vmax.xlane.f32.xlu0 %v4913
        %v5069 = vpop.xlane.xlu0 %5068
        %5070 = vmax.xlane.f32.xlu0 %v4914
        %v5071 = vpop.xlane.xlu0 %5070
        %5072 = vmax.xlane.f32.xlu0 %v4915
        %v5073 = vpop.xlane.xlu0 %5072
        %5074 = vmax.xlane.f32.xlu0 %v4916
        %v5075 = vpop.xlane.xlu0 %5074
        %5076 = vmax.xlane.f32.xlu0 %v4917
        %v5077 = vpop.xlane.xlu0 %5076
        %5078 = vmax.xlane.f32.xlu0 %v4918
        %v5079 = vpop.xlane.xlu0 %5078
        %5080 = vmax.xlane.f32.xlu0 %v4919
        %v5081 = vpop.xlane.xlu0 %5080
        %5082 = vmax.xlane.f32.xlu0 %v4920
        %v5083 = vpop.xlane.xlu0 %5082
        %5084 = vmax.xlane.f32.xlu0 %v4921
        %v5085 = vpop.xlane.xlu0 %5084
        %5086 = vmax.xlane.f32.xlu0 %v4922
        %v5087 = vpop.xlane.xlu0 %5086
        %5088 = vmax.xlane.f32.xlu0 %v4923
        %v5089 = vpop.xlane.xlu0 %5088
        %5090 = vmax.xlane.f32.xlu0 %v4924
        %v5091 = vpop.xlane.xlu0 %5090
        %5092 = vmax.xlane.f32.xlu0 %v4925
        %v5093 = vpop.xlane.xlu0 %5092
        %5094 = vmax.xlane.f32.xlu0 %v4926
        %v5095 = vpop.xlane.xlu0 %5094
        %5096 = vmax.xlane.f32.xlu0 %v4927
        %v5097 = vpop.xlane.xlu0 %5096
        %5098 = vmax.xlane.f32.xlu0 %v4928
        %v5099 = vpop.xlane.xlu0 %5098
        %5100 = vmax.xlane.f32.xlu0 %v4929
        %v5101 = vpop.xlane.xlu0 %5100
        %5102 = vmax.xlane.f32.xlu0 %v4930
        %v5103 = vpop.xlane.xlu0 %5102
        %5104 = vmax.xlane.f32.xlu0 %v4931
        %v5105 = vpop.xlane.xlu0 %5104
        %5106 = vmax.xlane.f32.xlu0 %v4932
        %v5107 = vpop.xlane.xlu0 %5106
        %5108 = vmax.xlane.f32.xlu0 %v4933
        %v5109 = vpop.xlane.xlu0 %5108
        %5110 = vmax.xlane.f32.xlu0 %v4934
        %v5111 = vpop.xlane.xlu0 %5110
        %5112 = vmax.xlane.f32.xlu0 %v4935
        %v5113 = vpop.xlane.xlu0 %5112
        %5114 = vmax.xlane.f32.xlu0 %v4936
        %v5115 = vpop.xlane.xlu0 %5114
        %5116 = vmax.xlane.f32.xlu0 %v4937
        %v5117 = vpop.xlane.xlu0 %5116
        %5118 = vmax.xlane.f32.xlu0 %v4938
        %v5119 = vpop.xlane.xlu0 %5118
        %5120 = vmax.xlane.f32.xlu0 %v4939
        %v5121 = vpop.xlane.xlu0 %5120
        %5122 = vmax.xlane.f32.xlu0 %v4940
        %v5123 = vpop.xlane.xlu0 %5122
        %5124 = vmax.xlane.f32.xlu0 %v4941
        %v5125 = vpop.xlane.xlu0 %5124
        %5126 = vmax.xlane.f32.xlu0 %v4942
        %v5127 = vpop.xlane.xlu0 %5126
        %5128 = vmax.xlane.f32.xlu0 %v4943
        %v5129 = vpop.xlane.xlu0 %5128
        %5130 = vmax.xlane.f32.xlu0 %v4944
        %v5131 = vpop.xlane.xlu0 %5130
        %5132 = vmax.xlane.f32.xlu0 %v4945
        %v5133 = vpop.xlane.xlu0 %5132
        %5134 = vmax.xlane.f32.xlu0 %v4946
        %v5135 = vpop.xlane.xlu0 %5134
        %5136 = vmax.xlane.f32.xlu0 %v4947
        %v5137 = vpop.xlane.xlu0 %5136
        %5138 = vmax.xlane.f32.xlu0 %v4948
        %v5139 = vpop.xlane.xlu0 %5138
        %5140 = vmax.xlane.f32.xlu0 %v4949
        %v5141 = vpop.xlane.xlu0 %5140
        %5142 = vmax.xlane.f32.xlu0 %v4950
        %v5143 = vpop.xlane.xlu0 %5142
        %5144 = vmax.xlane.f32.xlu0 %v4951
        %v5145 = vpop.xlane.xlu0 %5144
        %5146 = vmax.xlane.f32.xlu0 %v4952
        %v5147 = vpop.xlane.xlu0 %5146
        %5148 = vmax.xlane.f32.xlu0 %v4953
        %v5149 = vpop.xlane.xlu0 %5148
        %5150 = vmax.xlane.f32.xlu0 %v4954
        %v5151 = vpop.xlane.xlu0 %5150
        %5152 = vmax.xlane.f32.xlu0 %v4955
        %v5153 = vpop.xlane.xlu0 %5152
        %5154 = vmax.xlane.f32.xlu0 %v4956
        %v5155 = vpop.xlane.xlu0 %5154
        %5156 = vmax.xlane.f32.xlu0 %v4957
        %v5157 = vpop.xlane.xlu0 %5156
        %5158 = vmax.xlane.f32.xlu0 %v4958
        %v5159 = vpop.xlane.xlu0 %5158
        %5160 = vmax.xlane.f32.xlu0 %v4959
        %v5161 = vpop.xlane.xlu0 %5160
        %5162 = vmax.xlane.f32.xlu0 %v4960
        %v5163 = vpop.xlane.xlu0 %5162
        %5164 = vmax.xlane.f32.xlu0 %v4961
        %v5165 = vpop.xlane.xlu0 %5164
        %5166 = vmax.xlane.f32.xlu0 %v4962
        %v5167 = vpop.xlane.xlu0 %5166
        %5168 = vmax.xlane.f32.xlu0 %v4963
        %v5169 = vpop.xlane.xlu0 %5168
        %5170 = vmax.xlane.f32.xlu0 %v4964
        %v5171 = vpop.xlane.xlu0 %5170
        %5172 = vmax.xlane.f32.xlu0 %v4965
        %v5173 = vpop.xlane.xlu0 %5172
        %5174 = vmax.xlane.f32.xlu0 %v4966
        %v5175 = vpop.xlane.xlu0 %5174
        %5176 = vmax.xlane.f32.xlu0 %v4967
        %v5177 = vpop.xlane.xlu0 %5176
        %5178 = vmax.xlane.f32.xlu0 %v4968
        %v5179 = vpop.xlane.xlu0 %5178
        %5180 = vmax.xlane.f32.xlu0 %v4969
        %v5181 = vpop.xlane.xlu0 %5180
        %5182 = vmax.xlane.f32.xlu0 %v4970
        %v5183 = vpop.xlane.xlu0 %5182
        %5184 = vmax.xlane.f32.xlu0 %v4971
        %v5185 = vpop.xlane.xlu0 %5184
        %5186 = vmax.xlane.f32.xlu0 %v4972
        %v5187 = vpop.xlane.xlu0 %5186
        %5188 = vmax.xlane.f32.xlu0 %v4973
        %v5189 = vpop.xlane.xlu0 %5188
        %5190 = vmax.xlane.f32.xlu0 %v4974
        %v5191 = vpop.xlane.xlu0 %5190
        %5192 = vmax.xlane.f32.xlu0 %v4975
        %v5193 = vpop.xlane.xlu0 %5192
        %5194 = vmax.xlane.f32.xlu0 %v4976
        %v5195 = vpop.xlane.xlu0 %5194
        %5196 = vmax.xlane.f32.xlu0 %v4977
        %v5197 = vpop.xlane.xlu0 %5196
        %5198 = vmax.xlane.f32.xlu0 %v4978
        %v5199 = vpop.xlane.xlu0 %5198
        %5200 = vmax.xlane.f32.xlu0 %v4979
        %v5201 = vpop.xlane.xlu0 %5200
        %5202 = vmax.xlane.f32.xlu0 %v4980
        %v5203 = vpop.xlane.xlu0 %5202
        %5204 = vmax.xlane.f32.xlu0 %v4981
        %v5205 = vpop.xlane.xlu0 %5204
        %5206 = vmax.xlane.f32.xlu0 %v4982
        %v5207 = vpop.xlane.xlu0 %5206
        %5208 = vmax.xlane.f32.xlu0 %v4983
        %v5209 = vpop.xlane.xlu0 %5208
        %5210 = vmax.xlane.f32.xlu0 %v4984
        %v5211 = vpop.xlane.xlu0 %5210
        %5212 = vmax.xlane.f32.xlu0 %v4985
        %v5213 = vpop.xlane.xlu0 %5212
        %5214 = vmax.xlane.f32.xlu0 %v4986
        %v5215 = vpop.xlane.xlu0 %5214
        %5216 = vmax.xlane.f32.xlu0 %v4987
        %v5217 = vpop.xlane.xlu0 %5216
        %5218 = vmax.xlane.f32.xlu0 %v4988
        %v5219 = vpop.xlane.xlu0 %5218
        %5220 = vmax.xlane.f32.xlu0 %v4989
        %v5221 = vpop.xlane.xlu0 %5220
        %5222 = vmax.xlane.f32.xlu0 %v4990
        %v5223 = vpop.xlane.xlu0 %5222
        %5224 = vmax.xlane.f32.xlu0 %v4991
        %v5225 = vpop.xlane.xlu0 %5224
        %5226 = vmax.xlane.f32.xlu0 %v4992
        %v5227 = vpop.xlane.xlu0 %5226
        %5228 = vmax.xlane.f32.xlu0 %v4993
        %v5229 = vpop.xlane.xlu0 %5228
        %5230 = vmax.xlane.f32.xlu0 %v4994
        %v5231 = vpop.xlane.xlu0 %5230
        %5232 = vmax.xlane.f32.xlu0 %v4995
        %v5233 = vpop.xlane.xlu0 %5232
        %5234 = vmax.xlane.f32.xlu0 %v4996
        %v5235 = vpop.xlane.xlu0 %5234
        %5236 = vmax.xlane.f32.xlu0 %v4997
        %v5237 = vpop.xlane.xlu0 %5236
        %5238 = vmax.xlane.f32.xlu0 %v4998
        %v5239 = vpop.xlane.xlu0 %5238
        %5240 = vmax.xlane.f32.xlu0 %v4999
        %v5241 = vpop.xlane.xlu0 %5240
        %5242 = vmax.xlane.f32.xlu0 %v5000
        %v5243 = vpop.xlane.xlu0 %5242
        %5244 = vmax.xlane.f32.xlu0 %v5001
        %v5245 = vpop.xlane.xlu0 %5244
        %5246 = vmax.xlane.f32.xlu0 %v5002
        %v5247 = vpop.xlane.xlu0 %5246
        %5248 = vmax.xlane.f32.xlu0 %v5003
        %v5249 = vpop.xlane.xlu0 %5248
        %5250 = vmax.xlane.f32.xlu0 %v5004
        %v5251 = vpop.xlane.xlu0 %5250
        %5252 = vmax.xlane.f32.xlu0 %v5005
        %v5253 = vpop.xlane.xlu0 %5252
        %5254 = vmax.xlane.f32.xlu0 %v5006
        %v5255 = vpop.xlane.xlu0 %5254
        %5256 = vmax.xlane.f32.xlu0 %v5007
        %v5257 = vpop.xlane.xlu0 %5256
        %5258 = vmax.xlane.f32.xlu0 %v5008
        %v5259 = vpop.xlane.xlu0 %5258
        %5260 = vmax.xlane.f32.xlu0 %v5009
        %v5261 = vpop.xlane.xlu0 %5260
        %5262 = vmax.xlane.f32.xlu0 %v5010
        %v5263 = vpop.xlane.xlu0 %5262
        %5264 = vmax.xlane.f32.xlu0 %v5011
        %v5265 = vpop.xlane.xlu0 %5264
        %5266 = vmax.xlane.f32.xlu0 %v5012
        %v5267 = vpop.xlane.xlu0 %5266
        %5268 = vmax.xlane.f32.xlu0 %v5013
        %v5269 = vpop.xlane.xlu0 %5268
        %vm5270 = vcmp.ge.f32.partialorder %v4886, %v5015
        %vm5271 = vcmp.ge.f32.partialorder %v4887, %v5017
        %vm5272 = vcmp.ge.f32.partialorder %v4888, %v5019
        %vm5273 = vcmp.ge.f32.partialorder %v4889, %v5021
        %vm5274 = vcmp.ge.f32.partialorder %v4890, %v5023
        %vm5275 = vcmp.ge.f32.partialorder %v4891, %v5025
        %vm5276 = vcmp.ge.f32.partialorder %v4892, %v5027
        %vm5277 = vcmp.ge.f32.partialorder %v4893, %v5029
        %vm5278 = vcmp.ge.f32.partialorder %v4894, %v5031
        %vm5279 = vcmp.ge.f32.partialorder %v4895, %v5033
        %vm5280 = vcmp.ge.f32.partialorder %v4896, %v5035
        %vm5281 = vcmp.ge.f32.partialorder %v4897, %v5037
        %vm5282 = vcmp.ge.f32.partialorder %v4898, %v5039
        %vm5283 = vcmp.ge.f32.partialorder %v4899, %v5041
        %vm5284 = vcmp.ge.f32.partialorder %v4900, %v5043
        %vm5285 = vcmp.ge.f32.partialorder %v4901, %v5045
        %vm5286 = vcmp.ge.f32.partialorder %v4902, %v5047
        %vm5287 = vcmp.ge.f32.partialorder %v4903, %v5049
        %vm5288 = vcmp.ge.f32.partialorder %v4904, %v5051
        %vm5289 = vcmp.ge.f32.partialorder %v4905, %v5053
        %vm5290 = vcmp.ge.f32.partialorder %v4906, %v5055
        %vm5291 = vcmp.ge.f32.partialorder %v4907, %v5057
        %vm5292 = vcmp.ge.f32.partialorder %v4908, %v5059
        %vm5293 = vcmp.ge.f32.partialorder %v4909, %v5061
        %vm5294 = vcmp.ge.f32.partialorder %v4910, %v5063
        %vm5295 = vcmp.ge.f32.partialorder %v4911, %v5065
        %vm5296 = vcmp.ge.f32.partialorder %v4912, %v5067
        %vm5297 = vcmp.ge.f32.partialorder %v4913, %v5069
        %vm5298 = vcmp.ge.f32.partialorder %v4914, %v5071
        %vm5299 = vcmp.ge.f32.partialorder %v4915, %v5073
        %vm5300 = vcmp.ge.f32.partialorder %v4916, %v5075
        %vm5301 = vcmp.ge.f32.partialorder %v4917, %v5077
        %vm5302 = vcmp.ge.f32.partialorder %v4918, %v5079
        %vm5303 = vcmp.ge.f32.partialorder %v4919, %v5081
        %vm5304 = vcmp.ge.f32.partialorder %v4920, %v5083
        %vm5305 = vcmp.ge.f32.partialorder %v4921, %v5085
        %vm5306 = vcmp.ge.f32.partialorder %v4922, %v5087
        %vm5307 = vcmp.ge.f32.partialorder %v4923, %v5089
        %vm5308 = vcmp.ge.f32.partialorder %v4924, %v5091
        %vm5309 = vcmp.ge.f32.partialorder %v4925, %v5093
        %vm5310 = vcmp.ge.f32.partialorder %v4926, %v5095
        %vm5311 = vcmp.ge.f32.partialorder %v4927, %v5097
        %vm5312 = vcmp.ge.f32.partialorder %v4928, %v5099
        %vm5313 = vcmp.ge.f32.partialorder %v4929, %v5101
        %vm5314 = vcmp.ge.f32.partialorder %v4930, %v5103
        %vm5315 = vcmp.ge.f32.partialorder %v4931, %v5105
        %vm5316 = vcmp.ge.f32.partialorder %v4932, %v5107
        %vm5317 = vcmp.ge.f32.partialorder %v4933, %v5109
        %vm5318 = vcmp.ge.f32.partialorder %v4934, %v5111
        %vm5319 = vcmp.ge.f32.partialorder %v4935, %v5113
        %vm5320 = vcmp.ge.f32.partialorder %v4936, %v5115
        %vm5321 = vcmp.ge.f32.partialorder %v4937, %v5117
        %vm5322 = vcmp.ge.f32.partialorder %v4938, %v5119
        %vm5323 = vcmp.ge.f32.partialorder %v4939, %v5121
        %vm5324 = vcmp.ge.f32.partialorder %v4940, %v5123
        %vm5325 = vcmp.ge.f32.partialorder %v4941, %v5125
        %vm5326 = vcmp.ge.f32.partialorder %v4942, %v5127
        %vm5327 = vcmp.ge.f32.partialorder %v4943, %v5129
        %vm5328 = vcmp.ge.f32.partialorder %v4944, %v5131
        %vm5329 = vcmp.ge.f32.partialorder %v4945, %v5133
        %vm5330 = vcmp.ge.f32.partialorder %v4946, %v5135
        %vm5331 = vcmp.ge.f32.partialorder %v4947, %v5137
        %vm5332 = vcmp.ge.f32.partialorder %v4948, %v5139
        %vm5333 = vcmp.ge.f32.partialorder %v4949, %v5141
        %vm5334 = vcmp.ge.f32.partialorder %v4950, %v5143
        %vm5335 = vcmp.ge.f32.partialorder %v4951, %v5145
        %vm5336 = vcmp.ge.f32.partialorder %v4952, %v5147
        %vm5337 = vcmp.ge.f32.partialorder %v4953, %v5149
        %vm5338 = vcmp.ge.f32.partialorder %v4954, %v5151
        %vm5339 = vcmp.ge.f32.partialorder %v4955, %v5153
        %vm5340 = vcmp.ge.f32.partialorder %v4956, %v5155
        %vm5341 = vcmp.ge.f32.partialorder %v4957, %v5157
        %vm5342 = vcmp.ge.f32.partialorder %v4958, %v5159
        %vm5343 = vcmp.ge.f32.partialorder %v4959, %v5161
        %vm5344 = vcmp.ge.f32.partialorder %v4960, %v5163
        %vm5345 = vcmp.ge.f32.partialorder %v4961, %v5165
        %vm5346 = vcmp.ge.f32.partialorder %v4962, %v5167
        %vm5347 = vcmp.ge.f32.partialorder %v4963, %v5169
        %vm5348 = vcmp.ge.f32.partialorder %v4964, %v5171
        %vm5349 = vcmp.ge.f32.partialorder %v4965, %v5173
        %vm5350 = vcmp.ge.f32.partialorder %v4966, %v5175
        %vm5351 = vcmp.ge.f32.partialorder %v4967, %v5177
        %vm5352 = vcmp.ge.f32.partialorder %v4968, %v5179
        %vm5353 = vcmp.ge.f32.partialorder %v4969, %v5181
        %vm5354 = vcmp.ge.f32.partialorder %v4970, %v5183
        %vm5355 = vcmp.ge.f32.partialorder %v4971, %v5185
        %vm5356 = vcmp.ge.f32.partialorder %v4972, %v5187
        %vm5357 = vcmp.ge.f32.partialorder %v4973, %v5189
        %vm5358 = vcmp.ge.f32.partialorder %v4974, %v5191
        %vm5359 = vcmp.ge.f32.partialorder %v4975, %v5193
        %vm5360 = vcmp.ge.f32.partialorder %v4976, %v5195
        %vm5361 = vcmp.ge.f32.partialorder %v4977, %v5197
        %vm5362 = vcmp.ge.f32.partialorder %v4978, %v5199
        %vm5363 = vcmp.ge.f32.partialorder %v4979, %v5201
        %vm5364 = vcmp.ge.f32.partialorder %v4980, %v5203
        %vm5365 = vcmp.ge.f32.partialorder %v4981, %v5205
        %vm5366 = vcmp.ge.f32.partialorder %v4982, %v5207
        %vm5367 = vcmp.ge.f32.partialorder %v4983, %v5209
        %vm5368 = vcmp.ge.f32.partialorder %v4984, %v5211
        %vm5369 = vcmp.ge.f32.partialorder %v4985, %v5213
        %vm5370 = vcmp.ge.f32.partialorder %v4986, %v5215
        %vm5371 = vcmp.ge.f32.partialorder %v4987, %v5217
        %vm5372 = vcmp.ge.f32.partialorder %v4988, %v5219
        %vm5373 = vcmp.ge.f32.partialorder %v4989, %v5221
        %vm5374 = vcmp.ge.f32.partialorder %v4990, %v5223
        %vm5375 = vcmp.ge.f32.partialorder %v4991, %v5225
        %vm5376 = vcmp.ge.f32.partialorder %v4992, %v5227
        %vm5377 = vcmp.ge.f32.partialorder %v4993, %v5229
        %vm5378 = vcmp.ge.f32.partialorder %v4994, %v5231
        %vm5379 = vcmp.ge.f32.partialorder %v4995, %v5233
        %vm5380 = vcmp.ge.f32.partialorder %v4996, %v5235
        %vm5381 = vcmp.ge.f32.partialorder %v4997, %v5237
        %vm5382 = vcmp.ge.f32.partialorder %v4998, %v5239
        %vm5383 = vcmp.ge.f32.partialorder %v4999, %v5241
        %vm5384 = vcmp.ge.f32.partialorder %v5000, %v5243
        %vm5385 = vcmp.ge.f32.partialorder %v5001, %v5245
        %vm5386 = vcmp.ge.f32.partialorder %v5002, %v5247
        %vm5387 = vcmp.ge.f32.partialorder %v5003, %v5249
        %vm5388 = vcmp.ge.f32.partialorder %v5004, %v5251
        %vm5389 = vcmp.ge.f32.partialorder %v5005, %v5253
        %vm5390 = vcmp.ge.f32.partialorder %v5006, %v5255
        %vm5391 = vcmp.ge.f32.partialorder %v5007, %v5257
        %vm5392 = vcmp.ge.f32.partialorder %v5008, %v5259
        %vm5393 = vcmp.ge.f32.partialorder %v5009, %v5261
        %vm5394 = vcmp.ge.f32.partialorder %v5010, %v5263
        %vm5395 = vcmp.ge.f32.partialorder %v5011, %v5265
        %vm5396 = vcmp.ge.f32.partialorder %v5012, %v5267
        %vm5397 = vcmp.ge.f32.partialorder %v5013, %v5269
        %v5398 = vsel %vm5270, 1.0, 0.0
        %v5399 = vsel %vm5271, 1.0, 0.0
        %v5400 = vsel %vm5272, 1.0, 0.0
        %v5401 = vsel %vm5273, 1.0, 0.0
        %v5402 = vsel %vm5274, 1.0, 0.0
        %v5403 = vsel %vm5275, 1.0, 0.0
        %v5404 = vsel %vm5276, 1.0, 0.0
        %v5405 = vsel %vm5277, 1.0, 0.0
        %v5406 = vsel %vm5278, 1.0, 0.0
        %v5407 = vsel %vm5279, 1.0, 0.0
        %v5408 = vsel %vm5280, 1.0, 0.0
        %v5409 = vsel %vm5281, 1.0, 0.0
        %v5410 = vsel %vm5282, 1.0, 0.0
        %v5411 = vsel %vm5283, 1.0, 0.0
        %v5412 = vsel %vm5284, 1.0, 0.0
        %v5413 = vsel %vm5285, 1.0, 0.0
        %v5414 = vsel %vm5286, 1.0, 0.0
        %v5415 = vsel %vm5287, 1.0, 0.0
        %v5416 = vsel %vm5288, 1.0, 0.0
        %v5417 = vsel %vm5289, 1.0, 0.0
        %v5418 = vsel %vm5290, 1.0, 0.0
        %v5419 = vsel %vm5291, 1.0, 0.0
        %v5420 = vsel %vm5292, 1.0, 0.0
        %v5421 = vsel %vm5293, 1.0, 0.0
        %v5422 = vsel %vm5294, 1.0, 0.0
        %v5423 = vsel %vm5295, 1.0, 0.0
        %v5424 = vsel %vm5296, 1.0, 0.0
        %v5425 = vsel %vm5297, 1.0, 0.0
        %v5426 = vsel %vm5298, 1.0, 0.0
        %v5427 = vsel %vm5299, 1.0, 0.0
        %v5428 = vsel %vm5300, 1.0, 0.0
        %v5429 = vsel %vm5301, 1.0, 0.0
        %v5430 = vsel %vm5302, 1.0, 0.0
        %v5431 = vsel %vm5303, 1.0, 0.0
        %v5432 = vsel %vm5304, 1.0, 0.0
        %v5433 = vsel %vm5305, 1.0, 0.0
        %v5434 = vsel %vm5306, 1.0, 0.0
        %v5435 = vsel %vm5307, 1.0, 0.0
        %v5436 = vsel %vm5308, 1.0, 0.0
        %v5437 = vsel %vm5309, 1.0, 0.0
        %v5438 = vsel %vm5310, 1.0, 0.0
        %v5439 = vsel %vm5311, 1.0, 0.0
        %v5440 = vsel %vm5312, 1.0, 0.0
        %v5441 = vsel %vm5313, 1.0, 0.0
        %v5442 = vsel %vm5314, 1.0, 0.0
        %v5443 = vsel %vm5315, 1.0, 0.0
        %v5444 = vsel %vm5316, 1.0, 0.0
        %v5445 = vsel %vm5317, 1.0, 0.0
        %v5446 = vsel %vm5318, 1.0, 0.0
        %v5447 = vsel %vm5319, 1.0, 0.0
        %v5448 = vsel %vm5320, 1.0, 0.0
        %v5449 = vsel %vm5321, 1.0, 0.0
        %v5450 = vsel %vm5322, 1.0, 0.0
        %v5451 = vsel %vm5323, 1.0, 0.0
        %v5452 = vsel %vm5324, 1.0, 0.0
        %v5453 = vsel %vm5325, 1.0, 0.0
        %v5454 = vsel %vm5326, 1.0, 0.0
        %v5455 = vsel %vm5327, 1.0, 0.0
        %v5456 = vsel %vm5328, 1.0, 0.0
        %v5457 = vsel %vm5329, 1.0, 0.0
        %v5458 = vsel %vm5330, 1.0, 0.0
        %v5459 = vsel %vm5331, 1.0, 0.0
        %v5460 = vsel %vm5332, 1.0, 0.0
        %v5461 = vsel %vm5333, 1.0, 0.0
        %v5462 = vsel %vm5334, 1.0, 0.0
        %v5463 = vsel %vm5335, 1.0, 0.0
        %v5464 = vsel %vm5336, 1.0, 0.0
        %v5465 = vsel %vm5337, 1.0, 0.0
        %v5466 = vsel %vm5338, 1.0, 0.0
        %v5467 = vsel %vm5339, 1.0, 0.0
        %v5468 = vsel %vm5340, 1.0, 0.0
        %v5469 = vsel %vm5341, 1.0, 0.0
        %v5470 = vsel %vm5342, 1.0, 0.0
        %v5471 = vsel %vm5343, 1.0, 0.0
        %v5472 = vsel %vm5344, 1.0, 0.0
        %v5473 = vsel %vm5345, 1.0, 0.0
        %v5474 = vsel %vm5346, 1.0, 0.0
        %v5475 = vsel %vm5347, 1.0, 0.0
        %v5476 = vsel %vm5348, 1.0, 0.0
        %v5477 = vsel %vm5349, 1.0, 0.0
        %v5478 = vsel %vm5350, 1.0, 0.0
        %v5479 = vsel %vm5351, 1.0, 0.0
        %v5480 = vsel %vm5352, 1.0, 0.0
        %v5481 = vsel %vm5353, 1.0, 0.0
        %v5482 = vsel %vm5354, 1.0, 0.0
        %v5483 = vsel %vm5355, 1.0, 0.0
        %v5484 = vsel %vm5356, 1.0, 0.0
        %v5485 = vsel %vm5357, 1.0, 0.0
        %v5486 = vsel %vm5358, 1.0, 0.0
        %v5487 = vsel %vm5359, 1.0, 0.0
        %v5488 = vsel %vm5360, 1.0, 0.0
        %v5489 = vsel %vm5361, 1.0, 0.0
        %v5490 = vsel %vm5362, 1.0, 0.0
        %v5491 = vsel %vm5363, 1.0, 0.0
        %v5492 = vsel %vm5364, 1.0, 0.0
        %v5493 = vsel %vm5365, 1.0, 0.0
        %v5494 = vsel %vm5366, 1.0, 0.0
        %v5495 = vsel %vm5367, 1.0, 0.0
        %v5496 = vsel %vm5368, 1.0, 0.0
        %v5497 = vsel %vm5369, 1.0, 0.0
        %v5498 = vsel %vm5370, 1.0, 0.0
        %v5499 = vsel %vm5371, 1.0, 0.0
        %v5500 = vsel %vm5372, 1.0, 0.0
        %v5501 = vsel %vm5373, 1.0, 0.0
        %v5502 = vsel %vm5374, 1.0, 0.0
        %v5503 = vsel %vm5375, 1.0, 0.0
        %v5504 = vsel %vm5376, 1.0, 0.0
        %v5505 = vsel %vm5377, 1.0, 0.0
        %v5506 = vsel %vm5378, 1.0, 0.0
        %v5507 = vsel %vm5379, 1.0, 0.0
        %v5508 = vsel %vm5380, 1.0, 0.0
        %v5509 = vsel %vm5381, 1.0, 0.0
        %v5510 = vsel %vm5382, 1.0, 0.0
        %v5511 = vsel %vm5383, 1.0, 0.0
        %v5512 = vsel %vm5384, 1.0, 0.0
        %v5513 = vsel %vm5385, 1.0, 0.0
        %v5514 = vsel %vm5386, 1.0, 0.0
        %v5515 = vsel %vm5387, 1.0, 0.0
        %v5516 = vsel %vm5388, 1.0, 0.0
        %v5517 = vsel %vm5389, 1.0, 0.0
        %v5518 = vsel %vm5390, 1.0, 0.0
        %v5519 = vsel %vm5391, 1.0, 0.0
        %v5520 = vsel %vm5392, 1.0, 0.0
        %v5521 = vsel %vm5393, 1.0, 0.0
        %v5522 = vsel %vm5394, 1.0, 0.0
        %v5523 = vsel %vm5395, 1.0, 0.0
        %v5524 = vsel %vm5396, 1.0, 0.0
        %v5525 = vsel %vm5397, 1.0, 0.0
        %v5526 = vpack.c.bf16 %v4375, %v4375
        %v5527 = vpack.c.bf16 %v4377, %v4377
        %v5528 = vpack.c.bf16 %v4379, %v4379
        %v5529 = vpack.c.bf16 %v4381, %v4381
        %v5530 = vpack.c.bf16 %v4383, %v4383
        %v5531 = vpack.c.bf16 %v4385, %v4385
        %v5532 = vpack.c.bf16 %v4387, %v4387
        %v5533 = vpack.c.bf16 %v4389, %v4389
        %v5534 = vpack.c.bf16 %v4391, %v4391
        %v5535 = vpack.c.bf16 %v4393, %v4393
        %v5536 = vpack.c.bf16 %v4395, %v4395
        %v5537 = vpack.c.bf16 %v4397, %v4397
        %v5538 = vpack.c.bf16 %v4399, %v4399
        %v5539 = vpack.c.bf16 %v4401, %v4401
        %v5540 = vpack.c.bf16 %v4403, %v4403
        %v5541 = vpack.c.bf16 %v4405, %v4405
        %v5542 = vpack.c.bf16 %v4407, %v4407
        %v5543 = vpack.c.bf16 %v4409, %v4409
        %v5544 = vpack.c.bf16 %v4411, %v4411
        %v5545 = vpack.c.bf16 %v4413, %v4413
        %v5546 = vpack.c.bf16 %v4415, %v4415
        %v5547 = vpack.c.bf16 %v4417, %v4417
        %v5548 = vpack.c.bf16 %v4419, %v4419
        %v5549 = vpack.c.bf16 %v4421, %v4421
        %v5550 = vpack.c.bf16 %v4423, %v4423
        %v5551 = vpack.c.bf16 %v4425, %v4425
        %v5552 = vpack.c.bf16 %v4427, %v4427
        %v5553 = vpack.c.bf16 %v4429, %v4429
        %v5554 = vpack.c.bf16 %v4431, %v4431
        %v5555 = vpack.c.bf16 %v4433, %v4433
        %v5556 = vpack.c.bf16 %v4435, %v4435
        %v5557 = vpack.c.bf16 %v4437, %v4437
        %v5558 = vpack.c.bf16 %v4439, %v4439
        %v5559 = vpack.c.bf16 %v4441, %v4441
        %v5560 = vpack.c.bf16 %v4443, %v4443
        %v5561 = vpack.c.bf16 %v4445, %v4445
        %v5562 = vpack.c.bf16 %v4447, %v4447
        %v5563 = vpack.c.bf16 %v4449, %v4449
        %v5564 = vpack.c.bf16 %v4451, %v4451
        %v5565 = vpack.c.bf16 %v4453, %v4453
        %v5566 = vpack.c.bf16 %v4455, %v4455
        %v5567 = vpack.c.bf16 %v4457, %v4457
        %v5568 = vpack.c.bf16 %v4459, %v4459
        %v5569 = vpack.c.bf16 %v4461, %v4461
        %v5570 = vpack.c.bf16 %v4463, %v4463
        %v5571 = vpack.c.bf16 %v4465, %v4465
        %v5572 = vpack.c.bf16 %v4467, %v4467
        %v5573 = vpack.c.bf16 %v4469, %v4469
        %v5574 = vpack.c.bf16 %v4471, %v4471
        %v5575 = vpack.c.bf16 %v4473, %v4473
        %v5576 = vpack.c.bf16 %v4475, %v4475
        %v5577 = vpack.c.bf16 %v4477, %v4477
        %v5578 = vpack.c.bf16 %v4479, %v4479
        %v5579 = vpack.c.bf16 %v4481, %v4481
        %v5580 = vpack.c.bf16 %v4483, %v4483
        %v5581 = vpack.c.bf16 %v4485, %v4485
        %v5582 = vpack.c.bf16 %v4487, %v4487
        %v5583 = vpack.c.bf16 %v4489, %v4489
        %v5584 = vpack.c.bf16 %v4491, %v4491
        %v5585 = vpack.c.bf16 %v4493, %v4493
        %v5586 = vpack.c.bf16 %v4495, %v4495
        %v5587 = vpack.c.bf16 %v4497, %v4497
        %v5588 = vpack.c.bf16 %v4499, %v4499
        %v5589 = vpack.c.bf16 %v4501, %v4501
        %v5590 = vpack.c.bf16 %v4503, %v4503
        %v5591 = vpack.c.bf16 %v4505, %v4505
        %v5592 = vpack.c.bf16 %v4507, %v4507
        %v5593 = vpack.c.bf16 %v4509, %v4509
        %v5594 = vpack.c.bf16 %v4511, %v4511
        %v5595 = vpack.c.bf16 %v4513, %v4513
        %v5596 = vpack.c.bf16 %v4515, %v4515
        %v5597 = vpack.c.bf16 %v4517, %v4517
        %v5598 = vpack.c.bf16 %v4519, %v4519
        %v5599 = vpack.c.bf16 %v4521, %v4521
        %v5600 = vpack.c.bf16 %v4523, %v4523
        %v5601 = vpack.c.bf16 %v4525, %v4525
        %v5602 = vpack.c.bf16 %v4527, %v4527
        %v5603 = vpack.c.bf16 %v4529, %v4529
        %v5604 = vpack.c.bf16 %v4531, %v4531
        %v5605 = vpack.c.bf16 %v4533, %v4533
        %v5606 = vpack.c.bf16 %v4535, %v4535
        %v5607 = vpack.c.bf16 %v4537, %v4537
        %v5608 = vpack.c.bf16 %v4539, %v4539
        %v5609 = vpack.c.bf16 %v4541, %v4541
        %v5610 = vpack.c.bf16 %v4543, %v4543
        %v5611 = vpack.c.bf16 %v4545, %v4545
        %v5612 = vpack.c.bf16 %v4547, %v4547
        %v5613 = vpack.c.bf16 %v4549, %v4549
        %v5614 = vpack.c.bf16 %v4551, %v4551
        %v5615 = vpack.c.bf16 %v4553, %v4553
        %v5616 = vpack.c.bf16 %v4555, %v4555
        %v5617 = vpack.c.bf16 %v4557, %v4557
        %v5618 = vpack.c.bf16 %v4559, %v4559
        %v5619 = vpack.c.bf16 %v4561, %v4561
        %v5620 = vpack.c.bf16 %v4563, %v4563
        %v5621 = vpack.c.bf16 %v4565, %v4565
        %v5622 = vpack.c.bf16 %v4567, %v4567
        %v5623 = vpack.c.bf16 %v4569, %v4569
        %v5624 = vpack.c.bf16 %v4571, %v4571
        %v5625 = vpack.c.bf16 %v4573, %v4573
        %v5626 = vpack.c.bf16 %v4575, %v4575
        %v5627 = vpack.c.bf16 %v4577, %v4577
        %v5628 = vpack.c.bf16 %v4579, %v4579
        %v5629 = vpack.c.bf16 %v4581, %v4581
        %v5630 = vpack.c.bf16 %v4583, %v4583
        %v5631 = vpack.c.bf16 %v4585, %v4585
        %v5632 = vpack.c.bf16 %v4587, %v4587
        %v5633 = vpack.c.bf16 %v4589, %v4589
        %v5634 = vpack.c.bf16 %v4591, %v4591
        %v5635 = vpack.c.bf16 %v4593, %v4593
        %v5636 = vpack.c.bf16 %v4595, %v4595
        %v5637 = vpack.c.bf16 %v4597, %v4597
        %v5638 = vpack.c.bf16 %v4599, %v4599
        %v5639 = vpack.c.bf16 %v4601, %v4601
        %v5640 = vpack.c.bf16 %v4603, %v4603
        %v5641 = vpack.c.bf16 %v4605, %v4605
        %v5642 = vpack.c.bf16 %v4607, %v4607
        %v5643 = vpack.c.bf16 %v4609, %v4609
        %v5644 = vpack.c.bf16 %v4611, %v4611
        %v5645 = vpack.c.bf16 %v4613, %v4613
        %v5646 = vpack.c.bf16 %v4615, %v4615
        %v5647 = vpack.c.bf16 %v4617, %v4617
        %v5648 = vpack.c.bf16 %v4619, %v4619
        %v5649 = vpack.c.bf16 %v4621, %v4621
        %v5650 = vpack.c.bf16 %v4623, %v4623
        %v5651 = vpack.c.bf16 %v4625, %v4625
        %v5652 = vpack.c.bf16 %v4627, %v4627
        %v5653 = vpack.c.bf16 %v4629, %v4629
        %5654 = vst [vmem:[%s377] sm:$0xf] %v5526
        %5655 = vst [vmem:[%s377 + $0x4] sm:$0xf] %v5527
        %5656 = vst [vmem:[%s377 + $0x8] sm:$0xf] %v5528
        %5657 = vst [vmem:[%s377 + $0xc] sm:$0xf] %v5529
        %5658 = vst [vmem:[%s377 + $0x10] sm:$0xf] %v5530
        %5659 = vst [vmem:[%s377 + $0x14] sm:$0xf] %v5531
        %5660 = vst [vmem:[%s377 + $0x18] sm:$0xf] %v5532
        %5661 = vst [vmem:[%s377 + $0x1c] sm:$0xf] %v5533
        %5662 = vst [vmem:[%s377 + $0x20] sm:$0xf] %v5534
        %5663 = vst [vmem:[%s377 + $0x24] sm:$0xf] %v5535
        %5664 = vst [vmem:[%s377 + $0x28] sm:$0xf] %v5536
        %5665 = vst [vmem:[%s377 + $0x2c] sm:$0xf] %v5537
        %5666 = vst [vmem:[%s377 + $0x30] sm:$0xf] %v5538
        %5667 = vst [vmem:[%s377 + $0x34] sm:$0xf] %v5539
        %5668 = vst [vmem:[%s377 + $0x38] sm:$0xf] %v5540
        %5669 = vst [vmem:[%s377 + $0x3c] sm:$0xf] %v5541
        %5670 = vst [vmem:[%s377 + $0x40] sm:$0xf] %v5542
        %5671 = vst [vmem:[%s377 + $0x44] sm:$0xf] %v5543
        %5672 = vst [vmem:[%s377 + $0x48] sm:$0xf] %v5544
        %5673 = vst [vmem:[%s377 + $0x4c] sm:$0xf] %v5545
        %5674 = vst [vmem:[%s377 + $0x50] sm:$0xf] %v5546
        %5675 = vst [vmem:[%s377 + $0x54] sm:$0xf] %v5547
        %5676 = vst [vmem:[%s377 + $0x58] sm:$0xf] %v5548
        %5677 = vst [vmem:[%s377 + $0x5c] sm:$0xf] %v5549
        %5678 = vst [vmem:[%s377 + $0x60] sm:$0xf] %v5550
        %5679 = vst [vmem:[%s377 + $0x64] sm:$0xf] %v5551
        %5680 = vst [vmem:[%s377 + $0x68] sm:$0xf] %v5552
        %5681 = vst [vmem:[%s377 + $0x6c] sm:$0xf] %v5553
        %5682 = vst [vmem:[%s377 + $0x70] sm:$0xf] %v5554
        %5683 = vst [vmem:[%s377 + $0x74] sm:$0xf] %v5555
        %5684 = vst [vmem:[%s377 + $0x78] sm:$0xf] %v5556
        %5685 = vst [vmem:[%s377 + $0x7c] sm:$0xf] %v5557
        %5686 = vst [vmem:[%s377 + $0x80] sm:$0xf] %v5558
        %5687 = vst [vmem:[%s377 + $0x84] sm:$0xf] %v5559
        %5688 = vst [vmem:[%s377 + $0x88] sm:$0xf] %v5560
        %5689 = vst [vmem:[%s377 + $0x8c] sm:$0xf] %v5561
        %5690 = vst [vmem:[%s377 + $0x90] sm:$0xf] %v5562
        %5691 = vst [vmem:[%s377 + $0x94] sm:$0xf] %v5563
        %5692 = vst [vmem:[%s377 + $0x98] sm:$0xf] %v5564
        %5693 = vst [vmem:[%s377 + $0x9c] sm:$0xf] %v5565
        %5694 = vst [vmem:[%s377 + $0xa0] sm:$0xf] %v5566
        %5695 = vst [vmem:[%s377 + $0xa4] sm:$0xf] %v5567
        %5696 = vst [vmem:[%s377 + $0xa8] sm:$0xf] %v5568
        %5697 = vst [vmem:[%s377 + $0xac] sm:$0xf] %v5569
        %5698 = vst [vmem:[%s377 + $0xb0] sm:$0xf] %v5570
        %5699 = vst [vmem:[%s377 + $0xb4] sm:$0xf] %v5571
        %5700 = vst [vmem:[%s377 + $0xb8] sm:$0xf] %v5572
        %5701 = vst [vmem:[%s377 + $0xbc] sm:$0xf] %v5573
        %5702 = vst [vmem:[%s377 + $0xc0] sm:$0xf] %v5574
        %5703 = vst [vmem:[%s377 + $0xc4] sm:$0xf] %v5575
        %5704 = vst [vmem:[%s377 + $0xc8] sm:$0xf] %v5576
        %5705 = vst [vmem:[%s377 + $0xcc] sm:$0xf] %v5577
        %5706 = vst [vmem:[%s377 + $0xd0] sm:$0xf] %v5578
        %5707 = vst [vmem:[%s377 + $0xd4] sm:$0xf] %v5579
        %5708 = vst [vmem:[%s377 + $0xd8] sm:$0xf] %v5580
        %5709 = vst [vmem:[%s377 + $0xdc] sm:$0xf] %v5581
        %5710 = vst [vmem:[%s377 + $0xe0] sm:$0xf] %v5582
        %5711 = vst [vmem:[%s377 + $0xe4] sm:$0xf] %v5583
        %5712 = vst [vmem:[%s377 + $0xe8] sm:$0xf] %v5584
        %5713 = vst [vmem:[%s377 + $0xec] sm:$0xf] %v5585
        %5714 = vst [vmem:[%s377 + $0xf0] sm:$0xf] %v5586
        %5715 = vst [vmem:[%s377 + $0xf4] sm:$0xf] %v5587
        %5716 = vst [vmem:[%s377 + $0xf8] sm:$0xf] %v5588
        %5717 = vst [vmem:[%s377 + $0xfc] sm:$0xf] %v5589
        %5718 = vst [vmem:[%s377 + $0x100] sm:$0xf] %v5590
        %5719 = vst [vmem:[%s377 + $0x104] sm:$0xf] %v5591
        %5720 = vst [vmem:[%s377 + $0x108] sm:$0xf] %v5592
        %5721 = vst [vmem:[%s377 + $0x10c] sm:$0xf] %v5593
        %5722 = vst [vmem:[%s377 + $0x110] sm:$0xf] %v5594
        %5723 = vst [vmem:[%s377 + $0x114] sm:$0xf] %v5595
        %5724 = vst [vmem:[%s377 + $0x118] sm:$0xf] %v5596
        %5725 = vst [vmem:[%s377 + $0x11c] sm:$0xf] %v5597
        %5726 = vst [vmem:[%s377 + $0x120] sm:$0xf] %v5598
        %5727 = vst [vmem:[%s377 + $0x124] sm:$0xf] %v5599
        %5728 = vst [vmem:[%s377 + $0x128] sm:$0xf] %v5600
        %5729 = vst [vmem:[%s377 + $0x12c] sm:$0xf] %v5601
        %5730 = vst [vmem:[%s377 + $0x130] sm:$0xf] %v5602
        %5731 = vst [vmem:[%s377 + $0x134] sm:$0xf] %v5603
        %5732 = vst [vmem:[%s377 + $0x138] sm:$0xf] %v5604
        %5733 = vst [vmem:[%s377 + $0x13c] sm:$0xf] %v5605
        %5734 = vst [vmem:[%s377 + $0x140] sm:$0xf] %v5606
        %5735 = vst [vmem:[%s377 + $0x144] sm:$0xf] %v5607
        %5736 = vst [vmem:[%s377 + $0x148] sm:$0xf] %v5608
        %5737 = vst [vmem:[%s377 + $0x14c] sm:$0xf] %v5609
        %5738 = vst [vmem:[%s377 + $0x150] sm:$0xf] %v5610
        %5739 = vst [vmem:[%s377 + $0x154] sm:$0xf] %v5611
        %5740 = vst [vmem:[%s377 + $0x158] sm:$0xf] %v5612
        %5741 = vst [vmem:[%s377 + $0x15c] sm:$0xf] %v5613
        %5742 = vst [vmem:[%s377 + $0x160] sm:$0xf] %v5614
        %5743 = vst [vmem:[%s377 + $0x164] sm:$0xf] %v5615
        %5744 = vst [vmem:[%s377 + $0x168] sm:$0xf] %v5616
        %5745 = vst [vmem:[%s377 + $0x16c] sm:$0xf] %v5617
        %5746 = vst [vmem:[%s377 + $0x170] sm:$0xf] %v5618
        %5747 = vst [vmem:[%s377 + $0x174] sm:$0xf] %v5619
        %5748 = vst [vmem:[%s377 + $0x178] sm:$0xf] %v5620
        %5749 = vst [vmem:[%s377 + $0x17c] sm:$0xf] %v5621
        %5750 = vst [vmem:[%s377 + $0x180] sm:$0xf] %v5622
        %5751 = vst [vmem:[%s377 + $0x184] sm:$0xf] %v5623
        %5752 = vst [vmem:[%s377 + $0x188] sm:$0xf] %v5624
        %5753 = vst [vmem:[%s377 + $0x18c] sm:$0xf] %v5625
        %5754 = vst [vmem:[%s377 + $0x190] sm:$0xf] %v5626
        %5755 = vst [vmem:[%s377 + $0x194] sm:$0xf] %v5627
        %5756 = vst [vmem:[%s377 + $0x198] sm:$0xf] %v5628
        %5757 = vst [vmem:[%s377 + $0x19c] sm:$0xf] %v5629
        %5758 = vst [vmem:[%s377 + $0x1a0] sm:$0xf] %v5630
        %5759 = vst [vmem:[%s377 + $0x1a4] sm:$0xf] %v5631
        %5760 = vst [vmem:[%s377 + $0x1a8] sm:$0xf] %v5632
        %5761 = vst [vmem:[%s377 + $0x1ac] sm:$0xf] %v5633
        %5762 = vst [vmem:[%s377 + $0x1b0] sm:$0xf] %v5634
        %5763 = vst [vmem:[%s377 + $0x1b4] sm:$0xf] %v5635
        %5764 = vst [vmem:[%s377 + $0x1b8] sm:$0xf] %v5636
        %5765 = vst [vmem:[%s377 + $0x1bc] sm:$0xf] %v5637
        %5766 = vst [vmem:[%s377 + $0x1c0] sm:$0xf] %v5638
        %5767 = vst [vmem:[%s377 + $0x1c4] sm:$0xf] %v5639
        %5768 = vst [vmem:[%s377 + $0x1c8] sm:$0xf] %v5640
        %5769 = vst [vmem:[%s377 + $0x1cc] sm:$0xf] %v5641
        %5770 = vst [vmem:[%s377 + $0x1d0] sm:$0xf] %v5642
        %5771 = vst [vmem:[%s377 + $0x1d4] sm:$0xf] %v5643
        %5772 = vst [vmem:[%s377 + $0x1d8] sm:$0xf] %v5644
        %5773 = vst [vmem:[%s377 + $0x1dc] sm:$0xf] %v5645
        %5774 = vst [vmem:[%s377 + $0x1e0] sm:$0xf] %v5646
        %5775 = vst [vmem:[%s377 + $0x1e4] sm:$0xf] %v5647
        %5776 = vst [vmem:[%s377 + $0x1e8] sm:$0xf] %v5648
        %5777 = vst [vmem:[%s377 + $0x1ec] sm:$0xf] %v5649
        %5778 = vst [vmem:[%s377 + $0x1f0] sm:$0xf] %v5650
        %5779 = vst [vmem:[%s377 + $0x1f4] sm:$0xf] %v5651
        %5780 = vst [vmem:[%s377 + $0x1f8] sm:$0xf] %v5652
        %5781 = vst [vmem:[%s377 + $0x1fc] sm:$0xf] %v5653
        %v5782 = vpack.c.bf16 %v5398, %v5398
        %v5783 = vpack.c.bf16 %v5399, %v5399
        %v5784 = vpack.c.bf16 %v5400, %v5400
        %v5785 = vpack.c.bf16 %v5401, %v5401
        %v5786 = vpack.c.bf16 %v5402, %v5402
        %v5787 = vpack.c.bf16 %v5403, %v5403
        %v5788 = vpack.c.bf16 %v5404, %v5404
        %v5789 = vpack.c.bf16 %v5405, %v5405
        %v5790 = vpack.c.bf16 %v5406, %v5406
        %v5791 = vpack.c.bf16 %v5407, %v5407
        %v5792 = vpack.c.bf16 %v5408, %v5408
        %v5793 = vpack.c.bf16 %v5409, %v5409
        %v5794 = vpack.c.bf16 %v5410, %v5410
        %v5795 = vpack.c.bf16 %v5411, %v5411
        %v5796 = vpack.c.bf16 %v5412, %v5412
        %v5797 = vpack.c.bf16 %v5413, %v5413
        %v5798 = vpack.c.bf16 %v5414, %v5414
        %v5799 = vpack.c.bf16 %v5415, %v5415
        %v5800 = vpack.c.bf16 %v5416, %v5416
        %v5801 = vpack.c.bf16 %v5417, %v5417
        %v5802 = vpack.c.bf16 %v5418, %v5418
        %v5803 = vpack.c.bf16 %v5419, %v5419
        %v5804 = vpack.c.bf16 %v5420, %v5420
        %v5805 = vpack.c.bf16 %v5421, %v5421
        %v5806 = vpack.c.bf16 %v5422, %v5422
        %v5807 = vpack.c.bf16 %v5423, %v5423
        %v5808 = vpack.c.bf16 %v5424, %v5424
        %v5809 = vpack.c.bf16 %v5425, %v5425
        %v5810 = vpack.c.bf16 %v5426, %v5426
        %v5811 = vpack.c.bf16 %v5427, %v5427
        %v5812 = vpack.c.bf16 %v5428, %v5428
        %v5813 = vpack.c.bf16 %v5429, %v5429
        %v5814 = vpack.c.bf16 %v5430, %v5430
        %v5815 = vpack.c.bf16 %v5431, %v5431
        %v5816 = vpack.c.bf16 %v5432, %v5432
        %v5817 = vpack.c.bf16 %v5433, %v5433
        %v5818 = vpack.c.bf16 %v5434, %v5434
        %v5819 = vpack.c.bf16 %v5435, %v5435
        %v5820 = vpack.c.bf16 %v5436, %v5436
        %v5821 = vpack.c.bf16 %v5437, %v5437
        %v5822 = vpack.c.bf16 %v5438, %v5438
        %v5823 = vpack.c.bf16 %v5439, %v5439
        %v5824 = vpack.c.bf16 %v5440, %v5440
        %v5825 = vpack.c.bf16 %v5441, %v5441
        %v5826 = vpack.c.bf16 %v5442, %v5442
        %v5827 = vpack.c.bf16 %v5443, %v5443
        %v5828 = vpack.c.bf16 %v5444, %v5444
        %v5829 = vpack.c.bf16 %v5445, %v5445
        %v5830 = vpack.c.bf16 %v5446, %v5446
        %v5831 = vpack.c.bf16 %v5447, %v5447
        %v5832 = vpack.c.bf16 %v5448, %v5448
        %v5833 = vpack.c.bf16 %v5449, %v5449
        %v5834 = vpack.c.bf16 %v5450, %v5450
        %v5835 = vpack.c.bf16 %v5451, %v5451
        %v5836 = vpack.c.bf16 %v5452, %v5452
        %v5837 = vpack.c.bf16 %v5453, %v5453
        %v5838 = vpack.c.bf16 %v5454, %v5454
        %v5839 = vpack.c.bf16 %v5455, %v5455
        %v5840 = vpack.c.bf16 %v5456, %v5456
        %v5841 = vpack.c.bf16 %v5457, %v5457
        %v5842 = vpack.c.bf16 %v5458, %v5458
        %v5843 = vpack.c.bf16 %v5459, %v5459
        %v5844 = vpack.c.bf16 %v5460, %v5460
        %v5845 = vpack.c.bf16 %v5461, %v5461
        %v5846 = vpack.c.bf16 %v5462, %v5462
        %v5847 = vpack.c.bf16 %v5463, %v5463
        %v5848 = vpack.c.bf16 %v5464, %v5464
        %v5849 = vpack.c.bf16 %v5465, %v5465
        %v5850 = vpack.c.bf16 %v5466, %v5466
        %v5851 = vpack.c.bf16 %v5467, %v5467
        %v5852 = vpack.c.bf16 %v5468, %v5468
        %v5853 = vpack.c.bf16 %v5469, %v5469
        %v5854 = vpack.c.bf16 %v5470, %v5470
        %v5855 = vpack.c.bf16 %v5471, %v5471
        %v5856 = vpack.c.bf16 %v5472, %v5472
        %v5857 = vpack.c.bf16 %v5473, %v5473
        %v5858 = vpack.c.bf16 %v5474, %v5474
        %v5859 = vpack.c.bf16 %v5475, %v5475
        %v5860 = vpack.c.bf16 %v5476, %v5476
        %v5861 = vpack.c.bf16 %v5477, %v5477
        %v5862 = vpack.c.bf16 %v5478, %v5478
        %v5863 = vpack.c.bf16 %v5479, %v5479
        %v5864 = vpack.c.bf16 %v5480, %v5480
        %v5865 = vpack.c.bf16 %v5481, %v5481
        %v5866 = vpack.c.bf16 %v5482, %v5482
        %v5867 = vpack.c.bf16 %v5483, %v5483
        %v5868 = vpack.c.bf16 %v5484, %v5484
        %v5869 = vpack.c.bf16 %v5485, %v5485
        %v5870 = vpack.c.bf16 %v5486, %v5486
        %v5871 = vpack.c.bf16 %v5487, %v5487
        %v5872 = vpack.c.bf16 %v5488, %v5488
        %v5873 = vpack.c.bf16 %v5489, %v5489
        %v5874 = vpack.c.bf16 %v5490, %v5490
        %v5875 = vpack.c.bf16 %v5491, %v5491
        %v5876 = vpack.c.bf16 %v5492, %v5492
        %v5877 = vpack.c.bf16 %v5493, %v5493
        %v5878 = vpack.c.bf16 %v5494, %v5494
        %v5879 = vpack.c.bf16 %v5495, %v5495
        %v5880 = vpack.c.bf16 %v5496, %v5496
        %v5881 = vpack.c.bf16 %v5497, %v5497
        %v5882 = vpack.c.bf16 %v5498, %v5498
        %v5883 = vpack.c.bf16 %v5499, %v5499
        %v5884 = vpack.c.bf16 %v5500, %v5500
        %v5885 = vpack.c.bf16 %v5501, %v5501
        %v5886 = vpack.c.bf16 %v5502, %v5502
        %v5887 = vpack.c.bf16 %v5503, %v5503
        %v5888 = vpack.c.bf16 %v5504, %v5504
        %v5889 = vpack.c.bf16 %v5505, %v5505
        %v5890 = vpack.c.bf16 %v5506, %v5506
        %v5891 = vpack.c.bf16 %v5507, %v5507
        %v5892 = vpack.c.bf16 %v5508, %v5508
        %v5893 = vpack.c.bf16 %v5509, %v5509
        %v5894 = vpack.c.bf16 %v5510, %v5510
        %v5895 = vpack.c.bf16 %v5511, %v5511
        %v5896 = vpack.c.bf16 %v5512, %v5512
        %v5897 = vpack.c.bf16 %v5513, %v5513
        %v5898 = vpack.c.bf16 %v5514, %v5514
        %v5899 = vpack.c.bf16 %v5515, %v5515
        %v5900 = vpack.c.bf16 %v5516, %v5516
        %v5901 = vpack.c.bf16 %v5517, %v5517
        %v5902 = vpack.c.bf16 %v5518, %v5518
        %v5903 = vpack.c.bf16 %v5519, %v5519
        %v5904 = vpack.c.bf16 %v5520, %v5520
        %v5905 = vpack.c.bf16 %v5521, %v5521
        %v5906 = vpack.c.bf16 %v5522, %v5522
        %v5907 = vpack.c.bf16 %v5523, %v5523
        %v5908 = vpack.c.bf16 %v5524, %v5524
        %v5909 = vpack.c.bf16 %v5525, %v5525
        %5910 = vst [vmem:[%s370] sm:$0xf] %v5782
        %5911 = vst [vmem:[%s370 + $0x4] sm:$0xf] %v5783
        %5912 = vst [vmem:[%s370 + $0x8] sm:$0xf] %v5784
        %5913 = vst [vmem:[%s370 + $0xc] sm:$0xf] %v5785
        %5914 = vst [vmem:[%s370 + $0x10] sm:$0xf] %v5786
        %5915 = vst [vmem:[%s370 + $0x14] sm:$0xf] %v5787
        %5916 = vst [vmem:[%s370 + $0x18] sm:$0xf] %v5788
        %5917 = vst [vmem:[%s370 + $0x1c] sm:$0xf] %v5789
        %5918 = vst [vmem:[%s370 + $0x20] sm:$0xf] %v5790
        %5919 = vst [vmem:[%s370 + $0x24] sm:$0xf] %v5791
        %5920 = vst [vmem:[%s370 + $0x28] sm:$0xf] %v5792
        %5921 = vst [vmem:[%s370 + $0x2c] sm:$0xf] %v5793
        %5922 = vst [vmem:[%s370 + $0x30] sm:$0xf] %v5794
        %5923 = vst [vmem:[%s370 + $0x34] sm:$0xf] %v5795
        %5924 = vst [vmem:[%s370 + $0x38] sm:$0xf] %v5796
        %5925 = vst [vmem:[%s370 + $0x3c] sm:$0xf] %v5797
        %5926 = vst [vmem:[%s370 + $0x40] sm:$0xf] %v5798
        %5927 = vst [vmem:[%s370 + $0x44] sm:$0xf] %v5799
        %5928 = vst [vmem:[%s370 + $0x48] sm:$0xf] %v5800
        %5929 = vst [vmem:[%s370 + $0x4c] sm:$0xf] %v5801
        %5930 = vst [vmem:[%s370 + $0x50] sm:$0xf] %v5802
        %5931 = vst [vmem:[%s370 + $0x54] sm:$0xf] %v5803
        %5932 = vst [vmem:[%s370 + $0x58] sm:$0xf] %v5804
        %5933 = vst [vmem:[%s370 + $0x5c] sm:$0xf] %v5805
        %5934 = vst [vmem:[%s370 + $0x60] sm:$0xf] %v5806
        %5935 = vst [vmem:[%s370 + $0x64] sm:$0xf] %v5807
        %5936 = vst [vmem:[%s370 + $0x68] sm:$0xf] %v5808
        %5937 = vst [vmem:[%s370 + $0x6c] sm:$0xf] %v5809
        %5938 = vst [vmem:[%s370 + $0x70] sm:$0xf] %v5810
        %5939 = vst [vmem:[%s370 + $0x74] sm:$0xf] %v5811
        %5940 = vst [vmem:[%s370 + $0x78] sm:$0xf] %v5812
        %5941 = vst [vmem:[%s370 + $0x7c] sm:$0xf] %v5813
        %5942 = vst [vmem:[%s370 + $0x80] sm:$0xf] %v5814
        %5943 = vst [vmem:[%s370 + $0x84] sm:$0xf] %v5815
        %5944 = vst [vmem:[%s370 + $0x88] sm:$0xf] %v5816
        %5945 = vst [vmem:[%s370 + $0x8c] sm:$0xf] %v5817
        %5946 = vst [vmem:[%s370 + $0x90] sm:$0xf] %v5818
        %5947 = vst [vmem:[%s370 + $0x94] sm:$0xf] %v5819
        %5948 = vst [vmem:[%s370 + $0x98] sm:$0xf] %v5820
        %5949 = vst [vmem:[%s370 + $0x9c] sm:$0xf] %v5821
        %5950 = vst [vmem:[%s370 + $0xa0] sm:$0xf] %v5822
        %5951 = vst [vmem:[%s370 + $0xa4] sm:$0xf] %v5823
        %5952 = vst [vmem:[%s370 + $0xa8] sm:$0xf] %v5824
        %5953 = vst [vmem:[%s370 + $0xac] sm:$0xf] %v5825
        %5954 = vst [vmem:[%s370 + $0xb0] sm:$0xf] %v5826
        %5955 = vst [vmem:[%s370 + $0xb4] sm:$0xf] %v5827
        %5956 = vst [vmem:[%s370 + $0xb8] sm:$0xf] %v5828
        %5957 = vst [vmem:[%s370 + $0xbc] sm:$0xf] %v5829
        %5958 = vst [vmem:[%s370 + $0xc0] sm:$0xf] %v5830
        %5959 = vst [vmem:[%s370 + $0xc4] sm:$0xf] %v5831
        %5960 = vst [vmem:[%s370 + $0xc8] sm:$0xf] %v5832
        %5961 = vst [vmem:[%s370 + $0xcc] sm:$0xf] %v5833
        %5962 = vst [vmem:[%s370 + $0xd0] sm:$0xf] %v5834
        %5963 = vst [vmem:[%s370 + $0xd4] sm:$0xf] %v5835
        %5964 = vst [vmem:[%s370 + $0xd8] sm:$0xf] %v5836
        %5965 = vst [vmem:[%s370 + $0xdc] sm:$0xf] %v5837
        %5966 = vst [vmem:[%s370 + $0xe0] sm:$0xf] %v5838
        %5967 = vst [vmem:[%s370 + $0xe4] sm:$0xf] %v5839
        %5968 = vst [vmem:[%s370 + $0xe8] sm:$0xf] %v5840
        %5969 = vst [vmem:[%s370 + $0xec] sm:$0xf] %v5841
        %5970 = vst [vmem:[%s370 + $0xf0] sm:$0xf] %v5842
        %5971 = vst [vmem:[%s370 + $0xf4] sm:$0xf] %v5843
        %5972 = vst [vmem:[%s370 + $0xf8] sm:$0xf] %v5844
        %5973 = vst [vmem:[%s370 + $0xfc] sm:$0xf] %v5845
        %5974 = vst [vmem:[%s370 + $0x100] sm:$0xf] %v5846
        %5975 = vst [vmem:[%s370 + $0x104] sm:$0xf] %v5847
        %5976 = vst [vmem:[%s370 + $0x108] sm:$0xf] %v5848
        %5977 = vst [vmem:[%s370 + $0x10c] sm:$0xf] %v5849
        %5978 = vst [vmem:[%s370 + $0x110] sm:$0xf] %v5850
        %5979 = vst [vmem:[%s370 + $0x114] sm:$0xf] %v5851
        %5980 = vst [vmem:[%s370 + $0x118] sm:$0xf] %v5852
        %5981 = vst [vmem:[%s370 + $0x11c] sm:$0xf] %v5853
        %5982 = vst [vmem:[%s370 + $0x120] sm:$0xf] %v5854
        %5983 = vst [vmem:[%s370 + $0x124] sm:$0xf] %v5855
        %5984 = vst [vmem:[%s370 + $0x128] sm:$0xf] %v5856
        %5985 = vst [vmem:[%s370 + $0x12c] sm:$0xf] %v5857
        %5986 = vst [vmem:[%s370 + $0x130] sm:$0xf] %v5858
        %5987 = vst [vmem:[%s370 + $0x134] sm:$0xf] %v5859
        %5988 = vst [vmem:[%s370 + $0x138] sm:$0xf] %v5860
        %5989 = vst [vmem:[%s370 + $0x13c] sm:$0xf] %v5861
        %5990 = vst [vmem:[%s370 + $0x140] sm:$0xf] %v5862
        %5991 = vst [vmem:[%s370 + $0x144] sm:$0xf] %v5863
        %5992 = vst [vmem:[%s370 + $0x148] sm:$0xf] %v5864
        %5993 = vst [vmem:[%s370 + $0x14c] sm:$0xf] %v5865
        %5994 = vst [vmem:[%s370 + $0x150] sm:$0xf] %v5866
        %5995 = vst [vmem:[%s370 + $0x154] sm:$0xf] %v5867
        %5996 = vst [vmem:[%s370 + $0x158] sm:$0xf] %v5868
        %5997 = vst [vmem:[%s370 + $0x15c] sm:$0xf] %v5869
        %5998 = vst [vmem:[%s370 + $0x160] sm:$0xf] %v5870
        %5999 = vst [vmem:[%s370 + $0x164] sm:$0xf] %v5871
        %6000 = vst [vmem:[%s370 + $0x168] sm:$0xf] %v5872
        %6001 = vst [vmem:[%s370 + $0x16c] sm:$0xf] %v5873
        %6002 = vst [vmem:[%s370 + $0x170] sm:$0xf] %v5874
        %6003 = vst [vmem:[%s370 + $0x174] sm:$0xf] %v5875
        %6004 = vst [vmem:[%s370 + $0x178] sm:$0xf] %v5876
        %6005 = vst [vmem:[%s370 + $0x17c] sm:$0xf] %v5877
        %6006 = vst [vmem:[%s370 + $0x180] sm:$0xf] %v5878
        %6007 = vst [vmem:[%s370 + $0x184] sm:$0xf] %v5879
        %6008 = vst [vmem:[%s370 + $0x188] sm:$0xf] %v5880
        %6009 = vst [vmem:[%s370 + $0x18c] sm:$0xf] %v5881
        %6010 = vst [vmem:[%s370 + $0x190] sm:$0xf] %v5882
        %6011 = vst [vmem:[%s370 + $0x194] sm:$0xf] %v5883
        %6012 = vst [vmem:[%s370 + $0x198] sm:$0xf] %v5884
        %6013 = vst [vmem:[%s370 + $0x19c] sm:$0xf] %v5885
        %6014 = vst [vmem:[%s370 + $0x1a0] sm:$0xf] %v5886
        %6015 = vst [vmem:[%s370 + $0x1a4] sm:$0xf] %v5887
        %6016 = vst [vmem:[%s370 + $0x1a8] sm:$0xf] %v5888
        %6017 = vst [vmem:[%s370 + $0x1ac] sm:$0xf] %v5889
        %6018 = vst [vmem:[%s370 + $0x1b0] sm:$0xf] %v5890
        %6019 = vst [vmem:[%s370 + $0x1b4] sm:$0xf] %v5891
        %6020 = vst [vmem:[%s370 + $0x1b8] sm:$0xf] %v5892
        %6021 = vst [vmem:[%s370 + $0x1bc] sm:$0xf] %v5893
        %6022 = vst [vmem:[%s370 + $0x1c0] sm:$0xf] %v5894
        %6023 = vst [vmem:[%s370 + $0x1c4] sm:$0xf] %v5895
        %6024 = vst [vmem:[%s370 + $0x1c8] sm:$0xf] %v5896
        %6025 = vst [vmem:[%s370 + $0x1cc] sm:$0xf] %v5897
        %6026 = vst [vmem:[%s370 + $0x1d0] sm:$0xf] %v5898
        %6027 = vst [vmem:[%s370 + $0x1d4] sm:$0xf] %v5899
        %6028 = vst [vmem:[%s370 + $0x1d8] sm:$0xf] %v5900
        %6029 = vst [vmem:[%s370 + $0x1dc] sm:$0xf] %v5901
        %6030 = vst [vmem:[%s370 + $0x1e0] sm:$0xf] %v5902
        %6031 = vst [vmem:[%s370 + $0x1e4] sm:$0xf] %v5903
        %6032 = vst [vmem:[%s370 + $0x1e8] sm:$0xf] %v5904
        %6033 = vst [vmem:[%s370 + $0x1ec] sm:$0xf] %v5905
        %6034 = vst [vmem:[%s370 + $0x1f0] sm:$0xf] %v5906
        %6035 = vst [vmem:[%s370 + $0x1f4] sm:$0xf] %v5907
        %6036 = vst [vmem:[%s370 + $0x1f8] sm:$0xf] %v5908
        %6037 = vst [vmem:[%s370 + $0x1fc] sm:$0xf] %v5909
        %s6038 = sand.u32 %s176, 1
        %s6039 = scalar_lea.sflag [#allocation4], %s6038
        %s6040 = sand.u32 %s176, 1
        %s6041 = smul.addr %s6040, 512
        %s6042 = scalar_lea.vmem [#allocation10], %s6041
        %s6043 = sand.u32 %s202, 1
        %s6044 = scalar_lea.sflag [#allocation12], %s6043
        %s6045 = sand.u32 %s202, 1
        %s6046 = smul.addr %s6045, 512
        %s6047 = scalar_lea.vmem [#allocation11], %s6046
        // Predicated region
        $region61: #{tpu_custom_call.1} parent=43 // pred_check
          %p6048 = pneg %p186
        $region62: #{tpu_custom_call.1} parent=43 // pred_check_branch
          %6050 = sbr.rel (%p6048) target = $region64
        $region63: #{tpu_custom_call.1} parent=43 // pred_region
          %s6051 = smul.u32 16, %s32
          %s6053 = ssub.s32 8192, 8192
          %6054 = vsyncadd %s6039, %s6053
          %s6055 = smul.addr %s6051, 8
          %s6056 = smul.addr %s6055, 64
          %s6057 = scalar_lea.hbm %s6, %s6056
          %s6058 = sshll.u32 %s6042, 4
          %s6059 = int_to_ptr.vmem [resolvable:$true] %s6058
          %6064 = dma.vmem_to_hbm [thread:$0]  %s6059, 8192, %s6057, %s6039, 64, 64, 4
        $region64: #{tpu_custom_call.1} parent=43 // pred_fallthru
          _
        // Predicated region
        $region65: #{tpu_custom_call.1} parent=43 // pred_check
          %p6065 = pneg %p212
        $region66: #{tpu_custom_call.1} parent=43 // pred_check_branch
          %6067 = sbr.rel (%p6065) target = $region68
        $region67: #{tpu_custom_call.1} parent=43 // pred_region
          %s6068 = smul.u32 16, %s32
          %s6070 = ssub.s32 8192, 8192
          %6071 = vsyncadd %s6044, %s6070
          %s6072 = smul.addr %s6068, 8
          %s6073 = smul.addr %s6072, 64
          %s6074 = scalar_lea.hbm %s7, %s6073
          %s6075 = sshll.u32 %s6047, 4
          %s6076 = int_to_ptr.vmem [resolvable:$true] %s6075
          %6081 = dma.vmem_to_hbm [thread:$0]  %s6076, 8192, %s6074, %s6044, 64, 64, 4
        $region68: #{tpu_custom_call.1} parent=43 // pred_fallthru
          _
      $region44: #{tpu_custom_call.1} parent=5 // pred_fallthru
        _
      %p6082 = scmp.le.s32.totalorder 2, %s27
      // Predicated region
      $region69: #{tpu_custom_call.1} parent=5 // pred_check
        %p6083 = pneg %p6082
      $region70: #{tpu_custom_call.1} parent=5 // pred_check_branch
        %6085 = sbr.rel (%p6083) target = $region72
      $region71: #{tpu_custom_call.1} parent=5 // pred_region
        %s6086 = ssub.s32 %s27, 2
        // Predicated region
        $region73: #{tpu_custom_call.1} parent=71 // pred_check
          %p6087 = pneg %p192
        $region74: #{tpu_custom_call.1} parent=71 // pred_check_branch
          %6089 = sbr.rel (%p6087) target = $region76
        $region75: #{tpu_custom_call.1} parent=71 // pred_region
          %s6090 = sand.u32 %s177, 1
          %s6091 = scalar_lea.sflag [#allocation4], %s6090
          %s6092 = sand.u32 %s177, 1
          %s6093 = smul.addr %s6092, 512
          %s6094 = scalar_lea.vmem [#allocation10], %s6093
          %6095 = dma.done %s6091, 8192
        $region76: #{tpu_custom_call.1} parent=71 // pred_fallthru
          _
        // Predicated region
        $region77: #{tpu_custom_call.1} parent=71 // pred_check
          %p6096 = pneg %p218
        $region78: #{tpu_custom_call.1} parent=71 // pred_check_branch
          %6098 = sbr.rel (%p6096) target = $region80
        $region79: #{tpu_custom_call.1} parent=71 // pred_region
          %s6099 = sand.u32 %s203, 1
          %s6100 = scalar_lea.sflag [#allocation12], %s6099
          %s6101 = sand.u32 %s203, 1
          %s6102 = smul.addr %s6101, 512
          %s6103 = scalar_lea.vmem [#allocation11], %s6102
          %6104 = dma.done %s6100, 8192
        $region80: #{tpu_custom_call.1} parent=71 // pred_fallthru
          _
      $region72: #{tpu_custom_call.1} parent=5 // pred_fallthru
        _
    $region6: #{tpu_custom_call.1} parent=1 // loop_footer
      %s31 = sadd.s32 1, %s27
    $region7: #{tpu_custom_call.1} parent=1 // loop_footer_branch
      %26 = sbr.rel target = $region3
    $region8: #{tpu_custom_call.1} parent=1 // loop_exit
      _
    %6105 = vsyncpa [#allocation3], 1
    %s6106 = scalar_lea.sflag [#allocation3], 1
    %6107 = vsyncpa %s6106, 1
    %6108 = vsyncpa [#allocation6], 1
    %s6109 = scalar_lea.sflag [#allocation6], 1
    %6110 = vsyncpa %s6109, 1
    %6111 = vsyncpa [#allocation9], 1
    %6112 = vsyncpa [#allocation4], 1
    %s6113 = scalar_lea.sflag [#allocation4], 1
    %6114 = vsyncpa %s6113, 1
    %6115 = vsyncpa [#allocation12], 1
    %s6116 = scalar_lea.sflag [#allocation12], 1
    %6117 = vsyncpa %s6116, 1

</llo_original>
